<compile_context>
chip_gen: v7x
topology: tpu7x:2x2x1
jax: 0.10.0
libtpu: 0.0.40
codegen_flags: <defaults>
</compile_context>

<pallas_src>
import functools

import jax
import jax.numpy as jnp
from jax import lax
from jax.experimental import pallas as pl
from jax.experimental.pallas import tpu as pltpu


# ----------------------------------------------------------------------------
# Fused Pallas kernel: multi-layer GRU (wavefront) + FC on last hidden state
# ----------------------------------------------------------------------------
def _fused_gru_fc_kernel(T, Bp, H, Hp, num_layers, *refs):
    """refs layout (positional, as passed by pallas_call):

      x_ref                              (T*Bp, F)   bf16, time-major, batch-padded
      [wih, whh, bih, bhn] * num_layers  per-layer weights
                                           wih (in_f, 3Hp) bf16   (K un-padded)
                                           whh (H,    3Hp) bf16   (K un-padded)
                                           bih (1, 3Hp) f32 (r/z hidden biases folded in)
                                           bhn (1, Hp)  f32
      fc_w_ref                           (1, Hp) f32
      fc_b_ref                           (1, 1)  f32
      out_ref                            (Bp, 1) f32
      gi0_ref (VMEM scratch)             (T*Bp, 3*Hp) f32  layer-0 input proj
    """
    x_ref = refs[0]
    layer_refs = refs[1:1 + 4 * num_layers]
    fc_w_ref = refs[1 + 4 * num_layers]
    fc_b_ref = refs[2 + 4 * num_layers]
    out_ref = refs[3 + 4 * num_layers]
    gi0_ref = refs[4 + 4 * num_layers]

    # ---- load loop-invariant weights/biases ONCE --------------------------
    # (gives Mosaic the chance to keep W_hh resident across the unrolled loop
    #  instead of re-streaming it every timestep)
    wih = [layer_refs[4 * l][...] for l in range(num_layers)]           # bf16
    whh = [layer_refs[4 * l + 1][...] for l in range(num_layers)]       # bf16 (H, 3Hp)
    bih = [layer_refs[4 * l + 2][...] for l in range(num_layers)]       # f32  (1, 3Hp)
    # hoist the bhn broadcast out of the unrolled loops (no CSE of broadcasts)
    bhn = [jnp.broadcast_to(layer_refs[4 * l + 3][...], (Bp, Hp))
           for l in range(num_layers)]

    # ---- layer-0 input projection for ALL timesteps: one big MXU matmul ---
    # (r/z hidden biases are pre-folded into bih; the n-gate hidden bias bhn
    #  must stay inside the r * (...) product.)
    gi0_ref[...] = (
        jnp.dot(x_ref[...], wih[0], preferred_element_type=jnp.float32) + bih[0]
    )

    # Hidden state per layer (f32). Padded lanes [H:Hp] provably stay 0
    # (padded gi/gh/bhn lanes are 0 -> z=0.5, n=0 -> h_pad stays 0).
    h = [jnp.zeros((Bp, Hp), jnp.float32) for _ in range(num_layers)]
    # Output of layer l at its current wavefront timestep (bf16, width H).
    prev_out = [None] * num_layers

    def gru_cell(l, gi):
        # gh: contract only H rows (K un-padded), bf16 operands, f32 accumulate.
        gh = jnp.dot(h[l][:, :H].astype(jnp.bfloat16), whh[l],
                     preferred_element_type=jnp.float32)
        r = jax.nn.sigmoid(gi[:, 0:Hp] + gh[:, 0:Hp])
        z = jax.nn.sigmoid(gi[:, Hp:2 * Hp] + gh[:, Hp:2 * Hp])
        n = jnp.tanh(gi[:, 2 * Hp:3 * Hp] + r * (gh[:, 2 * Hp:3 * Hp] + bhn[l]))
        h[l] = (1.0 - z) * n + z * h[l]

    # ---- wavefront over (layer, timestep) ----------------------------------
    # Global step s computes layer l at timestep t = s - l.  Layer l needs
    # layer l-1's output at the SAME timestep, which was produced at global
    # step s-1 and committed into prev_out at the end of that step, so all
    # cells within one step are independent and their chains interleave.
    # T is static & small here -> fully unrolled Python loop.
    for s in range(T + num_layers - 1):
        new_out = [None] * num_layers
        for l in range(num_layers):
            t = s - l
            if not (0 <= t < T):
                continue
            if l == 0:
                row = t * Bp                                  # static, 8-aligned
                gi = gi0_ref[row:row + Bp, :]                 # (Bp, 3Hp) f32
            else:
                gi = (jnp.dot(prev_out[l - 1], wih[l],
                              preferred_element_type=jnp.float32) + bih[l])
            gru_cell(l, gi)
            if l < num_layers - 1:
                new_out[l] = h[l][:, :H].astype(jnp.bfloat16)
        # commit this step's outputs for the NEXT wavefront step
        for l in range(num_layers - 1):
            if new_out[l] is not None:
                prev_out[l] = new_out[l]

    # ---- Linear(H -> 1) on the last hidden state: VPU mul + lane reduce ----
    h_last = h[num_layers - 1]
    out = jnp.sum(h_last * fc_w_ref[...], axis=-1, keepdims=True) + fc_b_ref[...]
    out_ref[...] = out.astype(out_ref.dtype)


# ----------------------------------------------------------------------------
# Wrapper
# ----------------------------------------------------------------------------
@jax.jit
def gru_forward(x, kparams):
    """x: (B, T, input_size), batch_first -> (B, 1). Matches the PyTorch module."""
    B, T, F = x.shape
    num_layers = len(kparams["layers"])
    H = kparams["layers"][0]["whh"].shape[0]
    Hp = kparams["layers"][0]["whh"].shape[1] // 3
    Bp = ((B + 7) // 8) * 8                    # pad batch to full sublane tiles

    x_t = jnp.transpose(x, (1, 0, 2))          # (T, B, F) time-major
    x_t = jnp.pad(x_t, ((0, 0), (0, Bp - B), (0, 0)))
    x2d = x_t.reshape(T * Bp, F).astype(jnp.bfloat16)   # bf16 MXU operand

    inputs = [x2d]
    for lp in kparams["layers"]:
        inputs += [lp["wih"], lp["whh"], lp["bih"], lp["bhn"]]
    inputs += [kparams["fc_w"], kparams["fc_b"]]

    out = pl.pallas_call(
        functools.partial(_fused_gru_fc_kernel, T, Bp, H, Hp, num_layers),
        out_shape=jax.ShapeDtypeStruct((Bp, 1), jnp.float32),
        in_specs=[pl.BlockSpec(memory_space=pltpu.MemorySpace.VMEM)] * len(inputs),
        out_specs=pl.BlockSpec(memory_space=pltpu.MemorySpace.VMEM),
        scratch_shapes=[
            pltpu.VMEM((T * Bp, 3 * Hp), jnp.float32),     # layer-0 gi, all timesteps
        ],
        compiler_params=pltpu.CompilerParams(
            # tiny problem -> far below the cap; tune per generation when scaling
            vmem_limit_bytes=32 * 1024 * 1024,
        ),
    )(*inputs)
    return out[:B]


# ----------------------------------------------------------------------------
# Parameters
# ----------------------------------------------------------------------------
def init_params(key, input_size, hidden_size, num_layers):
    """Raw params mirroring nn.GRU / nn.Linear (weights stored transposed:
    w_ih (F_in, 3H), w_hh (H, 3H); gate order r, z, n)."""
    params = {"layers": []}
    k = 1.0 / jnp.sqrt(hidden_size)
    for layer in range(num_layers):
        in_f = input_size if layer == 0 else hidden_size
        key, k1, k2, k3, k4 = jax.random.split(key, 5)
        params["layers"].append(
            dict(
                w_ih=jax.random.uniform(k1, (in_f, 3 * hidden_size), jnp.float32, -k, k),
                w_hh=jax.random.uniform(k2, (hidden_size, 3 * hidden_size), jnp.float32, -k, k),
                b_ih=jax.random.uniform(k3, (3 * hidden_size,), jnp.float32, -k, k),
                b_hh=jax.random.uniform(k4, (3 * hidden_size,), jnp.float32, -k, k),
            )
        )
    key, kw, kb = jax.random.split(key, 3)
    params["fc_w"] = 0.01 * jax.random.normal(kw, (hidden_size, 1), jnp.float32)
    params["fc_b"] = jax.random.uniform(kb, (1,), jnp.float32, -k, k)
    return params


def _pad_gates(w, H, Hp):
    """(..., 3H) -> (..., 3Hp): each gate zero-padded independently to Hp lanes."""
    pad = [(0, 0)] * (w.ndim - 1) + [(0, Hp - H)]
    return jnp.concatenate(
        [jnp.pad(w[..., g * H:(g + 1) * H], pad) for g in range(3)], axis=-1
    )


def prepare_kernel_params(params, hidden_size):
    """Pad each GATE (output/lane dim) to 128 lanes, leave the contraction dim
    un-padded, store matmul weights in bf16, and fold the r/z hidden biases
    into the (precomputed / per-step) input-projection bias."""
    H = hidden_size
    Hp = ((H + 127) // 128) * 128
    layers = []
    for lp in params["layers"]:
        b_ih, b_hh = lp["b_ih"], lp["b_hh"]
        b_fold = b_ih + jnp.concatenate([b_hh[:2 * H], jnp.zeros((H,), b_hh.dtype)])
        layers.append(
            dict(
                wih=_pad_gates(lp["w_ih"], H, Hp).astype(jnp.bfloat16),   # (in_f, 3Hp)
                whh=_pad_gates(lp["w_hh"], H, Hp).astype(jnp.bfloat16),   # (H, 3Hp)
                bih=_pad_gates(b_fold, H, Hp)[None, :],                   # (1, 3Hp) f32
                bhn=jnp.pad(b_hh[2 * H:], (0, Hp - H))[None, :],          # (1, Hp)  f32
            )
        )
    fc_w = jnp.pad(params["fc_w"][:, 0], (0, Hp - H))[None, :]            # (1, Hp)
    fc_b = params["fc_b"].reshape(1, 1)
    return dict(layers=layers, fc_w=fc_w, fc_b=fc_b)


# ----------------------------------------------------------------------------
# Pure-JAX reference (sanity check only; full f32)
# ----------------------------------------------------------------------------
def gru_forward_ref(x, params):
    h_seq = jnp.transpose(x, (1, 0, 2))
    for lp in params["layers"]:
        B = h_seq.shape[1]
        H = lp["w_hh"].shape[0]

        def step(h, x_t, lp=lp, H=H):
            gi = x_t @ lp["w_ih"] + lp["b_ih"]
            gh = h @ lp["w_hh"] + lp["b_hh"]
            r = jax.nn.sigmoid(gi[:, :H] + gh[:, :H])
            z = jax.nn.sigmoid(gi[:, H:2 * H] + gh[:, H:2 * H])
            n = jnp.tanh(gi[:, 2 * H:] + r * gh[:, 2 * H:])
            h_new = (1.0 - z) * n + z * h
            return h_new, h_new

        _, h_seq = lax.scan(step, jnp.zeros((B, H), jnp.float32), h_seq)
    return h_seq[-1] @ params["fc_w"] + params["fc_b"]


# ----------------------------------------------------------------------------
if __name__ == "__main__":
    input_size, hidden_size, num_layers, num_classes = 16, 32, 2, 1
    B, T = 2, 8

    key = jax.random.PRNGKey(0)
    kx, kp = jax.random.split(key)
    x = jax.random.normal(kx, (B, T, input_size), jnp.float32)
    params = init_params(kp, input_size, hidden_size, num_layers)
    kparams = prepare_kernel_params(params, hidden_size)

    out = gru_forward(x, kparams)
    out = jax.block_until_ready(out)
    assert out.shape == (B, 1)

    ref = gru_forward_ref(x, params)
    # bf16 matmul operands (f32 accumulate / f32 state update) -> relaxed tol.
    assert jnp.allclose(out, ref, atol=2e-2, rtol=2e-2), (out, ref)

    print("KERNEL_OK")
</pallas_src>

<mosaic_0001>
module attributes {stable_mosaic.version = 11 : i64} {
  func.func @_fused_gru_fc_kernel(%arg0: memref<64x16xbf16, #tpu.memory_space<vmem>>, %arg1: memref<16x384xbf16, #tpu.memory_space<vmem>>, %arg2: memref<32x384xbf16, #tpu.memory_space<vmem>>, %arg3: memref<1x384xf32, #tpu.memory_space<vmem>>, %arg4: memref<1x128xf32, #tpu.memory_space<vmem>>, %arg5: memref<32x384xbf16, #tpu.memory_space<vmem>>, %arg6: memref<32x384xbf16, #tpu.memory_space<vmem>>, %arg7: memref<1x384xf32, #tpu.memory_space<vmem>>, %arg8: memref<1x128xf32, #tpu.memory_space<vmem>>, %arg9: memref<1x128xf32, #tpu.memory_space<vmem>>, %arg10: memref<1x1xf32, #tpu.memory_space<vmem>>, %arg11: memref<8x1xf32, #tpu.memory_space<vmem>>, %arg12: memref<64x384xf32, #tpu.memory_space<vmem>>) attributes {dimension_semantics = [], scalar_prefetch = 0 : i64, scratch_operands = 1 : i64, tpu.core_type = #tpu.core_type<tc>} {
    %c0 = arith.constant 0 : index
    %c0_0 = arith.constant 0 : index
    %0 = vector.load %arg1[%c0, %c0_0] : memref<16x384xbf16, #tpu.memory_space<vmem>>, vector<16x384xbf16>
    %c0_1 = arith.constant 0 : index
    %c0_2 = arith.constant 0 : index
    %1 = vector.load %arg5[%c0_1, %c0_2] : memref<32x384xbf16, #tpu.memory_space<vmem>>, vector<32x384xbf16>
    %c0_3 = arith.constant 0 : index
    %c0_4 = arith.constant 0 : index
    %2 = vector.load %arg2[%c0_3, %c0_4] : memref<32x384xbf16, #tpu.memory_space<vmem>>, vector<32x384xbf16>
    %c0_5 = arith.constant 0 : index
    %c0_6 = arith.constant 0 : index
    %3 = vector.load %arg6[%c0_5, %c0_6] : memref<32x384xbf16, #tpu.memory_space<vmem>>, vector<32x384xbf16>
    %c0_7 = arith.constant 0 : index
    %c0_8 = arith.constant 0 : index
    %4 = vector.load %arg3[%c0_7, %c0_8] : memref<1x384xf32, #tpu.memory_space<vmem>>, vector<1x384xf32>
    %c0_9 = arith.constant 0 : index
    %c0_10 = arith.constant 0 : index
    %5 = vector.load %arg7[%c0_9, %c0_10] : memref<1x384xf32, #tpu.memory_space<vmem>>, vector<1x384xf32>
    %c0_11 = arith.constant 0 : index
    %c0_12 = arith.constant 0 : index
    %6 = vector.load %arg4[%c0_11, %c0_12] : memref<1x128xf32, #tpu.memory_space<vmem>>, vector<1x128xf32>
    %7 = vector.shape_cast %6 : vector<1x128xf32> to vector<1x128xf32>
    %8 = vector.broadcast %7 : vector<1x128xf32> to vector<8x128xf32>
    %c0_13 = arith.constant 0 : index
    %c0_14 = arith.constant 0 : index
    %9 = vector.load %arg8[%c0_13, %c0_14] : memref<1x128xf32, #tpu.memory_space<vmem>>, vector<1x128xf32>
    %10 = vector.shape_cast %9 : vector<1x128xf32> to vector<1x128xf32>
    %11 = vector.broadcast %10 : vector<1x128xf32> to vector<8x128xf32>
    %c0_15 = arith.constant 0 : index
    %c0_16 = arith.constant 0 : index
    %12 = vector.load %arg0[%c0_15, %c0_16] : memref<64x16xbf16, #tpu.memory_space<vmem>>, vector<64x16xbf16>
    %cst = arith.constant dense<0.000000e+00> : vector<64x384xf32>
    %13 = tpu.matmul %12, %0, %cst {dimension_numbers = #tpu.dot_dimension_numbers<[1], [0], [0], [1], [0, 0, 1, 1], [], []>} : vector<64x16xbf16>, vector<16x384xbf16>, vector<64x384xf32> -> vector<64x384xf32>
    %14 = vector.broadcast %4 : vector<1x384xf32> to vector<64x384xf32>
    %15 = arith.addf %13, %14 : vector<64x384xf32>
    %c0_17 = arith.constant 0 : index
    %c0_18 = arith.constant 0 : index
    %16 = vector.load %arg12[%c0_17, %c0_18] : memref<64x384xf32, #tpu.memory_space<vmem>>, vector<64x384xf32>
    tpu.vector_store %arg12[%c0_17, %c0_18], %15 {strides = array<i32>} : memref<64x384xf32, #tpu.memory_space<vmem>>, vector<64x384xf32>,
    %cst_19 = arith.constant 0.000000e+00 : f32
    %17 = vector.broadcast %cst_19 : f32 to vector<8x128xf32>
    %cst_20 = arith.constant 0.000000e+00 : f32
    %18 = vector.broadcast %cst_20 : f32 to vector<8x128xf32>
    %c0_21 = arith.constant 0 : index
    %c0_22 = arith.constant 0 : index
    %19 = vector.load %arg12[%c0_21, %c0_22] : memref<64x384xf32, #tpu.memory_space<vmem>>, vector<8x384xf32>
    %20 = vector.extract_strided_slice %17 {offsets = [0, 0], sizes = [8, 32], strides = [1, 1]} : vector<8x128xf32> to vector<8x32xf32>
    %21 = arith.truncf %20 : vector<8x32xf32> to vector<8x32xbf16>
    %cst_23 = arith.constant dense<0.000000e+00> : vector<8x384xf32>
    %22 = tpu.matmul %21, %2, %cst_23 {dimension_numbers = #tpu.dot_dimension_numbers<[1], [0], [0], [1], [0, 0, 1, 1], [], []>} : vector<8x32xbf16>, vector<32x384xbf16>, vector<8x384xf32> -> vector<8x384xf32>
    %23 = vector.extract_strided_slice %19 {offsets = [0, 0], sizes = [8, 128], strides = [1, 1]} : vector<8x384xf32> to vector<8x128xf32>
    %24 = vector.extract_strided_slice %22 {offsets = [0, 0], sizes = [8, 128], strides = [1, 1]} : vector<8x384xf32> to vector<8x128xf32>
    %25 = arith.addf %23, %24 : vector<8x128xf32>
    %26 = arith.negf %25 : vector<8x128xf32>
    %27 = math.exp %26 : vector<8x128xf32>
    %cst_24 = arith.constant 1.000000e+00 : f32
    %28 = vector.broadcast %cst_24 : f32 to vector<8x128xf32>
    %29 = arith.addf %28, %27 : vector<8x128xf32>
    %30 = arith.divf %28, %29 : vector<8x128xf32>
    %31 = vector.extract_strided_slice %19 {offsets = [0, 128], sizes = [8, 128], strides = [1, 1]} : vector<8x384xf32> to vector<8x128xf32>
    %32 = vector.extract_strided_slice %22 {offsets = [0, 128], sizes = [8, 128], strides = [1, 1]} : vector<8x384xf32> to vector<8x128xf32>
    %33 = arith.addf %31, %32 : vector<8x128xf32>
    %34 = arith.negf %33 : vector<8x128xf32>
    %35 = math.exp %34 : vector<8x128xf32>
    %cst_25 = arith.constant 1.000000e+00 : f32
    %36 = vector.broadcast %cst_25 : f32 to vector<8x128xf32>
    %37 = arith.addf %36, %35 : vector<8x128xf32>
    %38 = arith.divf %36, %37 : vector<8x128xf32>
    %39 = vector.extract_strided_slice %19 {offsets = [0, 256], sizes = [8, 128], strides = [1, 1]} : vector<8x384xf32> to vector<8x128xf32>
    %40 = vector.extract_strided_slice %22 {offsets = [0, 256], sizes = [8, 128], strides = [1, 1]} : vector<8x384xf32> to vector<8x128xf32>
    %41 = arith.addf %40, %8 : vector<8x128xf32>
    %42 = arith.mulf %30, %41 : vector<8x128xf32>
    %43 = arith.addf %39, %42 : vector<8x128xf32>
    %44 = math.tanh %43 : vector<8x128xf32>
    %cst_26 = arith.constant 1.000000e+00 : f32
    %45 = vector.broadcast %cst_26 : f32 to vector<8x128xf32>
    %46 = arith.subf %45, %38 : vector<8x128xf32>
    %47 = arith.mulf %46, %44 : vector<8x128xf32>
    %48 = arith.mulf %38, %17 : vector<8x128xf32>
    %49 = arith.addf %47, %48 : vector<8x128xf32>
    %50 = vector.extract_strided_slice %49 {offsets = [0, 0], sizes = [8, 32], strides = [1, 1]} : vector<8x128xf32> to vector<8x32xf32>
    %51 = arith.truncf %50 : vector<8x32xf32> to vector<8x32xbf16>
    %c8 = arith.constant 8 : index
    %c0_27 = arith.constant 0 : index
    %52 = vector.load %arg12[%c8, %c0_27] : memref<64x384xf32, #tpu.memory_space<vmem>>, vector<8x384xf32>
    %53 = vector.extract_strided_slice %49 {offsets = [0, 0], sizes = [8, 32], strides = [1, 1]} : vector<8x128xf32> to vector<8x32xf32>
    %54 = arith.truncf %53 : vector<8x32xf32> to vector<8x32xbf16>
    %cst_28 = arith.constant dense<0.000000e+00> : vector<8x384xf32>
    %55 = tpu.matmul %54, %2, %cst_28 {dimension_numbers = #tpu.dot_dimension_numbers<[1], [0], [0], [1], [0, 0, 1, 1], [], []>} : vector<8x32xbf16>, vector<32x384xbf16>, vector<8x384xf32> -> vector<8x384xf32>
    %56 = vector.extract_strided_slice %52 {offsets = [0, 0], sizes = [8, 128], strides = [1, 1]} : vector<8x384xf32> to vector<8x128xf32>
    %57 = vector.extract_strided_slice %55 {offsets = [0, 0], sizes = [8, 128], strides = [1, 1]} : vector<8x384xf32> to vector<8x128xf32>
    %58 = arith.addf %56, %57 : vector<8x128xf32>
    %59 = arith.negf %58 : vector<8x128xf32>
    %60 = math.exp %59 : vector<8x128xf32>
    %cst_29 = arith.constant 1.000000e+00 : f32
    %61 = vector.broadcast %cst_29 : f32 to vector<8x128xf32>
    %62 = arith.addf %61, %60 : vector<8x128xf32>
    %63 = arith.divf %61, %62 : vector<8x128xf32>
    %64 = vector.extract_strided_slice %52 {offsets = [0, 128], sizes = [8, 128], strides = [1, 1]} : vector<8x384xf32> to vector<8x128xf32>
    %65 = vector.extract_strided_slice %55 {offsets = [0, 128], sizes = [8, 128], strides = [1, 1]} : vector<8x384xf32> to vector<8x128xf32>
    %66 = arith.addf %64, %65 : vector<8x128xf32>
    %67 = arith.negf %66 : vector<8x128xf32>
    %68 = math.exp %67 : vector<8x128xf32>
    %cst_30 = arith.constant 1.000000e+00 : f32
    %69 = vector.broadcast %cst_30 : f32 to vector<8x128xf32>
    %70 = arith.addf %69, %68 : vector<8x128xf32>
    %71 = arith.divf %69, %70 : vector<8x128xf32>
    %72 = vector.extract_strided_slice %52 {offsets = [0, 256], sizes = [8, 128], strides = [1, 1]} : vector<8x384xf32> to vector<8x128xf32>
    %73 = vector.extract_strided_slice %55 {offsets = [0, 256], sizes = [8, 128], strides = [1, 1]} : vector<8x384xf32> to vector<8x128xf32>
    %74 = arith.addf %73, %8 : vector<8x128xf32>
    %75 = arith.mulf %63, %74 : vector<8x128xf32>
    %76 = arith.addf %72, %75 : vector<8x128xf32>
    %77 = math.tanh %76 : vector<8x128xf32>
    %cst_31 = arith.constant 1.000000e+00 : f32
    %78 = vector.broadcast %cst_31 : f32 to vector<8x128xf32>
    %79 = arith.subf %78, %71 : vector<8x128xf32>
    %80 = arith.mulf %79, %77 : vector<8x128xf32>
    %81 = arith.mulf %71, %49 : vector<8x128xf32>
    %82 = arith.addf %80, %81 : vector<8x128xf32>
    %83 = vector.extract_strided_slice %82 {offsets = [0, 0], sizes = [8, 32], strides = [1, 1]} : vector<8x128xf32> to vector<8x32xf32>
    %84 = arith.truncf %83 : vector<8x32xf32> to vector<8x32xbf16>
    %cst_32 = arith.constant dense<0.000000e+00> : vector<8x384xf32>
    %85 = tpu.matmul %51, %1, %cst_32 {dimension_numbers = #tpu.dot_dimension_numbers<[1], [0], [0], [1], [0, 0, 1, 1], [], []>} : vector<8x32xbf16>, vector<32x384xbf16>, vector<8x384xf32> -> vector<8x384xf32>
    %86 = vector.broadcast %5 : vector<1x384xf32> to vector<8x384xf32>
    %87 = arith.addf %85, %86 : vector<8x384xf32>
    %88 = vector.extract_strided_slice %18 {offsets = [0, 0], sizes = [8, 32], strides = [1, 1]} : vector<8x128xf32> to vector<8x32xf32>
    %89 = arith.truncf %88 : vector<8x32xf32> to vector<8x32xbf16>
    %cst_33 = arith.constant dense<0.000000e+00> : vector<8x384xf32>
    %90 = tpu.matmul %89, %3, %cst_33 {dimension_numbers = #tpu.dot_dimension_numbers<[1], [0], [0], [1], [0, 0, 1, 1], [], []>} : vector<8x32xbf16>, vector<32x384xbf16>, vector<8x384xf32> -> vector<8x384xf32>
    %91 = vector.extract_strided_slice %87 {offsets = [0, 0], sizes = [8, 128], strides = [1, 1]} : vector<8x384xf32> to vector<8x128xf32>
    %92 = vector.extract_strided_slice %90 {offsets = [0, 0], sizes = [8, 128], strides = [1, 1]} : vector<8x384xf32> to vector<8x128xf32>
    %93 = arith.addf %91, %92 : vector<8x128xf32>
    %94 = arith.negf %93 : vector<8x128xf32>
    %95 = math.exp %94 : vector<8x128xf32>
    %cst_34 = arith.constant 1.000000e+00 : f32
    %96 = vector.broadcast %cst_34 : f32 to vector<8x128xf32>
    %97 = arith.addf %96, %95 : vector<8x128xf32>
    %98 = arith.divf %96, %97 : vector<8x128xf32>
    %99 = vector.extract_strided_slice %87 {offsets = [0, 128], sizes = [8, 128], strides = [1, 1]} : vector<8x384xf32> to vector<8x128xf32>
    %100 = vector.extract_strided_slice %90 {offsets = [0, 128], sizes = [8, 128], strides = [1, 1]} : vector<8x384xf32> to vector<8x128xf32>
    %101 = arith.addf %99, %100 : vector<8x128xf32>
    %102 = arith.negf %101 : vector<8x128xf32>
    %103 = math.exp %102 : vector<8x128xf32>
    %cst_35 = arith.constant 1.000000e+00 : f32
    %104 = vector.broadcast %cst_35 : f32 to vector<8x128xf32>
    %105 = arith.addf %104, %103 : vector<8x128xf32>
    %106 = arith.divf %104, %105 : vector<8x128xf32>
    %107 = vector.extract_strided_slice %87 {offsets = [0, 256], sizes = [8, 128], strides = [1, 1]} : vector<8x384xf32> to vector<8x128xf32>
    %108 = vector.extract_strided_slice %90 {offsets = [0, 256], sizes = [8, 128], strides = [1, 1]} : vector<8x384xf32> to vector<8x128xf32>
    %109 = arith.addf %108, %11 : vector<8x128xf32>
    %110 = arith.mulf %98, %109 : vector<8x128xf32>
    %111 = arith.addf %107, %110 : vector<8x128xf32>
    %112 = math.tanh %111 : vector<8x128xf32>
    %cst_36 = arith.constant 1.000000e+00 : f32
    %113 = vector.broadcast %cst_36 : f32 to vector<8x128xf32>
    %114 = arith.subf %113, %106 : vector<8x128xf32>
    %115 = arith.mulf %114, %112 : vector<8x128xf32>
    %116 = arith.mulf %106, %18 : vector<8x128xf32>
    %117 = arith.addf %115, %116 : vector<8x128xf32>
    %c16 = arith.constant 16 : index
    %c0_37 = arith.constant 0 : index
    %118 = vector.load %arg12[%c16, %c0_37] : memref<64x384xf32, #tpu.memory_space<vmem>>, vector<8x384xf32>
    %119 = vector.extract_strided_slice %82 {offsets = [0, 0], sizes = [8, 32], strides = [1, 1]} : vector<8x128xf32> to vector<8x32xf32>
    %120 = arith.truncf %119 : vector<8x32xf32> to vector<8x32xbf16>
    %cst_38 = arith.constant dense<0.000000e+00> : vector<8x384xf32>
    %121 = tpu.matmul %120, %2, %cst_38 {dimension_numbers = #tpu.dot_dimension_numbers<[1], [0], [0], [1], [0, 0, 1, 1], [], []>} : vector<8x32xbf16>, vector<32x384xbf16>, vector<8x384xf32> -> vector<8x384xf32>
    %122 = vector.extract_strided_slice %118 {offsets = [0, 0], sizes = [8, 128], strides = [1, 1]} : vector<8x384xf32> to vector<8x128xf32>
    %123 = vector.extract_strided_slice %121 {offsets = [0, 0], sizes = [8, 128], strides = [1, 1]} : vector<8x384xf32> to vector<8x128xf32>
    %124 = arith.addf %122, %123 : vector<8x128xf32>
    %125 = arith.negf %124 : vector<8x128xf32>
    %126 = math.exp %125 : vector<8x128xf32>
    %cst_39 = arith.constant 1.000000e+00 : f32
    %127 = vector.broadcast %cst_39 : f32 to vector<8x128xf32>
    %128 = arith.addf %127, %126 : vector<8x128xf32>
    %129 = arith.divf %127, %128 : vector<8x128xf32>
    %130 = vector.extract_strided_slice %118 {offsets = [0, 128], sizes = [8, 128], strides = [1, 1]} : vector<8x384xf32> to vector<8x128xf32>
    %131 = vector.extract_strided_slice %121 {offsets = [0, 128], sizes = [8, 128], strides = [1, 1]} : vector<8x384xf32> to vector<8x128xf32>
    %132 = arith.addf %130, %131 : vector<8x128xf32>
    %133 = arith.negf %132 : vector<8x128xf32>
    %134 = math.exp %133 : vector<8x128xf32>
    %cst_40 = arith.constant 1.000000e+00 : f32
    %135 = vector.broadcast %cst_40 : f32 to vector<8x128xf32>
    %136 = arith.addf %135, %134 : vector<8x128xf32>
    %137 = arith.divf %135, %136 : vector<8x128xf32>
    %138 = vector.extract_strided_slice %118 {offsets = [0, 256], sizes = [8, 128], strides = [1, 1]} : vector<8x384xf32> to vector<8x128xf32>
    %139 = vector.extract_strided_slice %121 {offsets = [0, 256], sizes = [8, 128], strides = [1, 1]} : vector<8x384xf32> to vector<8x128xf32>
    %140 = arith.addf %139, %8 : vector<8x128xf32>
    %141 = arith.mulf %129, %140 : vector<8x128xf32>
    %142 = arith.addf %138, %141 : vector<8x128xf32>
    %143 = math.tanh %142 : vector<8x128xf32>
    %cst_41 = arith.constant 1.000000e+00 : f32
    %144 = vector.broadcast %cst_41 : f32 to vector<8x128xf32>
    %145 = arith.subf %144, %137 : vector<8x128xf32>
    %146 = arith.mulf %145, %143 : vector<8x128xf32>
    %147 = arith.mulf %137, %82 : vector<8x128xf32>
    %148 = arith.addf %146, %147 : vector<8x128xf32>
    %149 = vector.extract_strided_slice %148 {offsets = [0, 0], sizes = [8, 32], strides = [1, 1]} : vector<8x128xf32> to vector<8x32xf32>
    %150 = arith.truncf %149 : vector<8x32xf32> to vector<8x32xbf16>
    %cst_42 = arith.constant dense<0.000000e+00> : vector<8x384xf32>
    %151 = tpu.matmul %84, %1, %cst_42 {dimension_numbers = #tpu.dot_dimension_numbers<[1], [0], [0], [1], [0, 0, 1, 1], [], []>} : vector<8x32xbf16>, vector<32x384xbf16>, vector<8x384xf32> -> vector<8x384xf32>
    %152 = vector.broadcast %5 : vector<1x384xf32> to vector<8x384xf32>
    %153 = arith.addf %151, %152 : vector<8x384xf32>
    %154 = vector.extract_strided_slice %117 {offsets = [0, 0], sizes = [8, 32], strides = [1, 1]} : vector<8x128xf32> to vector<8x32xf32>
    %155 = arith.truncf %154 : vector<8x32xf32> to vector<8x32xbf16>
    %cst_43 = arith.constant dense<0.000000e+00> : vector<8x384xf32>
    %156 = tpu.matmul %155, %3, %cst_43 {dimension_numbers = #tpu.dot_dimension_numbers<[1], [0], [0], [1], [0, 0, 1, 1], [], []>} : vector<8x32xbf16>, vector<32x384xbf16>, vector<8x384xf32> -> vector<8x384xf32>
    %157 = vector.extract_strided_slice %153 {offsets = [0, 0], sizes = [8, 128], strides = [1, 1]} : vector<8x384xf32> to vector<8x128xf32>
    %158 = vector.extract_strided_slice %156 {offsets = [0, 0], sizes = [8, 128], strides = [1, 1]} : vector<8x384xf32> to vector<8x128xf32>
    %159 = arith.addf %157, %158 : vector<8x128xf32>
    %160 = arith.negf %159 : vector<8x128xf32>
    %161 = math.exp %160 : vector<8x128xf32>
    %cst_44 = arith.constant 1.000000e+00 : f32
    %162 = vector.broadcast %cst_44 : f32 to vector<8x128xf32>
    %163 = arith.addf %162, %161 : vector<8x128xf32>
    %164 = arith.divf %162, %163 : vector<8x128xf32>
    %165 = vector.extract_strided_slice %153 {offsets = [0, 128], sizes = [8, 128], strides = [1, 1]} : vector<8x384xf32> to vector<8x128xf32>
    %166 = vector.extract_strided_slice %156 {offsets = [0, 128], sizes = [8, 128], strides = [1, 1]} : vector<8x384xf32> to vector<8x128xf32>
    %167 = arith.addf %165, %166 : vector<8x128xf32>
    %168 = arith.negf %167 : vector<8x128xf32>
    %169 = math.exp %168 : vector<8x128xf32>
    %cst_45 = arith.constant 1.000000e+00 : f32
    %170 = vector.broadcast %cst_45 : f32 to vector<8x128xf32>
    %171 = arith.addf %170, %169 : vector<8x128xf32>
    %172 = arith.divf %170, %171 : vector<8x128xf32>
    %173 = vector.extract_strided_slice %153 {offsets = [0, 256], sizes = [8, 128], strides = [1, 1]} : vector<8x384xf32> to vector<8x128xf32>
    %174 = vector.extract_strided_slice %156 {offsets = [0, 256], sizes = [8, 128], strides = [1, 1]} : vector<8x384xf32> to vector<8x128xf32>
    %175 = arith.addf %174, %11 : vector<8x128xf32>
    %176 = arith.mulf %164, %175 : vector<8x128xf32>
    %177 = arith.addf %173, %176 : vector<8x128xf32>
    %178 = math.tanh %177 : vector<8x128xf32>
    %cst_46 = arith.constant 1.000000e+00 : f32
    %179 = vector.broadcast %cst_46 : f32 to vector<8x128xf32>
    %180 = arith.subf %179, %172 : vector<8x128xf32>
    %181 = arith.mulf %180, %178 : vector<8x128xf32>
    %182 = arith.mulf %172, %117 : vector<8x128xf32>
    %183 = arith.addf %181, %182 : vector<8x128xf32>
    %c24 = arith.constant 24 : index
    %c0_47 = arith.constant 0 : index
    %184 = vector.load %arg12[%c24, %c0_47] : memref<64x384xf32, #tpu.memory_space<vmem>>, vector<8x384xf32>
    %185 = vector.extract_strided_slice %148 {offsets = [0, 0], sizes = [8, 32], strides = [1, 1]} : vector<8x128xf32> to vector<8x32xf32>
    %186 = arith.truncf %185 : vector<8x32xf32> to vector<8x32xbf16>
    %cst_48 = arith.constant dense<0.000000e+00> : vector<8x384xf32>
    %187 = tpu.matmul %186, %2, %cst_48 {dimension_numbers = #tpu.dot_dimension_numbers<[1], [0], [0], [1], [0, 0, 1, 1], [], []>} : vector<8x32xbf16>, vector<32x384xbf16>, vector<8x384xf32> -> vector<8x384xf32>
    %188 = vector.extract_strided_slice %184 {offsets = [0, 0], sizes = [8, 128], strides = [1, 1]} : vector<8x384xf32> to vector<8x128xf32>
    %189 = vector.extract_strided_slice %187 {offsets = [0, 0], sizes = [8, 128], strides = [1, 1]} : vector<8x384xf32> to vector<8x128xf32>
    %190 = arith.addf %188, %189 : vector<8x128xf32>
    %191 = arith.negf %190 : vector<8x128xf32>
    %192 = math.exp %191 : vector<8x128xf32>
    %cst_49 = arith.constant 1.000000e+00 : f32
    %193 = vector.broadcast %cst_49 : f32 to vector<8x128xf32>
    %194 = arith.addf %193, %192 : vector<8x128xf32>
    %195 = arith.divf %193, %194 : vector<8x128xf32>
    %196 = vector.extract_strided_slice %184 {offsets = [0, 128], sizes = [8, 128], strides = [1, 1]} : vector<8x384xf32> to vector<8x128xf32>
    %197 = vector.extract_strided_slice %187 {offsets = [0, 128], sizes = [8, 128], strides = [1, 1]} : vector<8x384xf32> to vector<8x128xf32>
    %198 = arith.addf %196, %197 : vector<8x128xf32>
    %199 = arith.negf %198 : vector<8x128xf32>
    %200 = math.exp %199 : vector<8x128xf32>
    %cst_50 = arith.constant 1.000000e+00 : f32
    %201 = vector.broadcast %cst_50 : f32 to vector<8x128xf32>
    %202 = arith.addf %201, %200 : vector<8x128xf32>
    %203 = arith.divf %201, %202 : vector<8x128xf32>
    %204 = vector.extract_strided_slice %184 {offsets = [0, 256], sizes = [8, 128], strides = [1, 1]} : vector<8x384xf32> to vector<8x128xf32>
    %205 = vector.extract_strided_slice %187 {offsets = [0, 256], sizes = [8, 128], strides = [1, 1]} : vector<8x384xf32> to vector<8x128xf32>
    %206 = arith.addf %205, %8 : vector<8x128xf32>
    %207 = arith.mulf %195, %206 : vector<8x128xf32>
    %208 = arith.addf %204, %207 : vector<8x128xf32>
    %209 = math.tanh %208 : vector<8x128xf32>
    %cst_51 = arith.constant 1.000000e+00 : f32
    %210 = vector.broadcast %cst_51 : f32 to vector<8x128xf32>
    %211 = arith.subf %210, %203 : vector<8x128xf32>
    %212 = arith.mulf %211, %209 : vector<8x128xf32>
    %213 = arith.mulf %203, %148 : vector<8x128xf32>
    %214 = arith.addf %212, %213 : vector<8x128xf32>
    %215 = vector.extract_strided_slice %214 {offsets = [0, 0], sizes = [8, 32], strides = [1, 1]} : vector<8x128xf32> to vector<8x32xf32>
    %216 = arith.truncf %215 : vector<8x32xf32> to vector<8x32xbf16>
    %cst_52 = arith.constant dense<0.000000e+00> : vector<8x384xf32>
    %217 = tpu.matmul %150, %1, %cst_52 {dimension_numbers = #tpu.dot_dimension_numbers<[1], [0], [0], [1], [0, 0, 1, 1], [], []>} : vector<8x32xbf16>, vector<32x384xbf16>, vector<8x384xf32> -> vector<8x384xf32>
    %218 = vector.broadcast %5 : vector<1x384xf32> to vector<8x384xf32>
    %219 = arith.addf %217, %218 : vector<8x384xf32>
    %220 = vector.extract_strided_slice %183 {offsets = [0, 0], sizes = [8, 32], strides = [1, 1]} : vector<8x128xf32> to vector<8x32xf32>
    %221 = arith.truncf %220 : vector<8x32xf32> to vector<8x32xbf16>
    %cst_53 = arith.constant dense<0.000000e+00> : vector<8x384xf32>
    %222 = tpu.matmul %221, %3, %cst_53 {dimension_numbers = #tpu.dot_dimension_numbers<[1], [0], [0], [1], [0, 0, 1, 1], [], []>} : vector<8x32xbf16>, vector<32x384xbf16>, vector<8x384xf32> -> vector<8x384xf32>
    %223 = vector.extract_strided_slice %219 {offsets = [0, 0], sizes = [8, 128], strides = [1, 1]} : vector<8x384xf32> to vector<8x128xf32>
    %224 = vector.extract_strided_slice %222 {offsets = [0, 0], sizes = [8, 128], strides = [1, 1]} : vector<8x384xf32> to vector<8x128xf32>
    %225 = arith.addf %223, %224 : vector<8x128xf32>
    %226 = arith.negf %225 : vector<8x128xf32>
    %227 = math.exp %226 : vector<8x128xf32>
    %cst_54 = arith.constant 1.000000e+00 : f32
    %228 = vector.broadcast %cst_54 : f32 to vector<8x128xf32>
    %229 = arith.addf %228, %227 : vector<8x128xf32>
    %230 = arith.divf %228, %229 : vector<8x128xf32>
    %231 = vector.extract_strided_slice %219 {offsets = [0, 128], sizes = [8, 128], strides = [1, 1]} : vector<8x384xf32> to vector<8x128xf32>
    %232 = vector.extract_strided_slice %222 {offsets = [0, 128], sizes = [8, 128], strides = [1, 1]} : vector<8x384xf32> to vector<8x128xf32>
    %233 = arith.addf %231, %232 : vector<8x128xf32>
    %234 = arith.negf %233 : vector<8x128xf32>
    %235 = math.exp %234 : vector<8x128xf32>
    %cst_55 = arith.constant 1.000000e+00 : f32
    %236 = vector.broadcast %cst_55 : f32 to vector<8x128xf32>
    %237 = arith.addf %236, %235 : vector<8x128xf32>
    %238 = arith.divf %236, %237 : vector<8x128xf32>
    %239 = vector.extract_strided_slice %219 {offsets = [0, 256], sizes = [8, 128], strides = [1, 1]} : vector<8x384xf32> to vector<8x128xf32>
    %240 = vector.extract_strided_slice %222 {offsets = [0, 256], sizes = [8, 128], strides = [1, 1]} : vector<8x384xf32> to vector<8x128xf32>
    %241 = arith.addf %240, %11 : vector<8x128xf32>
    %242 = arith.mulf %230, %241 : vector<8x128xf32>
    %243 = arith.addf %239, %242 : vector<8x128xf32>
    %244 = math.tanh %243 : vector<8x128xf32>
    %cst_56 = arith.constant 1.000000e+00 : f32
    %245 = vector.broadcast %cst_56 : f32 to vector<8x128xf32>
    %246 = arith.subf %245, %238 : vector<8x128xf32>
    %247 = arith.mulf %246, %244 : vector<8x128xf32>
    %248 = arith.mulf %238, %183 : vector<8x128xf32>
    %249 = arith.addf %247, %248 : vector<8x128xf32>
    %c32 = arith.constant 32 : index
    %c0_57 = arith.constant 0 : index
    %250 = vector.load %arg12[%c32, %c0_57] : memref<64x384xf32, #tpu.memory_space<vmem>>, vector<8x384xf32>
    %251 = vector.extract_strided_slice %214 {offsets = [0, 0], sizes = [8, 32], strides = [1, 1]} : vector<8x128xf32> to vector<8x32xf32>
    %252 = arith.truncf %251 : vector<8x32xf32> to vector<8x32xbf16>
    %cst_58 = arith.constant dense<0.000000e+00> : vector<8x384xf32>
    %253 = tpu.matmul %252, %2, %cst_58 {dimension_numbers = #tpu.dot_dimension_numbers<[1], [0], [0], [1], [0, 0, 1, 1], [], []>} : vector<8x32xbf16>, vector<32x384xbf16>, vector<8x384xf32> -> vector<8x384xf32>
    %254 = vector.extract_strided_slice %250 {offsets = [0, 0], sizes = [8, 128], strides = [1, 1]} : vector<8x384xf32> to vector<8x128xf32>
    %255 = vector.extract_strided_slice %253 {offsets = [0, 0], sizes = [8, 128], strides = [1, 1]} : vector<8x384xf32> to vector<8x128xf32>
    %256 = arith.addf %254, %255 : vector<8x128xf32>
    %257 = arith.negf %256 : vector<8x128xf32>
    %258 = math.exp %257 : vector<8x128xf32>
    %cst_59 = arith.constant 1.000000e+00 : f32
    %259 = vector.broadcast %cst_59 : f32 to vector<8x128xf32>
    %260 = arith.addf %259, %258 : vector<8x128xf32>
    %261 = arith.divf %259, %260 : vector<8x128xf32>
    %262 = vector.extract_strided_slice %250 {offsets = [0, 128], sizes = [8, 128], strides = [1, 1]} : vector<8x384xf32> to vector<8x128xf32>
    %263 = vector.extract_strided_slice %253 {offsets = [0, 128], sizes = [8, 128], strides = [1, 1]} : vector<8x384xf32> to vector<8x128xf32>
    %264 = arith.addf %262, %263 : vector<8x128xf32>
    %265 = arith.negf %264 : vector<8x128xf32>
    %266 = math.exp %265 : vector<8x128xf32>
    %cst_60 = arith.constant 1.000000e+00 : f32
    %267 = vector.broadcast %cst_60 : f32 to vector<8x128xf32>
    %268 = arith.addf %267, %266 : vector<8x128xf32>
    %269 = arith.divf %267, %268 : vector<8x128xf32>
    %270 = vector.extract_strided_slice %250 {offsets = [0, 256], sizes = [8, 128], strides = [1, 1]} : vector<8x384xf32> to vector<8x128xf32>
    %271 = vector.extract_strided_slice %253 {offsets = [0, 256], sizes = [8, 128], strides = [1, 1]} : vector<8x384xf32> to vector<8x128xf32>
    %272 = arith.addf %271, %8 : vector<8x128xf32>
    %273 = arith.mulf %261, %272 : vector<8x128xf32>
    %274 = arith.addf %270, %273 : vector<8x128xf32>
    %275 = math.tanh %274 : vector<8x128xf32>
    %cst_61 = arith.constant 1.000000e+00 : f32
    %276 = vector.broadcast %cst_61 : f32 to vector<8x128xf32>
    %277 = arith.subf %276, %269 : vector<8x128xf32>
    %278 = arith.mulf %277, %275 : vector<8x128xf32>
    %279 = arith.mulf %269, %214 : vector<8x128xf32>
    %280 = arith.addf %278, %279 : vector<8x128xf32>
    %281 = vector.extract_strided_slice %280 {offsets = [0, 0], sizes = [8, 32], strides = [1, 1]} : vector<8x128xf32> to vector<8x32xf32>
    %282 = arith.truncf %281 : vector<8x32xf32> to vector<8x32xbf16>
    %cst_62 = arith.constant dense<0.000000e+00> : vector<8x384xf32>
    %283 = tpu.matmul %216, %1, %cst_62 {dimension_numbers = #tpu.dot_dimension_numbers<[1], [0], [0], [1], [0, 0, 1, 1], [], []>} : vector<8x32xbf16>, vector<32x384xbf16>, vector<8x384xf32> -> vector<8x384xf32>
    %284 = vector.broadcast %5 : vector<1x384xf32> to vector<8x384xf32>
    %285 = arith.addf %283, %284 : vector<8x384xf32>
    %286 = vector.extract_strided_slice %249 {offsets = [0, 0], sizes = [8, 32], strides = [1, 1]} : vector<8x128xf32> to vector<8x32xf32>
    %287 = arith.truncf %286 : vector<8x32xf32> to vector<8x32xbf16>
    %cst_63 = arith.constant dense<0.000000e+00> : vector<8x384xf32>
    %288 = tpu.matmul %287, %3, %cst_63 {dimension_numbers = #tpu.dot_dimension_numbers<[1], [0], [0], [1], [0, 0, 1, 1], [], []>} : vector<8x32xbf16>, vector<32x384xbf16>, vector<8x384xf32> -> vector<8x384xf32>
    %289 = vector.extract_strided_slice %285 {offsets = [0, 0], sizes = [8, 128], strides = [1, 1]} : vector<8x384xf32> to vector<8x128xf32>
    %290 = vector.extract_strided_slice %288 {offsets = [0, 0], sizes = [8, 128], strides = [1, 1]} : vector<8x384xf32> to vector<8x128xf32>
    %291 = arith.addf %289, %290 : vector<8x128xf32>
    %292 = arith.negf %291 : vector<8x128xf32>
    %293 = math.exp %292 : vector<8x128xf32>
    %cst_64 = arith.constant 1.000000e+00 : f32
    %294 = vector.broadcast %cst_64 : f32 to vector<8x128xf32>
    %295 = arith.addf %294, %293 : vector<8x128xf32>
    %296 = arith.divf %294, %295 : vector<8x128xf32>
    %297 = vector.extract_strided_slice %285 {offsets = [0, 128], sizes = [8, 128], strides = [1, 1]} : vector<8x384xf32> to vector<8x128xf32>
    %298 = vector.extract_strided_slice %288 {offsets = [0, 128], sizes = [8, 128], strides = [1, 1]} : vector<8x384xf32> to vector<8x128xf32>
    %299 = arith.addf %297, %298 : vector<8x128xf32>
    %300 = arith.negf %299 : vector<8x128xf32>
    %301 = math.exp %300 : vector<8x128xf32>
    %cst_65 = arith.constant 1.000000e+00 : f32
    %302 = vector.broadcast %cst_65 : f32 to vector<8x128xf32>
    %303 = arith.addf %302, %301 : vector<8x128xf32>
    %304 = arith.divf %302, %303 : vector<8x128xf32>
    %305 = vector.extract_strided_slice %285 {offsets = [0, 256], sizes = [8, 128], strides = [1, 1]} : vector<8x384xf32> to vector<8x128xf32>
    %306 = vector.extract_strided_slice %288 {offsets = [0, 256], sizes = [8, 128], strides = [1, 1]} : vector<8x384xf32> to vector<8x128xf32>
    %307 = arith.addf %306, %11 : vector<8x128xf32>
    %308 = arith.mulf %296, %307 : vector<8x128xf32>
    %309 = arith.addf %305, %308 : vector<8x128xf32>
    %310 = math.tanh %309 : vector<8x128xf32>
    %cst_66 = arith.constant 1.000000e+00 : f32
    %311 = vector.broadcast %cst_66 : f32 to vector<8x128xf32>
    %312 = arith.subf %311, %304 : vector<8x128xf32>
    %313 = arith.mulf %312, %310 : vector<8x128xf32>
    %314 = arith.mulf %304, %249 : vector<8x128xf32>
    %315 = arith.addf %313, %314 : vector<8x128xf32>
    %c40 = arith.constant 40 : index
    %c0_67 = arith.constant 0 : index
    %316 = vector.load %arg12[%c40, %c0_67] : memref<64x384xf32, #tpu.memory_space<vmem>>, vector<8x384xf32>
    %317 = vector.extract_strided_slice %280 {offsets = [0, 0], sizes = [8, 32], strides = [1, 1]} : vector<8x128xf32> to vector<8x32xf32>
    %318 = arith.truncf %317 : vector<8x32xf32> to vector<8x32xbf16>
    %cst_68 = arith.constant dense<0.000000e+00> : vector<8x384xf32>
    %319 = tpu.matmul %318, %2, %cst_68 {dimension_numbers = #tpu.dot_dimension_numbers<[1], [0], [0], [1], [0, 0, 1, 1], [], []>} : vector<8x32xbf16>, vector<32x384xbf16>, vector<8x384xf32> -> vector<8x384xf32>
    %320 = vector.extract_strided_slice %316 {offsets = [0, 0], sizes = [8, 128], strides = [1, 1]} : vector<8x384xf32> to vector<8x128xf32>
    %321 = vector.extract_strided_slice %319 {offsets = [0, 0], sizes = [8, 128], strides = [1, 1]} : vector<8x384xf32> to vector<8x128xf32>
    %322 = arith.addf %320, %321 : vector<8x128xf32>
    %323 = arith.negf %322 : vector<8x128xf32>
    %324 = math.exp %323 : vector<8x128xf32>
    %cst_69 = arith.constant 1.000000e+00 : f32
    %325 = vector.broadcast %cst_69 : f32 to vector<8x128xf32>
    %326 = arith.addf %325, %324 : vector<8x128xf32>
    %327 = arith.divf %325, %326 : vector<8x128xf32>
    %328 = vector.extract_strided_slice %316 {offsets = [0, 128], sizes = [8, 128], strides = [1, 1]} : vector<8x384xf32> to vector<8x128xf32>
    %329 = vector.extract_strided_slice %319 {offsets = [0, 128], sizes = [8, 128], strides = [1, 1]} : vector<8x384xf32> to vector<8x128xf32>
    %330 = arith.addf %328, %329 : vector<8x128xf32>
    %331 = arith.negf %330 : vector<8x128xf32>
    %332 = math.exp %331 : vector<8x128xf32>
    %cst_70 = arith.constant 1.000000e+00 : f32
    %333 = vector.broadcast %cst_70 : f32 to vector<8x128xf32>
    %334 = arith.addf %333, %332 : vector<8x128xf32>
    %335 = arith.divf %333, %334 : vector<8x128xf32>
    %336 = vector.extract_strided_slice %316 {offsets = [0, 256], sizes = [8, 128], strides = [1, 1]} : vector<8x384xf32> to vector<8x128xf32>
    %337 = vector.extract_strided_slice %319 {offsets = [0, 256], sizes = [8, 128], strides = [1, 1]} : vector<8x384xf32> to vector<8x128xf32>
    %338 = arith.addf %337, %8 : vector<8x128xf32>
    %339 = arith.mulf %327, %338 : vector<8x128xf32>
    %340 = arith.addf %336, %339 : vector<8x128xf32>
    %341 = math.tanh %340 : vector<8x128xf32>
    %cst_71 = arith.constant 1.000000e+00 : f32
    %342 = vector.broadcast %cst_71 : f32 to vector<8x128xf32>
    %343 = arith.subf %342, %335 : vector<8x128xf32>
    %344 = arith.mulf %343, %341 : vector<8x128xf32>
    %345 = arith.mulf %335, %280 : vector<8x128xf32>
    %346 = arith.addf %344, %345 : vector<8x128xf32>
    %347 = vector.extract_strided_slice %346 {offsets = [0, 0], sizes = [8, 32], strides = [1, 1]} : vector<8x128xf32> to vector<8x32xf32>
    %348 = arith.truncf %347 : vector<8x32xf32> to vector<8x32xbf16>
    %cst_72 = arith.constant dense<0.000000e+00> : vector<8x384xf32>
    %349 = tpu.matmul %282, %1, %cst_72 {dimension_numbers = #tpu.dot_dimension_numbers<[1], [0], [0], [1], [0, 0, 1, 1], [], []>} : vector<8x32xbf16>, vector<32x384xbf16>, vector<8x384xf32> -> vector<8x384xf32>
    %350 = vector.broadcast %5 : vector<1x384xf32> to vector<8x384xf32>
    %351 = arith.addf %349, %350 : vector<8x384xf32>
    %352 = vector.extract_strided_slice %315 {offsets = [0, 0], sizes = [8, 32], strides = [1, 1]} : vector<8x128xf32> to vector<8x32xf32>
    %353 = arith.truncf %352 : vector<8x32xf32> to vector<8x32xbf16>
    %cst_73 = arith.constant dense<0.000000e+00> : vector<8x384xf32>
    %354 = tpu.matmul %353, %3, %cst_73 {dimension_numbers = #tpu.dot_dimension_numbers<[1], [0], [0], [1], [0, 0, 1, 1], [], []>} : vector<8x32xbf16>, vector<32x384xbf16>, vector<8x384xf32> -> vector<8x384xf32>
    %355 = vector.extract_strided_slice %351 {offsets = [0, 0], sizes = [8, 128], strides = [1, 1]} : vector<8x384xf32> to vector<8x128xf32>
    %356 = vector.extract_strided_slice %354 {offsets = [0, 0], sizes = [8, 128], strides = [1, 1]} : vector<8x384xf32> to vector<8x128xf32>
    %357 = arith.addf %355, %356 : vector<8x128xf32>
    %358 = arith.negf %357 : vector<8x128xf32>
    %359 = math.exp %358 : vector<8x128xf32>
    %cst_74 = arith.constant 1.000000e+00 : f32
    %360 = vector.broadcast %cst_74 : f32 to vector<8x128xf32>
    %361 = arith.addf %360, %359 : vector<8x128xf32>
    %362 = arith.divf %360, %361 : vector<8x128xf32>
    %363 = vector.extract_strided_slice %351 {offsets = [0, 128], sizes = [8, 128], strides = [1, 1]} : vector<8x384xf32> to vector<8x128xf32>
    %364 = vector.extract_strided_slice %354 {offsets = [0, 128], sizes = [8, 128], strides = [1, 1]} : vector<8x384xf32> to vector<8x128xf32>
    %365 = arith.addf %363, %364 : vector<8x128xf32>
    %366 = arith.negf %365 : vector<8x128xf32>
    %367 = math.exp %366 : vector<8x128xf32>
    %cst_75 = arith.constant 1.000000e+00 : f32
    %368 = vector.broadcast %cst_75 : f32 to vector<8x128xf32>
    %369 = arith.addf %368, %367 : vector<8x128xf32>
    %370 = arith.divf %368, %369 : vector<8x128xf32>
    %371 = vector.extract_strided_slice %351 {offsets = [0, 256], sizes = [8, 128], strides = [1, 1]} : vector<8x384xf32> to vector<8x128xf32>
    %372 = vector.extract_strided_slice %354 {offsets = [0, 256], sizes = [8, 128], strides = [1, 1]} : vector<8x384xf32> to vector<8x128xf32>
    %373 = arith.addf %372, %11 : vector<8x128xf32>
    %374 = arith.mulf %362, %373 : vector<8x128xf32>
    %375 = arith.addf %371, %374 : vector<8x128xf32>
    %376 = math.tanh %375 : vector<8x128xf32>
    %cst_76 = arith.constant 1.000000e+00 : f32
    %377 = vector.broadcast %cst_76 : f32 to vector<8x128xf32>
    %378 = arith.subf %377, %370 : vector<8x128xf32>
    %379 = arith.mulf %378, %376 : vector<8x128xf32>
    %380 = arith.mulf %370, %315 : vector<8x128xf32>
    %381 = arith.addf %379, %380 : vector<8x128xf32>
    %c48 = arith.constant 48 : index
    %c0_77 = arith.constant 0 : index
    %382 = vector.load %arg12[%c48, %c0_77] : memref<64x384xf32, #tpu.memory_space<vmem>>, vector<8x384xf32>
    %383 = vector.extract_strided_slice %346 {offsets = [0, 0], sizes = [8, 32], strides = [1, 1]} : vector<8x128xf32> to vector<8x32xf32>
    %384 = arith.truncf %383 : vector<8x32xf32> to vector<8x32xbf16>
    %cst_78 = arith.constant dense<0.000000e+00> : vector<8x384xf32>
    %385 = tpu.matmul %384, %2, %cst_78 {dimension_numbers = #tpu.dot_dimension_numbers<[1], [0], [0], [1], [0, 0, 1, 1], [], []>} : vector<8x32xbf16>, vector<32x384xbf16>, vector<8x384xf32> -> vector<8x384xf32>
    %386 = vector.extract_strided_slice %382 {offsets = [0, 0], sizes = [8, 128], strides = [1, 1]} : vector<8x384xf32> to vector<8x128xf32>
    %387 = vector.extract_strided_slice %385 {offsets = [0, 0], sizes = [8, 128], strides = [1, 1]} : vector<8x384xf32> to vector<8x128xf32>
    %388 = arith.addf %386, %387 : vector<8x128xf32>
    %389 = arith.negf %388 : vector<8x128xf32>
    %390 = math.exp %389 : vector<8x128xf32>
    %cst_79 = arith.constant 1.000000e+00 : f32
    %391 = vector.broadcast %cst_79 : f32 to vector<8x128xf32>
    %392 = arith.addf %391, %390 : vector<8x128xf32>
    %393 = arith.divf %391, %392 : vector<8x128xf32>
    %394 = vector.extract_strided_slice %382 {offsets = [0, 128], sizes = [8, 128], strides = [1, 1]} : vector<8x384xf32> to vector<8x128xf32>
    %395 = vector.extract_strided_slice %385 {offsets = [0, 128], sizes = [8, 128], strides = [1, 1]} : vector<8x384xf32> to vector<8x128xf32>
    %396 = arith.addf %394, %395 : vector<8x128xf32>
    %397 = arith.negf %396 : vector<8x128xf32>
    %398 = math.exp %397 : vector<8x128xf32>
    %cst_80 = arith.constant 1.000000e+00 : f32
    %399 = vector.broadcast %cst_80 : f32 to vector<8x128xf32>
    %400 = arith.addf %399, %398 : vector<8x128xf32>
    %401 = arith.divf %399, %400 : vector<8x128xf32>
    %402 = vector.extract_strided_slice %382 {offsets = [0, 256], sizes = [8, 128], strides = [1, 1]} : vector<8x384xf32> to vector<8x128xf32>
    %403 = vector.extract_strided_slice %385 {offsets = [0, 256], sizes = [8, 128], strides = [1, 1]} : vector<8x384xf32> to vector<8x128xf32>
    %404 = arith.addf %403, %8 : vector<8x128xf32>
    %405 = arith.mulf %393, %404 : vector<8x128xf32>
    %406 = arith.addf %402, %405 : vector<8x128xf32>
    %407 = math.tanh %406 : vector<8x128xf32>
    %cst_81 = arith.constant 1.000000e+00 : f32
    %408 = vector.broadcast %cst_81 : f32 to vector<8x128xf32>
    %409 = arith.subf %408, %401 : vector<8x128xf32>
    %410 = arith.mulf %409, %407 : vector<8x128xf32>
    %411 = arith.mulf %401, %346 : vector<8x128xf32>
    %412 = arith.addf %410, %411 : vector<8x128xf32>
    %413 = vector.extract_strided_slice %412 {offsets = [0, 0], sizes = [8, 32], strides = [1, 1]} : vector<8x128xf32> to vector<8x32xf32>
    %414 = arith.truncf %413 : vector<8x32xf32> to vector<8x32xbf16>
    %cst_82 = arith.constant dense<0.000000e+00> : vector<8x384xf32>
    %415 = tpu.matmul %348, %1, %cst_82 {dimension_numbers = #tpu.dot_dimension_numbers<[1], [0], [0], [1], [0, 0, 1, 1], [], []>} : vector<8x32xbf16>, vector<32x384xbf16>, vector<8x384xf32> -> vector<8x384xf32>
    %416 = vector.broadcast %5 : vector<1x384xf32> to vector<8x384xf32>
    %417 = arith.addf %415, %416 : vector<8x384xf32>
    %418 = vector.extract_strided_slice %381 {offsets = [0, 0], sizes = [8, 32], strides = [1, 1]} : vector<8x128xf32> to vector<8x32xf32>
    %419 = arith.truncf %418 : vector<8x32xf32> to vector<8x32xbf16>
    %cst_83 = arith.constant dense<0.000000e+00> : vector<8x384xf32>
    %420 = tpu.matmul %419, %3, %cst_83 {dimension_numbers = #tpu.dot_dimension_numbers<[1], [0], [0], [1], [0, 0, 1, 1], [], []>} : vector<8x32xbf16>, vector<32x384xbf16>, vector<8x384xf32> -> vector<8x384xf32>
    %421 = vector.extract_strided_slice %417 {offsets = [0, 0], sizes = [8, 128], strides = [1, 1]} : vector<8x384xf32> to vector<8x128xf32>
    %422 = vector.extract_strided_slice %420 {offsets = [0, 0], sizes = [8, 128], strides = [1, 1]} : vector<8x384xf32> to vector<8x128xf32>
    %423 = arith.addf %421, %422 : vector<8x128xf32>
    %424 = arith.negf %423 : vector<8x128xf32>
    %425 = math.exp %424 : vector<8x128xf32>
    %cst_84 = arith.constant 1.000000e+00 : f32
    %426 = vector.broadcast %cst_84 : f32 to vector<8x128xf32>
    %427 = arith.addf %426, %425 : vector<8x128xf32>
    %428 = arith.divf %426, %427 : vector<8x128xf32>
    %429 = vector.extract_strided_slice %417 {offsets = [0, 128], sizes = [8, 128], strides = [1, 1]} : vector<8x384xf32> to vector<8x128xf32>
    %430 = vector.extract_strided_slice %420 {offsets = [0, 128], sizes = [8, 128], strides = [1, 1]} : vector<8x384xf32> to vector<8x128xf32>
    %431 = arith.addf %429, %430 : vector<8x128xf32>
    %432 = arith.negf %431 : vector<8x128xf32>
    %433 = math.exp %432 : vector<8x128xf32>
    %cst_85 = arith.constant 1.000000e+00 : f32
    %434 = vector.broadcast %cst_85 : f32 to vector<8x128xf32>
    %435 = arith.addf %434, %433 : vector<8x128xf32>
    %436 = arith.divf %434, %435 : vector<8x128xf32>
    %437 = vector.extract_strided_slice %417 {offsets = [0, 256], sizes = [8, 128], strides = [1, 1]} : vector<8x384xf32> to vector<8x128xf32>
    %438 = vector.extract_strided_slice %420 {offsets = [0, 256], sizes = [8, 128], strides = [1, 1]} : vector<8x384xf32> to vector<8x128xf32>
    %439 = arith.addf %438, %11 : vector<8x128xf32>
    %440 = arith.mulf %428, %439 : vector<8x128xf32>
    %441 = arith.addf %437, %440 : vector<8x128xf32>
    %442 = math.tanh %441 : vector<8x128xf32>
    %cst_86 = arith.constant 1.000000e+00 : f32
    %443 = vector.broadcast %cst_86 : f32 to vector<8x128xf32>
    %444 = arith.subf %443, %436 : vector<8x128xf32>
    %445 = arith.mulf %444, %442 : vector<8x128xf32>
    %446 = arith.mulf %436, %381 : vector<8x128xf32>
    %447 = arith.addf %445, %446 : vector<8x128xf32>
    %c56 = arith.constant 56 : index
    %c0_87 = arith.constant 0 : index
    %448 = vector.load %arg12[%c56, %c0_87] : memref<64x384xf32, #tpu.memory_space<vmem>>, vector<8x384xf32>
    %449 = vector.extract_strided_slice %412 {offsets = [0, 0], sizes = [8, 32], strides = [1, 1]} : vector<8x128xf32> to vector<8x32xf32>
    %450 = arith.truncf %449 : vector<8x32xf32> to vector<8x32xbf16>
    %cst_88 = arith.constant dense<0.000000e+00> : vector<8x384xf32>
    %451 = tpu.matmul %450, %2, %cst_88 {dimension_numbers = #tpu.dot_dimension_numbers<[1], [0], [0], [1], [0, 0, 1, 1], [], []>} : vector<8x32xbf16>, vector<32x384xbf16>, vector<8x384xf32> -> vector<8x384xf32>
    %452 = vector.extract_strided_slice %448 {offsets = [0, 0], sizes = [8, 128], strides = [1, 1]} : vector<8x384xf32> to vector<8x128xf32>
    %453 = vector.extract_strided_slice %451 {offsets = [0, 0], sizes = [8, 128], strides = [1, 1]} : vector<8x384xf32> to vector<8x128xf32>
    %454 = arith.addf %452, %453 : vector<8x128xf32>
    %455 = arith.negf %454 : vector<8x128xf32>
    %456 = math.exp %455 : vector<8x128xf32>
    %cst_89 = arith.constant 1.000000e+00 : f32
    %457 = vector.broadcast %cst_89 : f32 to vector<8x128xf32>
    %458 = arith.addf %457, %456 : vector<8x128xf32>
    %459 = arith.divf %457, %458 : vector<8x128xf32>
    %460 = vector.extract_strided_slice %448 {offsets = [0, 128], sizes = [8, 128], strides = [1, 1]} : vector<8x384xf32> to vector<8x128xf32>
    %461 = vector.extract_strided_slice %451 {offsets = [0, 128], sizes = [8, 128], strides = [1, 1]} : vector<8x384xf32> to vector<8x128xf32>
    %462 = arith.addf %460, %461 : vector<8x128xf32>
    %463 = arith.negf %462 : vector<8x128xf32>
    %464 = math.exp %463 : vector<8x128xf32>
    %cst_90 = arith.constant 1.000000e+00 : f32
    %465 = vector.broadcast %cst_90 : f32 to vector<8x128xf32>
    %466 = arith.addf %465, %464 : vector<8x128xf32>
    %467 = arith.divf %465, %466 : vector<8x128xf32>
    %468 = vector.extract_strided_slice %448 {offsets = [0, 256], sizes = [8, 128], strides = [1, 1]} : vector<8x384xf32> to vector<8x128xf32>
    %469 = vector.extract_strided_slice %451 {offsets = [0, 256], sizes = [8, 128], strides = [1, 1]} : vector<8x384xf32> to vector<8x128xf32>
    %470 = arith.addf %469, %8 : vector<8x128xf32>
    %471 = arith.mulf %459, %470 : vector<8x128xf32>
    %472 = arith.addf %468, %471 : vector<8x128xf32>
    %473 = math.tanh %472 : vector<8x128xf32>
    %cst_91 = arith.constant 1.000000e+00 : f32
    %474 = vector.broadcast %cst_91 : f32 to vector<8x128xf32>
    %475 = arith.subf %474, %467 : vector<8x128xf32>
    %476 = arith.mulf %475, %473 : vector<8x128xf32>
    %477 = arith.mulf %467, %412 : vector<8x128xf32>
    %478 = arith.addf %476, %477 : vector<8x128xf32>
    %479 = vector.extract_strided_slice %478 {offsets = [0, 0], sizes = [8, 32], strides = [1, 1]} : vector<8x128xf32> to vector<8x32xf32>
    %480 = arith.truncf %479 : vector<8x32xf32> to vector<8x32xbf16>
    %cst_92 = arith.constant dense<0.000000e+00> : vector<8x384xf32>
    %481 = tpu.matmul %414, %1, %cst_92 {dimension_numbers = #tpu.dot_dimension_numbers<[1], [0], [0], [1], [0, 0, 1, 1], [], []>} : vector<8x32xbf16>, vector<32x384xbf16>, vector<8x384xf32> -> vector<8x384xf32>
    %482 = vector.broadcast %5 : vector<1x384xf32> to vector<8x384xf32>
    %483 = arith.addf %481, %482 : vector<8x384xf32>
    %484 = vector.extract_strided_slice %447 {offsets = [0, 0], sizes = [8, 32], strides = [1, 1]} : vector<8x128xf32> to vector<8x32xf32>
    %485 = arith.truncf %484 : vector<8x32xf32> to vector<8x32xbf16>
    %cst_93 = arith.constant dense<0.000000e+00> : vector<8x384xf32>
    %486 = tpu.matmul %485, %3, %cst_93 {dimension_numbers = #tpu.dot_dimension_numbers<[1], [0], [0], [1], [0, 0, 1, 1], [], []>} : vector<8x32xbf16>, vector<32x384xbf16>, vector<8x384xf32> -> vector<8x384xf32>
    %487 = vector.extract_strided_slice %483 {offsets = [0, 0], sizes = [8, 128], strides = [1, 1]} : vector<8x384xf32> to vector<8x128xf32>
    %488 = vector.extract_strided_slice %486 {offsets = [0, 0], sizes = [8, 128], strides = [1, 1]} : vector<8x384xf32> to vector<8x128xf32>
    %489 = arith.addf %487, %488 : vector<8x128xf32>
    %490 = arith.negf %489 : vector<8x128xf32>
    %491 = math.exp %490 : vector<8x128xf32>
    %cst_94 = arith.constant 1.000000e+00 : f32
    %492 = vector.broadcast %cst_94 : f32 to vector<8x128xf32>
    %493 = arith.addf %492, %491 : vector<8x128xf32>
    %494 = arith.divf %492, %493 : vector<8x128xf32>
    %495 = vector.extract_strided_slice %483 {offsets = [0, 128], sizes = [8, 128], strides = [1, 1]} : vector<8x384xf32> to vector<8x128xf32>
    %496 = vector.extract_strided_slice %486 {offsets = [0, 128], sizes = [8, 128], strides = [1, 1]} : vector<8x384xf32> to vector<8x128xf32>
    %497 = arith.addf %495, %496 : vector<8x128xf32>
    %498 = arith.negf %497 : vector<8x128xf32>
    %499 = math.exp %498 : vector<8x128xf32>
    %cst_95 = arith.constant 1.000000e+00 : f32
    %500 = vector.broadcast %cst_95 : f32 to vector<8x128xf32>
    %501 = arith.addf %500, %499 : vector<8x128xf32>
    %502 = arith.divf %500, %501 : vector<8x128xf32>
    %503 = vector.extract_strided_slice %483 {offsets = [0, 256], sizes = [8, 128], strides = [1, 1]} : vector<8x384xf32> to vector<8x128xf32>
    %504 = vector.extract_strided_slice %486 {offsets = [0, 256], sizes = [8, 128], strides = [1, 1]} : vector<8x384xf32> to vector<8x128xf32>
    %505 = arith.addf %504, %11 : vector<8x128xf32>
    %506 = arith.mulf %494, %505 : vector<8x128xf32>
    %507 = arith.addf %503, %506 : vector<8x128xf32>
    %508 = math.tanh %507 : vector<8x128xf32>
    %cst_96 = arith.constant 1.000000e+00 : f32
    %509 = vector.broadcast %cst_96 : f32 to vector<8x128xf32>
    %510 = arith.subf %509, %502 : vector<8x128xf32>
    %511 = arith.mulf %510, %508 : vector<8x128xf32>
    %512 = arith.mulf %502, %447 : vector<8x128xf32>
    %513 = arith.addf %511, %512 : vector<8x128xf32>
    %cst_97 = arith.constant dense<0.000000e+00> : vector<8x384xf32>
    %514 = tpu.matmul %480, %1, %cst_97 {dimension_numbers = #tpu.dot_dimension_numbers<[1], [0], [0], [1], [0, 0, 1, 1], [], []>} : vector<8x32xbf16>, vector<32x384xbf16>, vector<8x384xf32> -> vector<8x384xf32>
    %515 = vector.broadcast %5 : vector<1x384xf32> to vector<8x384xf32>
    %516 = arith.addf %514, %515 : vector<8x384xf32>
    %517 = vector.extract_strided_slice %513 {offsets = [0, 0], sizes = [8, 32], strides = [1, 1]} : vector<8x128xf32> to vector<8x32xf32>
    %518 = arith.truncf %517 : vector<8x32xf32> to vector<8x32xbf16>
    %cst_98 = arith.constant dense<0.000000e+00> : vector<8x384xf32>
    %519 = tpu.matmul %518, %3, %cst_98 {dimension_numbers = #tpu.dot_dimension_numbers<[1], [0], [0], [1], [0, 0, 1, 1], [], []>} : vector<8x32xbf16>, vector<32x384xbf16>, vector<8x384xf32> -> vector<8x384xf32>
    %520 = vector.extract_strided_slice %516 {offsets = [0, 0], sizes = [8, 128], strides = [1, 1]} : vector<8x384xf32> to vector<8x128xf32>
    %521 = vector.extract_strided_slice %519 {offsets = [0, 0], sizes = [8, 128], strides = [1, 1]} : vector<8x384xf32> to vector<8x128xf32>
    %522 = arith.addf %520, %521 : vector<8x128xf32>
    %523 = arith.negf %522 : vector<8x128xf32>
    %524 = math.exp %523 : vector<8x128xf32>
    %cst_99 = arith.constant 1.000000e+00 : f32
    %525 = vector.broadcast %cst_99 : f32 to vector<8x128xf32>
    %526 = arith.addf %525, %524 : vector<8x128xf32>
    %527 = arith.divf %525, %526 : vector<8x128xf32>
    %528 = vector.extract_strided_slice %516 {offsets = [0, 128], sizes = [8, 128], strides = [1, 1]} : vector<8x384xf32> to vector<8x128xf32>
    %529 = vector.extract_strided_slice %519 {offsets = [0, 128], sizes = [8, 128], strides = [1, 1]} : vector<8x384xf32> to vector<8x128xf32>
    %530 = arith.addf %528, %529 : vector<8x128xf32>
    %531 = arith.negf %530 : vector<8x128xf32>
    %532 = math.exp %531 : vector<8x128xf32>
    %cst_100 = arith.constant 1.000000e+00 : f32
    %533 = vector.broadcast %cst_100 : f32 to vector<8x128xf32>
    %534 = arith.addf %533, %532 : vector<8x128xf32>
    %535 = arith.divf %533, %534 : vector<8x128xf32>
    %536 = vector.extract_strided_slice %516 {offsets = [0, 256], sizes = [8, 128], strides = [1, 1]} : vector<8x384xf32> to vector<8x128xf32>
    %537 = vector.extract_strided_slice %519 {offsets = [0, 256], sizes = [8, 128], strides = [1, 1]} : vector<8x384xf32> to vector<8x128xf32>
    %538 = arith.addf %537, %11 : vector<8x128xf32>
    %539 = arith.mulf %527, %538 : vector<8x128xf32>
    %540 = arith.addf %536, %539 : vector<8x128xf32>
    %541 = math.tanh %540 : vector<8x128xf32>
    %cst_101 = arith.constant 1.000000e+00 : f32
    %542 = vector.broadcast %cst_101 : f32 to vector<8x128xf32>
    %543 = arith.subf %542, %535 : vector<8x128xf32>
    %544 = arith.mulf %543, %541 : vector<8x128xf32>
    %545 = arith.mulf %535, %513 : vector<8x128xf32>
    %546 = arith.addf %544, %545 : vector<8x128xf32>
    %c0_102 = arith.constant 0 : index
    %c0_103 = arith.constant 0 : index
    %547 = vector.load %arg9[%c0_102, %c0_103] : memref<1x128xf32, #tpu.memory_space<vmem>>, vector<1x128xf32>
    %548 = vector.broadcast %547 : vector<1x128xf32> to vector<8x128xf32>
    %549 = arith.mulf %546, %548 : vector<8x128xf32>
    %cst_104 = arith.constant dense<0.000000e+00> : vector<8xf32>
    %550 = vector.multi_reduction <add>, %549, %cst_104 [1] : vector<8x128xf32> to vector<8xf32>
    %551 = vector.shape_cast %550 : vector<8xf32> to vector<8x1xf32>
    %c0_105 = arith.constant 0 : index
    %c0_106 = arith.constant 0 : index
    %552 = vector.load %arg10[%c0_105, %c0_106] : memref<1x1xf32, #tpu.memory_space<vmem>>, vector<1x1xf32>
    %553 = vector.broadcast %552 : vector<1x1xf32> to vector<8x1xf32>
    %554 = arith.addf %551, %553 : vector<8x1xf32>
    %c0_107 = arith.constant 0 : index
    %c0_108 = arith.constant 0 : index
    %555 = vector.load %arg11[%c0_107, %c0_108] : memref<8x1xf32, #tpu.memory_space<vmem>>, vector<8x1xf32>
    tpu.vector_store %arg11[%c0_107, %c0_108], %554 {strides = array<i32>} : memref<8x1xf32, #tpu.memory_space<vmem>>, vector<8x1xf32>,
    return
  }
}

</mosaic_0001>

<llo_original>
// kernel: gru_forward.1
$region0: #{gru_forward.1}
  #allocation0 [shape = 'u32[]', space=smem, size = 0x4, offset = 0x4, fixed_abs, tag = 'smem constant byte address 0x4 - core index']
  #allocation1 [shape = 'u32[144,128]{1,0:T(1,128)}', space=vmem, size = 0x12000, scoped, tag = 'internal scratch']
  #allocation2 [shape = 'f32[64,384]{1,0:T(8,128)}', space=vmem, size = 0x18000, scoped, tag = 'scratch operand']
  #allocation3 [shape = 'f32[1,1]{1,0:T(1,128)S(1)}', space=vmem, size = 0x200, scoped, tag = 'scoped memory for gru_forward.1']
  %s0 = inlined_call_operand.vmem [shape: bf16[64,16], index: 0, kind: input, shape index: {}]
  %s1 = inlined_call_operand.hbm [shape: bf16[16,384], index: 1, kind: input, shape index: {}]
  %s2 = inlined_call_operand.vmem [shape: bf16[32,384], index: 2, kind: input, shape index: {}]
  %s3 = inlined_call_operand.hbm [shape: f32[1,384], index: 3, kind: input, shape index: {}]
  %s4 = inlined_call_operand.vmem [shape: f32[1,128], index: 4, kind: input, shape index: {}]
  %s5 = inlined_call_operand.vmem [shape: bf16[32,384], index: 5, kind: input, shape index: {}]
  %s6 = inlined_call_operand.hbm [shape: bf16[32,384], index: 6, kind: input, shape index: {}]
  %s7 = inlined_call_operand.vmem [shape: f32[1,384], index: 7, kind: input, shape index: {}]
  %s8 = inlined_call_operand.vmem [shape: f32[1,128], index: 8, kind: input, shape index: {}]
  %s9 = inlined_call_operand.hbm [shape: f32[1,128], index: 9, kind: input, shape index: {}]
  %s10 = inlined_call_operand.<no memory space> [shape: f32[1,1], index: 10, kind: input, shape index: {}]
  %s11 = inlined_call_operand.vmem [shape: f32[8,1], index: 11, kind: output, shape index: {}]
  %s12 = sld [smem:[#allocation0]]
  $region70: #{gru_forward.1} parent=0
    _
  %s14 = ssub.s32 1, %s12
  %s15 = scalar_select 0, %s14, %s12
  %v16 = vstv %s10
  %17 = vst [vmem:[#allocation3] sm:$0x1] %v16
  $region1: #{gru_forward.1} parent=0
    #allocation4 [shape = 'u8[12288]{0}', space=vmem, size = 0x3000, scoped, tag = 'input window, operand 1, single buffered']
    #allocation5 [shape = 's32[1]{0}', space=sflag, size = 0x4, scoped, tag = 'scoped memory for gru_forward.1']
    #allocation6 [shape = 'u8[1536]{0}', space=vmem, size = 0x800, scoped, tag = 'input window, operand 3, single buffered']
    #allocation7 [shape = 's32[1]{0}', space=sflag, size = 0x4, scoped, tag = 'scoped memory for gru_forward.1']
    #allocation8 [shape = 'u8[24576]{0}', space=vmem, size = 0x6000, scoped, tag = 'input window, operand 6, single buffered']
    #allocation9 [shape = 'u8[512]{0}', space=vmem, size = 0x400, scoped, tag = 'input window, operand 9, single buffered']
    #allocation10 [shape = 's32[1]{0}', space=sflag, size = 0x4, scoped, tag = 'scoped memory for gru_forward.1']
    %18 = vsyncpa [#allocation5], 0
    %19 = vsyncpa [#allocation7], 0
    %20 = vsyncpa [#allocation10], 0
    // Predicated region
    $region2: #{gru_forward.1} parent=1 // pred_check
      _
    $region3: #{gru_forward.1} parent=1 // pred_check_branch
      %22 = sbr.rel (0) target = $region5
    $region4: #{gru_forward.1} parent=1 // pred_region
      _
    $region5: #{gru_forward.1} parent=1 // pred_fallthru
      _
    // Predicated region
    $region6: #{gru_forward.1} parent=1 // pred_check
      _
    $region7: #{gru_forward.1} parent=1 // pred_check_branch
      %24 = sbr.rel (0) target = $region9
    $region8: #{gru_forward.1} parent=1 // pred_region
      %s26 = ssub.s32 384, 384
      %27 = vsyncadd [#allocation5], %s26
      %s28 = sshll.u32 [#allocation4], 4
      %s29 = int_to_ptr.vmem [resolvable:$true] %s28
      %34 = dma.hbm_to_vmem [thread:$0]  %s1, 384, %s29, [#allocation5], 192, 192, 12
    $region9: #{gru_forward.1} parent=1 // pred_fallthru
      _
    // Predicated region
    $region10: #{gru_forward.1} parent=1 // pred_check
      _
    $region11: #{gru_forward.1} parent=1 // pred_check_branch
      %36 = sbr.rel (0) target = $region13
    $region12: #{gru_forward.1} parent=1 // pred_region
      _
    $region13: #{gru_forward.1} parent=1 // pred_fallthru
      _
    // Predicated region
    $region14: #{gru_forward.1} parent=1 // pred_check
      _
    $region15: #{gru_forward.1} parent=1 // pred_check_branch
      %38 = sbr.rel (0) target = $region17
    $region16: #{gru_forward.1} parent=1 // pred_region
      %s40 = ssub.s32 48, 48
      %41 = vsyncadd [#allocation7], %s40
      %s43 = sshll.u32 [#allocation6], 4
      %s44 = int_to_ptr.vmem [resolvable:$true] %s43
      %46 = dma.hbm_to_vmem [thread:$0]  %s3, 48, %s44, [#allocation7]
    $region17: #{gru_forward.1} parent=1 // pred_fallthru
      _
    // Predicated region
    $region18: #{gru_forward.1} parent=1 // pred_check
      _
    $region19: #{gru_forward.1} parent=1 // pred_check_branch
      %48 = sbr.rel (0) target = $region21
    $region20: #{gru_forward.1} parent=1 // pred_region
      _
    $region21: #{gru_forward.1} parent=1 // pred_fallthru
      _
    // Predicated region
    $region22: #{gru_forward.1} parent=1 // pred_check
      _
    $region23: #{gru_forward.1} parent=1 // pred_check_branch
      %50 = sbr.rel (0) target = $region25
    $region24: #{gru_forward.1} parent=1 // pred_region
      _
    $region25: #{gru_forward.1} parent=1 // pred_fallthru
      _
    // Predicated region
    $region26: #{gru_forward.1} parent=1 // pred_check
      _
    $region27: #{gru_forward.1} parent=1 // pred_check_branch
      %52 = sbr.rel (0) target = $region29
    $region28: #{gru_forward.1} parent=1 // pred_region
      %s54 = ssub.s32 768, 768
      %55 = vsyncadd [#allocation7], %s54
      %s56 = sshll.u32 [#allocation8], 4
      %s57 = int_to_ptr.vmem [resolvable:$true] %s56
      %62 = dma.hbm_to_vmem [thread:$0]  %s6, 768, %s57, [#allocation7], 192, 192, 12
    $region29: #{gru_forward.1} parent=1 // pred_fallthru
      _
    // Predicated region
    $region30: #{gru_forward.1} parent=1 // pred_check
      _
    $region31: #{gru_forward.1} parent=1 // pred_check_branch
      %64 = sbr.rel (0) target = $region33
    $region32: #{gru_forward.1} parent=1 // pred_region
      _
    $region33: #{gru_forward.1} parent=1 // pred_fallthru
      _
    // Predicated region
    $region34: #{gru_forward.1} parent=1 // pred_check
      _
    $region35: #{gru_forward.1} parent=1 // pred_check_branch
      %66 = sbr.rel (0) target = $region37
    $region36: #{gru_forward.1} parent=1 // pred_region
      _
    $region37: #{gru_forward.1} parent=1 // pred_fallthru
      _
    // Predicated region
    $region38: #{gru_forward.1} parent=1 // pred_check
      _
    $region39: #{gru_forward.1} parent=1 // pred_check_branch
      %68 = sbr.rel (0) target = $region41
    $region40: #{gru_forward.1} parent=1 // pred_region
      %s70 = ssub.s32 16, 16
      %71 = vsyncadd [#allocation10], %s70
      %s73 = sshll.u32 [#allocation9], 4
      %s74 = int_to_ptr.vmem [resolvable:$true] %s73
      %76 = dma.hbm_to_vmem [thread:$0]  %s9, 16, %s74, [#allocation10]
    $region41: #{gru_forward.1} parent=1 // pred_fallthru
      _
    // Predicated region
    $region42: #{gru_forward.1} parent=1 // pred_check
      _
    $region43: #{gru_forward.1} parent=1 // pred_check_branch
      %78 = sbr.rel (0) target = $region45
    $region44: #{gru_forward.1} parent=1 // pred_region
      _
    $region45: #{gru_forward.1} parent=1 // pred_fallthru
      _
    // Predicated region
    $region46: #{gru_forward.1} parent=1 // pred_check
      _
    $region47: #{gru_forward.1} parent=1 // pred_check_branch
      %80 = sbr.rel (0) target = $region49
    $region48: #{gru_forward.1} parent=1 // pred_region
      %81 = dma.done [#allocation5], 384
    $region49: #{gru_forward.1} parent=1 // pred_fallthru
      _
    // Predicated region
    $region50: #{gru_forward.1} parent=1 // pred_check
      _
    $region51: #{gru_forward.1} parent=1 // pred_check_branch
      %83 = sbr.rel (0) target = $region53
    $region52: #{gru_forward.1} parent=1 // pred_region
      %84 = dma.done [#allocation7], 48
    $region53: #{gru_forward.1} parent=1 // pred_fallthru
      _
    // Predicated region
    $region54: #{gru_forward.1} parent=1 // pred_check
      _
    $region55: #{gru_forward.1} parent=1 // pred_check_branch
      %86 = sbr.rel (0) target = $region57
    $region56: #{gru_forward.1} parent=1 // pred_region
      %87 = dma.done [#allocation7], 768
    $region57: #{gru_forward.1} parent=1 // pred_fallthru
      _
    // Predicated region
    $region58: #{gru_forward.1} parent=1 // pred_check
      _
    $region59: #{gru_forward.1} parent=1 // pred_check_branch
      %89 = sbr.rel (0) target = $region61
    $region60: #{gru_forward.1} parent=1 // pred_region
      %90 = dma.done [#allocation10], 16
    $region61: #{gru_forward.1} parent=1 // pred_fallthru
      _
    %v92 = vld [vmem:[#allocation4] sm:$0xff]
    %v93 = vld [vmem:[#allocation4 + $0x8] sm:$0xf]
    %v94 = vld [vmem:[#allocation4 + $0xc] sm:$0xff]
    %v95 = vld [vmem:[#allocation4 + $0x14] sm:$0xf]
    %v96 = vld [vmem:[%s5] sm:$0xff]
    %v97 = vld [vmem:[%s5 + $0x8] sm:$0xf]
    %v98 = vld [vmem:[%s5 + $0xc] sm:$0xff]
    %v99 = vld [vmem:[%s5 + $0x14] sm:$0xf]
    %v100 = vld [vmem:[%s5 + $0x18] sm:$0xff]
    %v101 = vld [vmem:[%s5 + $0x20] sm:$0xf]
    %v102 = vld [vmem:[%s5 + $0x24] sm:$0xff]
    %v103 = vld [vmem:[%s5 + $0x2c] sm:$0xf]
    %v104 = vld [vmem:[%s2] sm:$0xff]
    %v105 = vld [vmem:[%s2 + $0x8] sm:$0xf]
    %v106 = vld [vmem:[%s2 + $0xc] sm:$0xff]
    %v107 = vld [vmem:[%s2 + $0x14] sm:$0xf]
    %v108 = vld [vmem:[%s2 + $0x18] sm:$0xff]
    %v109 = vld [vmem:[%s2 + $0x20] sm:$0xf]
    %v110 = vld [vmem:[%s2 + $0x24] sm:$0xff]
    %v111 = vld [vmem:[%s2 + $0x2c] sm:$0xf]
    %v112 = vld [vmem:[#allocation8] sm:$0xff]
    %v113 = vld [vmem:[#allocation8 + $0x8] sm:$0xf]
    %v114 = vld [vmem:[#allocation8 + $0xc] sm:$0xff]
    %v115 = vld [vmem:[#allocation8 + $0x14] sm:$0xf]
    %v116 = vld [vmem:[#allocation8 + $0x18] sm:$0xff]
    %v117 = vld [vmem:[#allocation8 + $0x20] sm:$0xf]
    %v118 = vld [vmem:[#allocation8 + $0x24] sm:$0xff]
    %v119 = vld [vmem:[#allocation8 + $0x2c] sm:$0xf]
    %v120 = vld [vmem:[#allocation6] sm:$0x7]
    %v121 = vld [vmem:[%s7] sm:$0x7]
    %v122 = vld [vmem:[%s4] sm:$0x1]
    %v124 = vlaneseq
    %v125 = vshrl.u32 %v124, 7
    %v126 = vsub.s32 0, %v125
    %v127 = vrot.slane %v122, %v126
    %v129 = vld [vmem:[%s8] sm:$0x1]
    %v131 = vlaneseq
    %v132 = vshrl.u32 %v131, 7
    %v133 = vsub.s32 0, %v132
    %v134 = vrot.slane %v129, %v133
    %v136 = vld [vmem:[%s0] sm:$0xf]
    %v137 = vld [vmem:[%s0 + $0x4] sm:$0xf]
    %v138 = vld [vmem:[%s0 + $0x8] sm:$0xf]
    %v139 = vld [vmem:[%s0 + $0xc] sm:$0xf]
    %v140 = vld [vmem:[%s0 + $0x10] sm:$0xf]
    %v141 = vld [vmem:[%s0 + $0x14] sm:$0xf]
    %v142 = vld [vmem:[%s0 + $0x18] sm:$0xf]
    %v143 = vld [vmem:[%s0 + $0x1c] sm:$0xf]
    %v145 = vlaneseq
    %v146 = vshrl.u32 %v145, 7
    %v147 = vsub.s32 0, %v146
    %v148 = vrot.slane %v120, %v147
    %v149 = vlaneseq
    %v150 = vshrl.u32 %v149, 7
    %v151 = vsub.s32 1, %v150
    %v152 = vrot.slane %v120, %v151
    %v153 = vlaneseq
    %v154 = vshrl.u32 %v153, 7
    %v155 = vsub.s32 2, %v154
    %v156 = vrot.slane %v120, %v155
    %v168 = vunpack.c.l.b16 %v136
    %v169 = vunpack.c.l.b16 %v137
    %v170 = vunpack.c.l.b16 %v138
    %v171 = vunpack.c.l.b16 %v139
    %v172 = vunpack.c.l.b16 %v140
    %v173 = vunpack.c.l.b16 %v141
    %v174 = vunpack.c.l.b16 %v142
    %v175 = vunpack.c.l.b16 %v143
    %v176 = vpack.c.b16 %v169, %v168
    %v177 = vpack.c.b16 %v171, %v170
    %v178 = vpack.c.b16 %v173, %v172
    %v179 = vpack.c.b16 %v175, %v174
    %v184 = vunpack.c.l.b16 %v92
    %v185 = vunpack.c.h.b16 %v92
    %v186 = vunpack.c.l.b16 %v93
    %v187 = vunpack.c.l.b16 %v94
    %v188 = vunpack.c.h.b16 %v94
    %v189 = vunpack.c.l.b16 %v95
    %v190 = vpack.c.b16 %v187, %v184
    %v191 = vpack.c.b16 %v188, %v185
    %v192 = vpack.c.b16 %v189, %v186
    %vm196 = vcmask 130048
    %v198 = vsel %vm196, %v176, 0
    %v201 = vsel %vm196, %v177, 0
    %v204 = vsel %vm196, %v178, 0
    %v207 = vsel %vm196, %v179, 0
    %209 = vmatprep.subr.bf16.mxu0 %v191
    %210 = vmatpush1.bf16.msra.mxu0 %v190
    %211 = vmatprep.subr.bf16.mxu0 0
    %212 = vmatpush1.bf16.msra.mxu0 0
    %213 = vmatprep.subr.bf16.mxu0 0
    %214 = vmatpush1.bf16.msra.mxu0 0
    %215 = vmatprep.subr.bf16.mxu0 0
    %216 = vmatpush1.bf16.msra.mxu0 0
    %217 = vmatprep.subr.bf16.mxu0 0
    %218 = vmatpush1.bf16.msra.mxu0 0
    %219 = vmatprep.subr.bf16.mxu0 0
    %220 = vmatpush1.bf16.msra.mxu0 0
    %221 = vmatprep.subr.bf16.mxu0 0
    %222 = vmatpush1.bf16.msra.mxu0 0
    %223 = vmatprep.subr.bf16.mxu0 0
    %224 = vmatpush1.bf16.msra.mxu0 0
    %225 = vmatprep.subr.bf16.mxu0 0
    %226 = vmatpush1.bf16.msra.mxu0 0
    %227 = vmatprep.subr.bf16.mxu0 0
    %228 = vmatpush1.bf16.msra.mxu0 0
    %229 = vmatprep.subr.bf16.mxu0 0
    %230 = vmatpush1.bf16.msra.mxu0 0
    %231 = vmatprep.subr.bf16.mxu0 0
    %232 = vmatpush1.bf16.msra.mxu0 0
    %233 = vmatprep.subr.bf16.mxu0 0
    %234 = vmatpush1.bf16.msra.mxu0 0
    %235 = vmatprep.subr.bf16.mxu0 0
    %236 = vmatpush1.bf16.msra.mxu0 0
    %237 = vmatprep.subr.bf16.mxu0 0
    %238 = vmatpush1.bf16.msra.mxu0 0
    %239 = vmatprep.subr.bf16.mxu0 0
    %240 = vmatpush1.bf16.msra.mxu0 0
    %241 = vmatprep.mubr.bf16.mxu0 0
    %242 = vmatmul.mubr.bf16.gmra.mrb[0].mxu0 %v198
    %v243 = vpop.f32.mrb[0].mxu0
    %v244 = vadd.f32 %v148, %v243
    %v245 = vpop.f32.mrb[0].mxu0
    %v246 = vadd.f32 %v152, %v245
    %v247 = vpop.f32.mrb[0].mxu0
    %v248 = vadd.f32 %v148, %v247
    %v249 = vpop.f32.mrb[0].mxu0
    %v250 = vadd.f32 %v152, %v249
    %251 = vmatprep.mubr.bf16.mxu0 0
    %252 = vmatmul.mubr.bf16.gmra.mrb[0].mxu0 %v201
    %v253 = vpop.f32.mrb[0].mxu0
    %v254 = vadd.f32 %v148, %v253
    %v255 = vpop.f32.mrb[0].mxu0
    %v256 = vadd.f32 %v152, %v255
    %v257 = vpop.f32.mrb[0].mxu0
    %v258 = vadd.f32 %v148, %v257
    %v259 = vpop.f32.mrb[0].mxu0
    %v260 = vadd.f32 %v152, %v259
    %261 = vmatprep.mubr.bf16.mxu0 0
    %262 = vmatmul.mubr.bf16.gmra.mrb[0].mxu0 %v204
    %v263 = vpop.f32.mrb[0].mxu0
    %v264 = vadd.f32 %v148, %v263
    %v265 = vpop.f32.mrb[0].mxu0
    %v266 = vadd.f32 %v152, %v265
    %v267 = vpop.f32.mrb[0].mxu0
    %v268 = vadd.f32 %v148, %v267
    %v269 = vpop.f32.mrb[0].mxu0
    %v270 = vadd.f32 %v152, %v269
    %271 = vmatprep.mubr.bf16.mxu0 0
    %272 = vmatmul.mubr.bf16.gmra.mrb[0].mxu0 %v207
    %v273 = vpop.f32.mrb[0].mxu0
    %v274 = vadd.f32 %v148, %v273
    %v275 = vpop.f32.mrb[0].mxu0
    %v276 = vadd.f32 %v152, %v275
    %v277 = vpop.f32.mrb[0].mxu0
    %v278 = vadd.f32 %v148, %v277
    %v279 = vpop.f32.mrb[0].mxu0
    %v280 = vadd.f32 %v152, %v279
    %281 = vdwg.mxu0
    %282 = vmatprep.subr.bf16.mxu0 0
    %283 = vmatpush1.bf16.msra.mxu0 %v192
    %284 = vmatprep.subr.bf16.mxu0 0
    %285 = vmatpush1.bf16.msra.mxu0 0
    %286 = vmatprep.subr.bf16.mxu0 0
    %287 = vmatpush1.bf16.msra.mxu0 0
    %288 = vmatprep.subr.bf16.mxu0 0
    %289 = vmatpush1.bf16.msra.mxu0 0
    %290 = vmatprep.subr.bf16.mxu0 0
    %291 = vmatpush1.bf16.msra.mxu0 0
    %292 = vmatprep.subr.bf16.mxu0 0
    %293 = vmatpush1.bf16.msra.mxu0 0
    %294 = vmatprep.subr.bf16.mxu0 0
    %295 = vmatpush1.bf16.msra.mxu0 0
    %296 = vmatprep.subr.bf16.mxu0 0
    %297 = vmatpush1.bf16.msra.mxu0 0
    %298 = vmatprep.subr.bf16.mxu0 0
    %299 = vmatpush1.bf16.msra.mxu0 0
    %300 = vmatprep.subr.bf16.mxu0 0
    %301 = vmatpush1.bf16.msra.mxu0 0
    %302 = vmatprep.subr.bf16.mxu0 0
    %303 = vmatpush1.bf16.msra.mxu0 0
    %304 = vmatprep.subr.bf16.mxu0 0
    %305 = vmatpush1.bf16.msra.mxu0 0
    %306 = vmatprep.subr.bf16.mxu0 0
    %307 = vmatpush1.bf16.msra.mxu0 0
    %308 = vmatprep.subr.bf16.mxu0 0
    %309 = vmatpush1.bf16.msra.mxu0 0
    %310 = vmatprep.subr.bf16.mxu0 0
    %311 = vmatpush1.bf16.msra.mxu0 0
    %312 = vmatprep.subr.bf16.mxu0 0
    %313 = vmatpush1.bf16.msra.mxu0 0
    %314 = vmatprep.mubr.bf16.mxu0 0
    %315 = vmatmul.mubr.bf16.gmra.mrb[0].mxu0 %v198
    %v316 = vpop.f32.mrb[0].mxu0
    %v317 = vadd.f32 %v156, %v316
    %v318 = vpop.f32.mrb[0].mxu0
    %v319 = vpop.f32.mrb[0].mxu0
    %v320 = vadd.f32 %v156, %v319
    %v321 = vpop.f32.mrb[0].mxu0
    %322 = vmatprep.mubr.bf16.mxu0 0
    %323 = vmatmul.mubr.bf16.gmra.mrb[0].mxu0 %v201
    %v324 = vpop.f32.mrb[0].mxu0
    %v325 = vadd.f32 %v156, %v324
    %v326 = vpop.f32.mrb[0].mxu0
    %v327 = vpop.f32.mrb[0].mxu0
    %v328 = vadd.f32 %v156, %v327
    %v329 = vpop.f32.mrb[0].mxu0
    %330 = vmatprep.mubr.bf16.mxu0 0
    %331 = vmatmul.mubr.bf16.gmra.mrb[0].mxu0 %v204
    %v332 = vpop.f32.mrb[0].mxu0
    %v333 = vadd.f32 %v156, %v332
    %v334 = vpop.f32.mrb[0].mxu0
    %v335 = vpop.f32.mrb[0].mxu0
    %v336 = vadd.f32 %v156, %v335
    %v337 = vpop.f32.mrb[0].mxu0
    %338 = vmatprep.mubr.bf16.mxu0 0
    %339 = vmatmul.mubr.bf16.gmra.mrb[0].mxu0 %v207
    %v340 = vpop.f32.mrb[0].mxu0
    %v341 = vadd.f32 %v156, %v340
    %v342 = vpop.f32.mrb[0].mxu0
    %v343 = vpop.f32.mrb[0].mxu0
    %v344 = vadd.f32 %v156, %v343
    %v345 = vpop.f32.mrb[0].mxu0
    %346 = vdwg.mxu0
    %347 = vst [vmem:[#allocation2] sm:$0xff] %v244
    %348 = vst [vmem:[#allocation2 + $0x8] sm:$0xff] %v246
    %349 = vst [vmem:[#allocation2 + $0x10] sm:$0xff] %v317
    %350 = vst [vmem:[#allocation2 + $0x18] sm:$0xff] %v248
    %351 = vst [vmem:[#allocation2 + $0x20] sm:$0xff] %v250
    %352 = vst [vmem:[#allocation2 + $0x28] sm:$0xff] %v320
    %353 = vst [vmem:[#allocation2 + $0x30] sm:$0xff] %v254
    %354 = vst [vmem:[#allocation2 + $0x38] sm:$0xff] %v256
    %355 = vst [vmem:[#allocation2 + $0x40] sm:$0xff] %v325
    %356 = vst [vmem:[#allocation2 + $0x48] sm:$0xff] %v258
    %357 = vst [vmem:[#allocation2 + $0x50] sm:$0xff] %v260
    %358 = vst [vmem:[#allocation2 + $0x58] sm:$0xff] %v328
    %359 = vst [vmem:[#allocation2 + $0x60] sm:$0xff] %v264
    %360 = vst [vmem:[#allocation2 + $0x68] sm:$0xff] %v266
    %361 = vst [vmem:[#allocation2 + $0x70] sm:$0xff] %v333
    %362 = vst [vmem:[#allocation2 + $0x78] sm:$0xff] %v268
    %363 = vst [vmem:[#allocation2 + $0x80] sm:$0xff] %v270
    %364 = vst [vmem:[#allocation2 + $0x88] sm:$0xff] %v336
    %365 = vst [vmem:[#allocation2 + $0x90] sm:$0xff] %v274
    %366 = vst [vmem:[#allocation2 + $0x98] sm:$0xff] %v276
    %367 = vst [vmem:[#allocation2 + $0xa0] sm:$0xff] %v341
    %368 = vst [vmem:[#allocation2 + $0xa8] sm:$0xff] %v278
    %369 = vst [vmem:[#allocation2 + $0xb0] sm:$0xff] %v280
    %370 = vst [vmem:[#allocation2 + $0xb8] sm:$0xff] %v344
    %v371 = vld [vmem:[#allocation2] sm:$0xff]
    %v372 = vld [vmem:[#allocation2 + $0x8] sm:$0xff]
    %v373 = vld [vmem:[#allocation2 + $0x10] sm:$0xff]
    %v382 = vunpack.c.l.b16 %v104
    %v383 = vunpack.c.h.b16 %v104
    %v384 = vunpack.c.l.b16 %v105
    %v385 = vunpack.c.l.b16 %v106
    %v386 = vunpack.c.h.b16 %v106
    %v387 = vunpack.c.l.b16 %v107
    %v388 = vunpack.c.l.b16 %v108
    %v389 = vunpack.c.h.b16 %v108
    %v390 = vunpack.c.l.b16 %v109
    %v391 = vunpack.c.l.b16 %v110
    %v392 = vunpack.c.h.b16 %v110
    %v393 = vunpack.c.l.b16 %v111
    %v394 = vpack.c.b16 %v385, %v382
    %v395 = vpack.c.b16 %v386, %v383
    %v396 = vpack.c.b16 %v387, %v384
    %v397 = vpack.c.b16 %v391, %v388
    %v398 = vpack.c.b16 %v392, %v389
    %v399 = vpack.c.b16 %v393, %v390
    %vm406 = vcmask 261120
    %v408 = vsel %vm406, 0, 0
    %410 = vmatprep.subr.bf16.mxu0 %v395
    %411 = vmatpush1.bf16.msra.mxu0 %v394
    %412 = vmatprep.subr.bf16.mxu0 %v398
    %413 = vmatpush1.bf16.msra.mxu0 %v397
    %414 = vmatprep.subr.bf16.mxu0 0
    %415 = vmatpush1.bf16.msra.mxu0 0
    %416 = vmatprep.subr.bf16.mxu0 0
    %417 = vmatpush1.bf16.msra.mxu0 0
    %418 = vmatprep.subr.bf16.mxu0 0
    %419 = vmatpush1.bf16.msra.mxu0 0
    %420 = vmatprep.subr.bf16.mxu0 0
    %421 = vmatpush1.bf16.msra.mxu0 0
    %422 = vmatprep.subr.bf16.mxu0 0
    %423 = vmatpush1.bf16.msra.mxu0 0
    %424 = vmatprep.subr.bf16.mxu0 0
    %425 = vmatpush1.bf16.msra.mxu0 0
    %426 = vmatprep.subr.bf16.mxu0 0
    %427 = vmatpush1.bf16.msra.mxu0 0
    %428 = vmatprep.subr.bf16.mxu0 0
    %429 = vmatpush1.bf16.msra.mxu0 0
    %430 = vmatprep.subr.bf16.mxu0 0
    %431 = vmatpush1.bf16.msra.mxu0 0
    %432 = vmatprep.subr.bf16.mxu0 0
    %433 = vmatpush1.bf16.msra.mxu0 0
    %434 = vmatprep.subr.bf16.mxu0 0
    %435 = vmatpush1.bf16.msra.mxu0 0
    %436 = vmatprep.subr.bf16.mxu0 0
    %437 = vmatpush1.bf16.msra.mxu0 0
    %438 = vmatprep.subr.bf16.mxu0 0
    %439 = vmatpush1.bf16.msra.mxu0 0
    %440 = vmatprep.subr.bf16.mxu0 0
    %441 = vmatpush1.bf16.msra.mxu0 0
    %442 = vmatprep.mubr.bf16.mxu0 0
    %443 = vmatmul.mubr.bf16.gmra.mrb[0].mxu0 %v408
    %v444 = vpop.f32.mrb[0].mxu0
    %v445 = vadd.f32 0.0, %v444
    %v446 = vpop.f32.mrb[0].mxu0
    %v447 = vadd.f32 0.0, %v446
    %v448 = vpop.f32.mrb[0].mxu0
    %v449 = vpop.f32.mrb[0].mxu0
    %450 = vdwg.mxu0
    %451 = vmatprep.subr.bf16.mxu0 0
    %452 = vmatpush1.bf16.msra.mxu0 %v396
    %453 = vmatprep.subr.bf16.mxu0 0
    %454 = vmatpush1.bf16.msra.mxu0 %v399
    %455 = vmatprep.subr.bf16.mxu0 0
    %456 = vmatpush1.bf16.msra.mxu0 0
    %457 = vmatprep.subr.bf16.mxu0 0
    %458 = vmatpush1.bf16.msra.mxu0 0
    %459 = vmatprep.subr.bf16.mxu0 0
    %460 = vmatpush1.bf16.msra.mxu0 0
    %461 = vmatprep.subr.bf16.mxu0 0
    %462 = vmatpush1.bf16.msra.mxu0 0
    %463 = vmatprep.subr.bf16.mxu0 0
    %464 = vmatpush1.bf16.msra.mxu0 0
    %465 = vmatprep.subr.bf16.mxu0 0
    %466 = vmatpush1.bf16.msra.mxu0 0
    %467 = vmatprep.subr.bf16.mxu0 0
    %468 = vmatpush1.bf16.msra.mxu0 0
    %469 = vmatprep.subr.bf16.mxu0 0
    %470 = vmatpush1.bf16.msra.mxu0 0
    %471 = vmatprep.subr.bf16.mxu0 0
    %472 = vmatpush1.bf16.msra.mxu0 0
    %473 = vmatprep.subr.bf16.mxu0 0
    %474 = vmatpush1.bf16.msra.mxu0 0
    %475 = vmatprep.subr.bf16.mxu0 0
    %476 = vmatpush1.bf16.msra.mxu0 0
    %477 = vmatprep.subr.bf16.mxu0 0
    %478 = vmatpush1.bf16.msra.mxu0 0
    %479 = vmatprep.subr.bf16.mxu0 0
    %480 = vmatpush1.bf16.msra.mxu0 0
    %481 = vmatprep.subr.bf16.mxu0 0
    %482 = vmatpush1.bf16.msra.mxu0 0
    %483 = vmatprep.mubr.bf16.mxu0 0
    %484 = vmatmul.mubr.bf16.gmra.mrb[0].mxu0 %v408
    %v485 = vpop.f32.mrb[0].mxu0
    %v486 = vadd.f32 0.0, %v485
    %v487 = vpop.f32.mrb[0].mxu0
    %v488 = vpop.f32.mrb[0].mxu0
    %v489 = vpop.f32.mrb[0].mxu0
    %490 = vdwg.mxu0
    %v491 = vadd.f32 %v371, %v445
    %v492 = vxor.u32 %v491, 2147483648
    %v493 = vmul.f32 %v492, 1.442695
    %v494 = vpow.pop %v493
    %v495 = vadd.f32 %v494, 1.0
    %v496 = vrcp.pop %v495
    %v497 = vmul.f32 1.0, %v496
    %v498 = vadd.f32 %v372, %v447
    %v499 = vxor.u32 %v498, 2147483648
    %v500 = vmul.f32 %v499, 1.442695
    %v501 = vpow.pop %v500
    %v502 = vadd.f32 %v501, 1.0
    %v503 = vrcp.pop %v502
    %v504 = vmul.f32 1.0, %v503
    %v505 = vadd.f32 %v486, %v127
    %v506 = vmul.f32 %v497, %v505
    %v507 = vadd.f32 %v373, %v506
    %v508 = vtanh.pop %v507
    %v509 = vsub.f32 1.0, %v504
    %v510 = vmul.f32 %v509, %v508
    %v511 = vmul.f32 %v504, 0.0
    %v512 = vadd.f32 %v510, %v511
    %v513 = vpack.c.bf16 %v512, %v512
    %v514 = vld [vmem:[#allocation2 + $0x18] sm:$0xff]
    %v515 = vld [vmem:[#allocation2 + $0x20] sm:$0xff]
    %v516 = vld [vmem:[#allocation2 + $0x28] sm:$0xff]
    %v518 = vsel %vm406, %v513, 0
    %520 = vmatprep.subr.bf16.mxu0 %v395
    %521 = vmatpush1.bf16.msra.mxu0 %v394
    %522 = vmatprep.subr.bf16.mxu0 %v398
    %523 = vmatpush1.bf16.msra.mxu0 %v397
    %524 = vmatprep.subr.bf16.mxu0 0
    %525 = vmatpush1.bf16.msra.mxu0 0
    %526 = vmatprep.subr.bf16.mxu0 0
    %527 = vmatpush1.bf16.msra.mxu0 0
    %528 = vmatprep.subr.bf16.mxu0 0
    %529 = vmatpush1.bf16.msra.mxu0 0
    %530 = vmatprep.subr.bf16.mxu0 0
    %531 = vmatpush1.bf16.msra.mxu0 0
    %532 = vmatprep.subr.bf16.mxu0 0
    %533 = vmatpush1.bf16.msra.mxu0 0
    %534 = vmatprep.subr.bf16.mxu0 0
    %535 = vmatpush1.bf16.msra.mxu0 0
    %536 = vmatprep.subr.bf16.mxu0 0
    %537 = vmatpush1.bf16.msra.mxu0 0
    %538 = vmatprep.subr.bf16.mxu0 0
    %539 = vmatpush1.bf16.msra.mxu0 0
    %540 = vmatprep.subr.bf16.mxu0 0
    %541 = vmatpush1.bf16.msra.mxu0 0
    %542 = vmatprep.subr.bf16.mxu0 0
    %543 = vmatpush1.bf16.msra.mxu0 0
    %544 = vmatprep.subr.bf16.mxu0 0
    %545 = vmatpush1.bf16.msra.mxu0 0
    %546 = vmatprep.subr.bf16.mxu0 0
    %547 = vmatpush1.bf16.msra.mxu0 0
    %548 = vmatprep.subr.bf16.mxu0 0
    %549 = vmatpush1.bf16.msra.mxu0 0
    %550 = vmatprep.subr.bf16.mxu0 0
    %551 = vmatpush1.bf16.msra.mxu0 0
    %552 = vmatprep.mubr.bf16.mxu0 0
    %553 = vmatmul.mubr.bf16.gmra.mrb[0].mxu0 %v518
    %v554 = vpop.f32.mrb[0].mxu0
    %v555 = vadd.f32 0.0, %v554
    %v556 = vpop.f32.mrb[0].mxu0
    %v557 = vadd.f32 0.0, %v556
    %v558 = vpop.f32.mrb[0].mxu0
    %v559 = vpop.f32.mrb[0].mxu0
    %560 = vdwg.mxu0
    %561 = vmatprep.subr.bf16.mxu0 0
    %562 = vmatpush1.bf16.msra.mxu0 %v396
    %563 = vmatprep.subr.bf16.mxu0 0
    %564 = vmatpush1.bf16.msra.mxu0 %v399
    %565 = vmatprep.subr.bf16.mxu0 0
    %566 = vmatpush1.bf16.msra.mxu0 0
    %567 = vmatprep.subr.bf16.mxu0 0
    %568 = vmatpush1.bf16.msra.mxu0 0
    %569 = vmatprep.subr.bf16.mxu0 0
    %570 = vmatpush1.bf16.msra.mxu0 0
    %571 = vmatprep.subr.bf16.mxu0 0
    %572 = vmatpush1.bf16.msra.mxu0 0
    %573 = vmatprep.subr.bf16.mxu0 0
    %574 = vmatpush1.bf16.msra.mxu0 0
    %575 = vmatprep.subr.bf16.mxu0 0
    %576 = vmatpush1.bf16.msra.mxu0 0
    %577 = vmatprep.subr.bf16.mxu0 0
    %578 = vmatpush1.bf16.msra.mxu0 0
    %579 = vmatprep.subr.bf16.mxu0 0
    %580 = vmatpush1.bf16.msra.mxu0 0
    %581 = vmatprep.subr.bf16.mxu0 0
    %582 = vmatpush1.bf16.msra.mxu0 0
    %583 = vmatprep.subr.bf16.mxu0 0
    %584 = vmatpush1.bf16.msra.mxu0 0
    %585 = vmatprep.subr.bf16.mxu0 0
    %586 = vmatpush1.bf16.msra.mxu0 0
    %587 = vmatprep.subr.bf16.mxu0 0
    %588 = vmatpush1.bf16.msra.mxu0 0
    %589 = vmatprep.subr.bf16.mxu0 0
    %590 = vmatpush1.bf16.msra.mxu0 0
    %591 = vmatprep.subr.bf16.mxu0 0
    %592 = vmatpush1.bf16.msra.mxu0 0
    %593 = vmatprep.mubr.bf16.mxu0 0
    %594 = vmatmul.mubr.bf16.gmra.mrb[0].mxu0 %v518
    %v595 = vpop.f32.mrb[0].mxu0
    %v596 = vadd.f32 0.0, %v595
    %v597 = vpop.f32.mrb[0].mxu0
    %v598 = vpop.f32.mrb[0].mxu0
    %v599 = vpop.f32.mrb[0].mxu0
    %600 = vdwg.mxu0
    %v601 = vadd.f32 %v514, %v555
    %v602 = vxor.u32 %v601, 2147483648
    %v603 = vmul.f32 %v602, 1.442695
    %v604 = vpow.pop %v603
    %v605 = vadd.f32 %v604, 1.0
    %v606 = vrcp.pop %v605
    %v607 = vmul.f32 1.0, %v606
    %v608 = vadd.f32 %v515, %v557
    %v609 = vxor.u32 %v608, 2147483648
    %v610 = vmul.f32 %v609, 1.442695
    %v611 = vpow.pop %v610
    %v612 = vadd.f32 %v611, 1.0
    %v613 = vrcp.pop %v612
    %v614 = vmul.f32 1.0, %v613
    %v615 = vadd.f32 %v596, %v127
    %v616 = vmul.f32 %v607, %v615
    %v617 = vadd.f32 %v516, %v616
    %v618 = vtanh.pop %v617
    %v619 = vsub.f32 1.0, %v614
    %v620 = vmul.f32 %v619, %v618
    %v621 = vmul.f32 %v614, %v512
    %v622 = vadd.f32 %v620, %v621
    %v623 = vpack.c.bf16 %v622, %v622
    %v625 = vlaneseq
    %v626 = vshrl.u32 %v625, 7
    %v627 = vsub.s32 0, %v626
    %v628 = vrot.slane %v121, %v627
    %v629 = vlaneseq
    %v630 = vshrl.u32 %v629, 7
    %v631 = vsub.s32 1, %v630
    %v632 = vrot.slane %v121, %v631
    %v633 = vlaneseq
    %v634 = vshrl.u32 %v633, 7
    %v635 = vsub.s32 2, %v634
    %v636 = vrot.slane %v121, %v635
    %v648 = vunpack.c.l.b16 %v96
    %v649 = vunpack.c.h.b16 %v96
    %v650 = vunpack.c.l.b16 %v97
    %v651 = vunpack.c.l.b16 %v98
    %v652 = vunpack.c.h.b16 %v98
    %v653 = vunpack.c.l.b16 %v99
    %v654 = vunpack.c.l.b16 %v100
    %v655 = vunpack.c.h.b16 %v100
    %v656 = vunpack.c.l.b16 %v101
    %v657 = vunpack.c.l.b16 %v102
    %v658 = vunpack.c.h.b16 %v102
    %v659 = vunpack.c.l.b16 %v103
    %v660 = vpack.c.b16 %v651, %v648
    %v661 = vpack.c.b16 %v652, %v649
    %v662 = vpack.c.b16 %v653, %v650
    %v663 = vpack.c.b16 %v657, %v654
    %v664 = vpack.c.b16 %v658, %v655
    %v665 = vpack.c.b16 %v659, %v656
    %672 = vmatprep.subr.bf16.mxu0 %v661
    %673 = vmatpush1.bf16.msra.mxu0 %v660
    %674 = vmatprep.subr.bf16.mxu0 %v664
    %675 = vmatpush1.bf16.msra.mxu0 %v663
    %676 = vmatprep.subr.bf16.mxu0 0
    %677 = vmatpush1.bf16.msra.mxu0 0
    %678 = vmatprep.subr.bf16.mxu0 0
    %679 = vmatpush1.bf16.msra.mxu0 0
    %680 = vmatprep.subr.bf16.mxu0 0
    %681 = vmatpush1.bf16.msra.mxu0 0
    %682 = vmatprep.subr.bf16.mxu0 0
    %683 = vmatpush1.bf16.msra.mxu0 0
    %684 = vmatprep.subr.bf16.mxu0 0
    %685 = vmatpush1.bf16.msra.mxu0 0
    %686 = vmatprep.subr.bf16.mxu0 0
    %687 = vmatpush1.bf16.msra.mxu0 0
    %688 = vmatprep.subr.bf16.mxu0 0
    %689 = vmatpush1.bf16.msra.mxu0 0
    %690 = vmatprep.subr.bf16.mxu0 0
    %691 = vmatpush1.bf16.msra.mxu0 0
    %692 = vmatprep.subr.bf16.mxu0 0
    %693 = vmatpush1.bf16.msra.mxu0 0
    %694 = vmatprep.subr.bf16.mxu0 0
    %695 = vmatpush1.bf16.msra.mxu0 0
    %696 = vmatprep.subr.bf16.mxu0 0
    %697 = vmatpush1.bf16.msra.mxu0 0
    %698 = vmatprep.subr.bf16.mxu0 0
    %699 = vmatpush1.bf16.msra.mxu0 0
    %700 = vmatprep.subr.bf16.mxu0 0
    %701 = vmatpush1.bf16.msra.mxu0 0
    %702 = vmatprep.subr.bf16.mxu0 0
    %703 = vmatpush1.bf16.msra.mxu0 0
    %704 = vmatprep.mubr.bf16.mxu0 0
    %705 = vmatmul.mubr.bf16.gmra.mrb[0].mxu0 %v518
    %v706 = vpop.f32.mrb[0].mxu0
    %v707 = vadd.f32 %v628, %v706
    %v708 = vpop.f32.mrb[0].mxu0
    %v709 = vadd.f32 %v632, %v708
    %v710 = vpop.f32.mrb[0].mxu0
    %v711 = vpop.f32.mrb[0].mxu0
    %712 = vdwg.mxu0
    %713 = vmatprep.subr.bf16.mxu0 0
    %714 = vmatpush1.bf16.msra.mxu0 %v662
    %715 = vmatprep.subr.bf16.mxu0 0
    %716 = vmatpush1.bf16.msra.mxu0 %v665
    %717 = vmatprep.subr.bf16.mxu0 0
    %718 = vmatpush1.bf16.msra.mxu0 0
    %719 = vmatprep.subr.bf16.mxu0 0
    %720 = vmatpush1.bf16.msra.mxu0 0
    %721 = vmatprep.subr.bf16.mxu0 0
    %722 = vmatpush1.bf16.msra.mxu0 0
    %723 = vmatprep.subr.bf16.mxu0 0
    %724 = vmatpush1.bf16.msra.mxu0 0
    %725 = vmatprep.subr.bf16.mxu0 0
    %726 = vmatpush1.bf16.msra.mxu0 0
    %727 = vmatprep.subr.bf16.mxu0 0
    %728 = vmatpush1.bf16.msra.mxu0 0
    %729 = vmatprep.subr.bf16.mxu0 0
    %730 = vmatpush1.bf16.msra.mxu0 0
    %731 = vmatprep.subr.bf16.mxu0 0
    %732 = vmatpush1.bf16.msra.mxu0 0
    %733 = vmatprep.subr.bf16.mxu0 0
    %734 = vmatpush1.bf16.msra.mxu0 0
    %735 = vmatprep.subr.bf16.mxu0 0
    %736 = vmatpush1.bf16.msra.mxu0 0
    %737 = vmatprep.subr.bf16.mxu0 0
    %738 = vmatpush1.bf16.msra.mxu0 0
    %739 = vmatprep.subr.bf16.mxu0 0
    %740 = vmatpush1.bf16.msra.mxu0 0
    %741 = vmatprep.subr.bf16.mxu0 0
    %742 = vmatpush1.bf16.msra.mxu0 0
    %743 = vmatprep.subr.bf16.mxu0 0
    %744 = vmatpush1.bf16.msra.mxu0 0
    %745 = vmatprep.mubr.bf16.mxu0 0
    %746 = vmatmul.mubr.bf16.gmra.mrb[0].mxu0 %v518
    %v747 = vpop.f32.mrb[0].mxu0
    %v748 = vadd.f32 %v636, %v747
    %v749 = vpop.f32.mrb[0].mxu0
    %v750 = vpop.f32.mrb[0].mxu0
    %v751 = vpop.f32.mrb[0].mxu0
    %752 = vdwg.mxu0
    %v761 = vunpack.c.l.b16 %v112
    %v762 = vunpack.c.h.b16 %v112
    %v763 = vunpack.c.l.b16 %v113
    %v764 = vunpack.c.l.b16 %v114
    %v765 = vunpack.c.h.b16 %v114
    %v766 = vunpack.c.l.b16 %v115
    %v767 = vunpack.c.l.b16 %v116
    %v768 = vunpack.c.h.b16 %v116
    %v769 = vunpack.c.l.b16 %v117
    %v770 = vunpack.c.l.b16 %v118
    %v771 = vunpack.c.h.b16 %v118
    %v772 = vunpack.c.l.b16 %v119
    %v773 = vpack.c.b16 %v764, %v761
    %v774 = vpack.c.b16 %v765, %v762
    %v775 = vpack.c.b16 %v766, %v763
    %v776 = vpack.c.b16 %v770, %v767
    %v777 = vpack.c.b16 %v771, %v768
    %v778 = vpack.c.b16 %v772, %v769
    %785 = vmatprep.subr.bf16.mxu0 %v774
    %786 = vmatpush1.bf16.msra.mxu0 %v773
    %787 = vmatprep.subr.bf16.mxu0 %v777
    %788 = vmatpush1.bf16.msra.mxu0 %v776
    %789 = vmatprep.subr.bf16.mxu0 0
    %790 = vmatpush1.bf16.msra.mxu0 0
    %791 = vmatprep.subr.bf16.mxu0 0
    %792 = vmatpush1.bf16.msra.mxu0 0
    %793 = vmatprep.subr.bf16.mxu0 0
    %794 = vmatpush1.bf16.msra.mxu0 0
    %795 = vmatprep.subr.bf16.mxu0 0
    %796 = vmatpush1.bf16.msra.mxu0 0
    %797 = vmatprep.subr.bf16.mxu0 0
    %798 = vmatpush1.bf16.msra.mxu0 0
    %799 = vmatprep.subr.bf16.mxu0 0
    %800 = vmatpush1.bf16.msra.mxu0 0
    %801 = vmatprep.subr.bf16.mxu0 0
    %802 = vmatpush1.bf16.msra.mxu0 0
    %803 = vmatprep.subr.bf16.mxu0 0
    %804 = vmatpush1.bf16.msra.mxu0 0
    %805 = vmatprep.subr.bf16.mxu0 0
    %806 = vmatpush1.bf16.msra.mxu0 0
    %807 = vmatprep.subr.bf16.mxu0 0
    %808 = vmatpush1.bf16.msra.mxu0 0
    %809 = vmatprep.subr.bf16.mxu0 0
    %810 = vmatpush1.bf16.msra.mxu0 0
    %811 = vmatprep.subr.bf16.mxu0 0
    %812 = vmatpush1.bf16.msra.mxu0 0
    %813 = vmatprep.subr.bf16.mxu0 0
    %814 = vmatpush1.bf16.msra.mxu0 0
    %815 = vmatprep.subr.bf16.mxu0 0
    %816 = vmatpush1.bf16.msra.mxu0 0
    %817 = vmatprep.mubr.bf16.mxu0 0
    %818 = vmatmul.mubr.bf16.gmra.mrb[0].mxu0 %v408
    %v819 = vpop.f32.mrb[0].mxu0
    %v820 = vadd.f32 0.0, %v819
    %v821 = vpop.f32.mrb[0].mxu0
    %v822 = vadd.f32 0.0, %v821
    %v823 = vpop.f32.mrb[0].mxu0
    %v824 = vpop.f32.mrb[0].mxu0
    %825 = vdwg.mxu0
    %826 = vmatprep.subr.bf16.mxu0 0
    %827 = vmatpush1.bf16.msra.mxu0 %v775
    %828 = vmatprep.subr.bf16.mxu0 0
    %829 = vmatpush1.bf16.msra.mxu0 %v778
    %830 = vmatprep.subr.bf16.mxu0 0
    %831 = vmatpush1.bf16.msra.mxu0 0
    %832 = vmatprep.subr.bf16.mxu0 0
    %833 = vmatpush1.bf16.msra.mxu0 0
    %834 = vmatprep.subr.bf16.mxu0 0
    %835 = vmatpush1.bf16.msra.mxu0 0
    %836 = vmatprep.subr.bf16.mxu0 0
    %837 = vmatpush1.bf16.msra.mxu0 0
    %838 = vmatprep.subr.bf16.mxu0 0
    %839 = vmatpush1.bf16.msra.mxu0 0
    %840 = vmatprep.subr.bf16.mxu0 0
    %841 = vmatpush1.bf16.msra.mxu0 0
    %842 = vmatprep.subr.bf16.mxu0 0
    %843 = vmatpush1.bf16.msra.mxu0 0
    %844 = vmatprep.subr.bf16.mxu0 0
    %845 = vmatpush1.bf16.msra.mxu0 0
    %846 = vmatprep.subr.bf16.mxu0 0
    %847 = vmatpush1.bf16.msra.mxu0 0
    %848 = vmatprep.subr.bf16.mxu0 0
    %849 = vmatpush1.bf16.msra.mxu0 0
    %850 = vmatprep.subr.bf16.mxu0 0
    %851 = vmatpush1.bf16.msra.mxu0 0
    %852 = vmatprep.subr.bf16.mxu0 0
    %853 = vmatpush1.bf16.msra.mxu0 0
    %854 = vmatprep.subr.bf16.mxu0 0
    %855 = vmatpush1.bf16.msra.mxu0 0
    %856 = vmatprep.subr.bf16.mxu0 0
    %857 = vmatpush1.bf16.msra.mxu0 0
    %858 = vmatprep.mubr.bf16.mxu0 0
    %859 = vmatmul.mubr.bf16.gmra.mrb[0].mxu0 %v408
    %v860 = vpop.f32.mrb[0].mxu0
    %v861 = vadd.f32 0.0, %v860
    %v862 = vpop.f32.mrb[0].mxu0
    %v863 = vpop.f32.mrb[0].mxu0
    %v864 = vpop.f32.mrb[0].mxu0
    %865 = vdwg.mxu0
    %v866 = vadd.f32 %v707, %v820
    %v867 = vxor.u32 %v866, 2147483648
    %v868 = vmul.f32 %v867, 1.442695
    %v869 = vpow.pop %v868
    %v870 = vadd.f32 %v869, 1.0
    %v871 = vrcp.pop %v870
    %v872 = vmul.f32 1.0, %v871
    %v873 = vadd.f32 %v709, %v822
    %v874 = vxor.u32 %v873, 2147483648
    %v875 = vmul.f32 %v874, 1.442695
    %v876 = vpow.pop %v875
    %v877 = vadd.f32 %v876, 1.0
    %v878 = vrcp.pop %v877
    %v879 = vmul.f32 1.0, %v878
    %v880 = vadd.f32 %v861, %v134
    %v881 = vmul.f32 %v872, %v880
    %v882 = vadd.f32 %v748, %v881
    %v883 = vtanh.pop %v882
    %v884 = vsub.f32 1.0, %v879
    %v885 = vmul.f32 %v884, %v883
    %v886 = vmul.f32 %v879, 0.0
    %v887 = vadd.f32 %v885, %v886
    %v888 = vld [vmem:[#allocation2 + $0x30] sm:$0xff]
    %v889 = vld [vmem:[#allocation2 + $0x38] sm:$0xff]
    %v890 = vld [vmem:[#allocation2 + $0x40] sm:$0xff]
    %v892 = vsel %vm406, %v623, 0
    %894 = vmatprep.subr.bf16.mxu0 %v395
    %895 = vmatpush1.bf16.msra.mxu0 %v394
    %896 = vmatprep.subr.bf16.mxu0 %v398
    %897 = vmatpush1.bf16.msra.mxu0 %v397
    %898 = vmatprep.subr.bf16.mxu0 0
    %899 = vmatpush1.bf16.msra.mxu0 0
    %900 = vmatprep.subr.bf16.mxu0 0
    %901 = vmatpush1.bf16.msra.mxu0 0
    %902 = vmatprep.subr.bf16.mxu0 0
    %903 = vmatpush1.bf16.msra.mxu0 0
    %904 = vmatprep.subr.bf16.mxu0 0
    %905 = vmatpush1.bf16.msra.mxu0 0
    %906 = vmatprep.subr.bf16.mxu0 0
    %907 = vmatpush1.bf16.msra.mxu0 0
    %908 = vmatprep.subr.bf16.mxu0 0
    %909 = vmatpush1.bf16.msra.mxu0 0
    %910 = vmatprep.subr.bf16.mxu0 0
    %911 = vmatpush1.bf16.msra.mxu0 0
    %912 = vmatprep.subr.bf16.mxu0 0
    %913 = vmatpush1.bf16.msra.mxu0 0
    %914 = vmatprep.subr.bf16.mxu0 0
    %915 = vmatpush1.bf16.msra.mxu0 0
    %916 = vmatprep.subr.bf16.mxu0 0
    %917 = vmatpush1.bf16.msra.mxu0 0
    %918 = vmatprep.subr.bf16.mxu0 0
    %919 = vmatpush1.bf16.msra.mxu0 0
    %920 = vmatprep.subr.bf16.mxu0 0
    %921 = vmatpush1.bf16.msra.mxu0 0
    %922 = vmatprep.subr.bf16.mxu0 0
    %923 = vmatpush1.bf16.msra.mxu0 0
    %924 = vmatprep.subr.bf16.mxu0 0
    %925 = vmatpush1.bf16.msra.mxu0 0
    %926 = vmatprep.mubr.bf16.mxu0 0
    %927 = vmatmul.mubr.bf16.gmra.mrb[0].mxu0 %v892
    %v928 = vpop.f32.mrb[0].mxu0
    %v929 = vadd.f32 0.0, %v928
    %v930 = vpop.f32.mrb[0].mxu0
    %v931 = vadd.f32 0.0, %v930
    %v932 = vpop.f32.mrb[0].mxu0
    %v933 = vpop.f32.mrb[0].mxu0
    %934 = vdwg.mxu0
    %935 = vmatprep.subr.bf16.mxu0 0
    %936 = vmatpush1.bf16.msra.mxu0 %v396
    %937 = vmatprep.subr.bf16.mxu0 0
    %938 = vmatpush1.bf16.msra.mxu0 %v399
    %939 = vmatprep.subr.bf16.mxu0 0
    %940 = vmatpush1.bf16.msra.mxu0 0
    %941 = vmatprep.subr.bf16.mxu0 0
    %942 = vmatpush1.bf16.msra.mxu0 0
    %943 = vmatprep.subr.bf16.mxu0 0
    %944 = vmatpush1.bf16.msra.mxu0 0
    %945 = vmatprep.subr.bf16.mxu0 0
    %946 = vmatpush1.bf16.msra.mxu0 0
    %947 = vmatprep.subr.bf16.mxu0 0
    %948 = vmatpush1.bf16.msra.mxu0 0
    %949 = vmatprep.subr.bf16.mxu0 0
    %950 = vmatpush1.bf16.msra.mxu0 0
    %951 = vmatprep.subr.bf16.mxu0 0
    %952 = vmatpush1.bf16.msra.mxu0 0
    %953 = vmatprep.subr.bf16.mxu0 0
    %954 = vmatpush1.bf16.msra.mxu0 0
    %955 = vmatprep.subr.bf16.mxu0 0
    %956 = vmatpush1.bf16.msra.mxu0 0
    %957 = vmatprep.subr.bf16.mxu0 0
    %958 = vmatpush1.bf16.msra.mxu0 0
    %959 = vmatprep.subr.bf16.mxu0 0
    %960 = vmatpush1.bf16.msra.mxu0 0
    %961 = vmatprep.subr.bf16.mxu0 0
    %962 = vmatpush1.bf16.msra.mxu0 0
    %963 = vmatprep.subr.bf16.mxu0 0
    %964 = vmatpush1.bf16.msra.mxu0 0
    %965 = vmatprep.subr.bf16.mxu0 0
    %966 = vmatpush1.bf16.msra.mxu0 0
    %967 = vmatprep.mubr.bf16.mxu0 0
    %968 = vmatmul.mubr.bf16.gmra.mrb[0].mxu0 %v892
    %v969 = vpop.f32.mrb[0].mxu0
    %v970 = vadd.f32 0.0, %v969
    %v971 = vpop.f32.mrb[0].mxu0
    %v972 = vpop.f32.mrb[0].mxu0
    %v973 = vpop.f32.mrb[0].mxu0
    %974 = vdwg.mxu0
    %v975 = vadd.f32 %v888, %v929
    %v976 = vxor.u32 %v975, 2147483648
    %v977 = vmul.f32 %v976, 1.442695
    %v978 = vpow.pop %v977
    %v979 = vadd.f32 %v978, 1.0
    %v980 = vrcp.pop %v979
    %v981 = vmul.f32 1.0, %v980
    %v982 = vadd.f32 %v889, %v931
    %v983 = vxor.u32 %v982, 2147483648
    %v984 = vmul.f32 %v983, 1.442695
    %v985 = vpow.pop %v984
    %v986 = vadd.f32 %v985, 1.0
    %v987 = vrcp.pop %v986
    %v988 = vmul.f32 1.0, %v987
    %v989 = vadd.f32 %v970, %v127
    %v990 = vmul.f32 %v981, %v989
    %v991 = vadd.f32 %v890, %v990
    %v992 = vtanh.pop %v991
    %v993 = vsub.f32 1.0, %v988
    %v994 = vmul.f32 %v993, %v992
    %v995 = vmul.f32 %v988, %v622
    %v996 = vadd.f32 %v994, %v995
    %v997 = vpack.c.bf16 %v996, %v996
    %998 = vmatprep.subr.bf16.mxu0 %v661
    %999 = vmatpush1.bf16.msra.mxu0 %v660
    %1000 = vmatprep.subr.bf16.mxu0 %v664
    %1001 = vmatpush1.bf16.msra.mxu0 %v663
    %1002 = vmatprep.subr.bf16.mxu0 0
    %1003 = vmatpush1.bf16.msra.mxu0 0
    %1004 = vmatprep.subr.bf16.mxu0 0
    %1005 = vmatpush1.bf16.msra.mxu0 0
    %1006 = vmatprep.subr.bf16.mxu0 0
    %1007 = vmatpush1.bf16.msra.mxu0 0
    %1008 = vmatprep.subr.bf16.mxu0 0
    %1009 = vmatpush1.bf16.msra.mxu0 0
    %1010 = vmatprep.subr.bf16.mxu0 0
    %1011 = vmatpush1.bf16.msra.mxu0 0
    %1012 = vmatprep.subr.bf16.mxu0 0
    %1013 = vmatpush1.bf16.msra.mxu0 0
    %1014 = vmatprep.subr.bf16.mxu0 0
    %1015 = vmatpush1.bf16.msra.mxu0 0
    %1016 = vmatprep.subr.bf16.mxu0 0
    %1017 = vmatpush1.bf16.msra.mxu0 0
    %1018 = vmatprep.subr.bf16.mxu0 0
    %1019 = vmatpush1.bf16.msra.mxu0 0
    %1020 = vmatprep.subr.bf16.mxu0 0
    %1021 = vmatpush1.bf16.msra.mxu0 0
    %1022 = vmatprep.subr.bf16.mxu0 0
    %1023 = vmatpush1.bf16.msra.mxu0 0
    %1024 = vmatprep.subr.bf16.mxu0 0
    %1025 = vmatpush1.bf16.msra.mxu0 0
    %1026 = vmatprep.subr.bf16.mxu0 0
    %1027 = vmatpush1.bf16.msra.mxu0 0
    %1028 = vmatprep.subr.bf16.mxu0 0
    %1029 = vmatpush1.bf16.msra.mxu0 0
    %1030 = vmatprep.mubr.bf16.mxu0 0
    %1031 = vmatmul.mubr.bf16.gmra.mrb[0].mxu0 %v892
    %v1032 = vpop.f32.mrb[0].mxu0
    %v1033 = vadd.f32 %v628, %v1032
    %v1034 = vpop.f32.mrb[0].mxu0
    %v1035 = vadd.f32 %v632, %v1034
    %v1036 = vpop.f32.mrb[0].mxu0
    %v1037 = vpop.f32.mrb[0].mxu0
    %1038 = vdwg.mxu0
    %1039 = vmatprep.subr.bf16.mxu0 0
    %1040 = vmatpush1.bf16.msra.mxu0 %v662
    %1041 = vmatprep.subr.bf16.mxu0 0
    %1042 = vmatpush1.bf16.msra.mxu0 %v665
    %1043 = vmatprep.subr.bf16.mxu0 0
    %1044 = vmatpush1.bf16.msra.mxu0 0
    %1045 = vmatprep.subr.bf16.mxu0 0
    %1046 = vmatpush1.bf16.msra.mxu0 0
    %1047 = vmatprep.subr.bf16.mxu0 0
    %1048 = vmatpush1.bf16.msra.mxu0 0
    %1049 = vmatprep.subr.bf16.mxu0 0
    %1050 = vmatpush1.bf16.msra.mxu0 0
    %1051 = vmatprep.subr.bf16.mxu0 0
    %1052 = vmatpush1.bf16.msra.mxu0 0
    %1053 = vmatprep.subr.bf16.mxu0 0
    %1054 = vmatpush1.bf16.msra.mxu0 0
    %1055 = vmatprep.subr.bf16.mxu0 0
    %1056 = vmatpush1.bf16.msra.mxu0 0
    %1057 = vmatprep.subr.bf16.mxu0 0
    %1058 = vmatpush1.bf16.msra.mxu0 0
    %1059 = vmatprep.subr.bf16.mxu0 0
    %1060 = vmatpush1.bf16.msra.mxu0 0
    %1061 = vmatprep.subr.bf16.mxu0 0
    %1062 = vmatpush1.bf16.msra.mxu0 0
    %1063 = vmatprep.subr.bf16.mxu0 0
    %1064 = vmatpush1.bf16.msra.mxu0 0
    %1065 = vmatprep.subr.bf16.mxu0 0
    %1066 = vmatpush1.bf16.msra.mxu0 0
    %1067 = vmatprep.subr.bf16.mxu0 0
    %1068 = vmatpush1.bf16.msra.mxu0 0
    %1069 = vmatprep.subr.bf16.mxu0 0
    %1070 = vmatpush1.bf16.msra.mxu0 0
    %1071 = vmatprep.mubr.bf16.mxu0 0
    %1072 = vmatmul.mubr.bf16.gmra.mrb[0].mxu0 %v892
    %v1073 = vpop.f32.mrb[0].mxu0
    %v1074 = vadd.f32 %v636, %v1073
    %v1075 = vpop.f32.mrb[0].mxu0
    %v1076 = vpop.f32.mrb[0].mxu0
    %v1077 = vpop.f32.mrb[0].mxu0
    %1078 = vdwg.mxu0
    %v1079 = vpack.c.bf16 %v887, %v887
    %v1081 = vsel %vm406, %v1079, 0
    %1083 = vmatprep.subr.bf16.mxu0 %v774
    %1084 = vmatpush1.bf16.msra.mxu0 %v773
    %1085 = vmatprep.subr.bf16.mxu0 %v777
    %1086 = vmatpush1.bf16.msra.mxu0 %v776
    %1087 = vmatprep.subr.bf16.mxu0 0
    %1088 = vmatpush1.bf16.msra.mxu0 0
    %1089 = vmatprep.subr.bf16.mxu0 0
    %1090 = vmatpush1.bf16.msra.mxu0 0
    %1091 = vmatprep.subr.bf16.mxu0 0
    %1092 = vmatpush1.bf16.msra.mxu0 0
    %1093 = vmatprep.subr.bf16.mxu0 0
    %1094 = vmatpush1.bf16.msra.mxu0 0
    %1095 = vmatprep.subr.bf16.mxu0 0
    %1096 = vmatpush1.bf16.msra.mxu0 0
    %1097 = vmatprep.subr.bf16.mxu0 0
    %1098 = vmatpush1.bf16.msra.mxu0 0
    %1099 = vmatprep.subr.bf16.mxu0 0
    %1100 = vmatpush1.bf16.msra.mxu0 0
    %1101 = vmatprep.subr.bf16.mxu0 0
    %1102 = vmatpush1.bf16.msra.mxu0 0
    %1103 = vmatprep.subr.bf16.mxu0 0
    %1104 = vmatpush1.bf16.msra.mxu0 0
    %1105 = vmatprep.subr.bf16.mxu0 0
    %1106 = vmatpush1.bf16.msra.mxu0 0
    %1107 = vmatprep.subr.bf16.mxu0 0
    %1108 = vmatpush1.bf16.msra.mxu0 0
    %1109 = vmatprep.subr.bf16.mxu0 0
    %1110 = vmatpush1.bf16.msra.mxu0 0
    %1111 = vmatprep.subr.bf16.mxu0 0
    %1112 = vmatpush1.bf16.msra.mxu0 0
    %1113 = vmatprep.subr.bf16.mxu0 0
    %1114 = vmatpush1.bf16.msra.mxu0 0
    %1115 = vmatprep.mubr.bf16.mxu0 0
    %1116 = vmatmul.mubr.bf16.gmra.mrb[0].mxu0 %v1081
    %v1117 = vpop.f32.mrb[0].mxu0
    %v1118 = vadd.f32 0.0, %v1117
    %v1119 = vpop.f32.mrb[0].mxu0
    %v1120 = vadd.f32 0.0, %v1119
    %v1121 = vpop.f32.mrb[0].mxu0
    %v1122 = vpop.f32.mrb[0].mxu0
    %1123 = vdwg.mxu0
    %1124 = vmatprep.subr.bf16.mxu0 0
    %1125 = vmatpush1.bf16.msra.mxu0 %v775
    %1126 = vmatprep.subr.bf16.mxu0 0
    %1127 = vmatpush1.bf16.msra.mxu0 %v778
    %1128 = vmatprep.subr.bf16.mxu0 0
    %1129 = vmatpush1.bf16.msra.mxu0 0
    %1130 = vmatprep.subr.bf16.mxu0 0
    %1131 = vmatpush1.bf16.msra.mxu0 0
    %1132 = vmatprep.subr.bf16.mxu0 0
    %1133 = vmatpush1.bf16.msra.mxu0 0
    %1134 = vmatprep.subr.bf16.mxu0 0
    %1135 = vmatpush1.bf16.msra.mxu0 0
    %1136 = vmatprep.subr.bf16.mxu0 0
    %1137 = vmatpush1.bf16.msra.mxu0 0
    %1138 = vmatprep.subr.bf16.mxu0 0
    %1139 = vmatpush1.bf16.msra.mxu0 0
    %1140 = vmatprep.subr.bf16.mxu0 0
    %1141 = vmatpush1.bf16.msra.mxu0 0
    %1142 = vmatprep.subr.bf16.mxu0 0
    %1143 = vmatpush1.bf16.msra.mxu0 0
    %1144 = vmatprep.subr.bf16.mxu0 0
    %1145 = vmatpush1.bf16.msra.mxu0 0
    %1146 = vmatprep.subr.bf16.mxu0 0
    %1147 = vmatpush1.bf16.msra.mxu0 0
    %1148 = vmatprep.subr.bf16.mxu0 0
    %1149 = vmatpush1.bf16.msra.mxu0 0
    %1150 = vmatprep.subr.bf16.mxu0 0
    %1151 = vmatpush1.bf16.msra.mxu0 0
    %1152 = vmatprep.subr.bf16.mxu0 0
    %1153 = vmatpush1.bf16.msra.mxu0 0
    %1154 = vmatprep.subr.bf16.mxu0 0
    %1155 = vmatpush1.bf16.msra.mxu0 0
    %1156 = vmatprep.mubr.bf16.mxu0 0
    %1157 = vmatmul.mubr.bf16.gmra.mrb[0].mxu0 %v1081
    %v1158 = vpop.f32.mrb[0].mxu0
    %v1159 = vadd.f32 0.0, %v1158
    %v1160 = vpop.f32.mrb[0].mxu0
    %v1161 = vpop.f32.mrb[0].mxu0
    %v1162 = vpop.f32.mrb[0].mxu0
    %1163 = vdwg.mxu0
    %v1164 = vadd.f32 %v1033, %v1118
    %v1165 = vxor.u32 %v1164, 2147483648
    %v1166 = vmul.f32 %v1165, 1.442695
    %v1167 = vpow.pop %v1166
    %v1168 = vadd.f32 %v1167, 1.0
    %v1169 = vrcp.pop %v1168
    %v1170 = vmul.f32 1.0, %v1169
    %v1171 = vadd.f32 %v1035, %v1120
    %v1172 = vxor.u32 %v1171, 2147483648
    %v1173 = vmul.f32 %v1172, 1.442695
    %v1174 = vpow.pop %v1173
    %v1175 = vadd.f32 %v1174, 1.0
    %v1176 = vrcp.pop %v1175
    %v1177 = vmul.f32 1.0, %v1176
    %v1178 = vadd.f32 %v1159, %v134
    %v1179 = vmul.f32 %v1170, %v1178
    %v1180 = vadd.f32 %v1074, %v1179
    %v1181 = vtanh.pop %v1180
    %v1182 = vsub.f32 1.0, %v1177
    %v1183 = vmul.f32 %v1182, %v1181
    %v1184 = vmul.f32 %v1177, %v887
    %v1185 = vadd.f32 %v1183, %v1184
    %v1186 = vld [vmem:[#allocation2 + $0x48] sm:$0xff]
    %v1187 = vld [vmem:[#allocation2 + $0x50] sm:$0xff]
    %v1188 = vld [vmem:[#allocation2 + $0x58] sm:$0xff]
    %v1190 = vsel %vm406, %v997, 0
    %1192 = vmatprep.subr.bf16.mxu0 %v395
    %1193 = vmatpush1.bf16.msra.mxu0 %v394
    %1194 = vmatprep.subr.bf16.mxu0 %v398
    %1195 = vmatpush1.bf16.msra.mxu0 %v397
    %1196 = vmatprep.subr.bf16.mxu0 0
    %1197 = vmatpush1.bf16.msra.mxu0 0
    %1198 = vmatprep.subr.bf16.mxu0 0
    %1199 = vmatpush1.bf16.msra.mxu0 0
    %1200 = vmatprep.subr.bf16.mxu0 0
    %1201 = vmatpush1.bf16.msra.mxu0 0
    %1202 = vmatprep.subr.bf16.mxu0 0
    %1203 = vmatpush1.bf16.msra.mxu0 0
    %1204 = vmatprep.subr.bf16.mxu0 0
    %1205 = vmatpush1.bf16.msra.mxu0 0
    %1206 = vmatprep.subr.bf16.mxu0 0
    %1207 = vmatpush1.bf16.msra.mxu0 0
    %1208 = vmatprep.subr.bf16.mxu0 0
    %1209 = vmatpush1.bf16.msra.mxu0 0
    %1210 = vmatprep.subr.bf16.mxu0 0
    %1211 = vmatpush1.bf16.msra.mxu0 0
    %1212 = vmatprep.subr.bf16.mxu0 0
    %1213 = vmatpush1.bf16.msra.mxu0 0
    %1214 = vmatprep.subr.bf16.mxu0 0
    %1215 = vmatpush1.bf16.msra.mxu0 0
    %1216 = vmatprep.subr.bf16.mxu0 0
    %1217 = vmatpush1.bf16.msra.mxu0 0
    %1218 = vmatprep.subr.bf16.mxu0 0
    %1219 = vmatpush1.bf16.msra.mxu0 0
    %1220 = vmatprep.subr.bf16.mxu0 0
    %1221 = vmatpush1.bf16.msra.mxu0 0
    %1222 = vmatprep.subr.bf16.mxu0 0
    %1223 = vmatpush1.bf16.msra.mxu0 0
    %1224 = vmatprep.mubr.bf16.mxu0 0
    %1225 = vmatmul.mubr.bf16.gmra.mrb[0].mxu0 %v1190
    %v1226 = vpop.f32.mrb[0].mxu0
    %v1227 = vadd.f32 0.0, %v1226
    %v1228 = vpop.f32.mrb[0].mxu0
    %v1229 = vadd.f32 0.0, %v1228
    %v1230 = vpop.f32.mrb[0].mxu0
    %v1231 = vpop.f32.mrb[0].mxu0
    %1232 = vdwg.mxu0
    %1233 = vmatprep.subr.bf16.mxu0 0
    %1234 = vmatpush1.bf16.msra.mxu0 %v396
    %1235 = vmatprep.subr.bf16.mxu0 0
    %1236 = vmatpush1.bf16.msra.mxu0 %v399
    %1237 = vmatprep.subr.bf16.mxu0 0
    %1238 = vmatpush1.bf16.msra.mxu0 0
    %1239 = vmatprep.subr.bf16.mxu0 0
    %1240 = vmatpush1.bf16.msra.mxu0 0
    %1241 = vmatprep.subr.bf16.mxu0 0
    %1242 = vmatpush1.bf16.msra.mxu0 0
    %1243 = vmatprep.subr.bf16.mxu0 0
    %1244 = vmatpush1.bf16.msra.mxu0 0
    %1245 = vmatprep.subr.bf16.mxu0 0
    %1246 = vmatpush1.bf16.msra.mxu0 0
    %1247 = vmatprep.subr.bf16.mxu0 0
    %1248 = vmatpush1.bf16.msra.mxu0 0
    %1249 = vmatprep.subr.bf16.mxu0 0
    %1250 = vmatpush1.bf16.msra.mxu0 0
    %1251 = vmatprep.subr.bf16.mxu0 0
    %1252 = vmatpush1.bf16.msra.mxu0 0
    %1253 = vmatprep.subr.bf16.mxu0 0
    %1254 = vmatpush1.bf16.msra.mxu0 0
    %1255 = vmatprep.subr.bf16.mxu0 0
    %1256 = vmatpush1.bf16.msra.mxu0 0
    %1257 = vmatprep.subr.bf16.mxu0 0
    %1258 = vmatpush1.bf16.msra.mxu0 0
    %1259 = vmatprep.subr.bf16.mxu0 0
    %1260 = vmatpush1.bf16.msra.mxu0 0
    %1261 = vmatprep.subr.bf16.mxu0 0
    %1262 = vmatpush1.bf16.msra.mxu0 0
    %1263 = vmatprep.subr.bf16.mxu0 0
    %1264 = vmatpush1.bf16.msra.mxu0 0
    %1265 = vmatprep.mubr.bf16.mxu0 0
    %1266 = vmatmul.mubr.bf16.gmra.mrb[0].mxu0 %v1190
    %v1267 = vpop.f32.mrb[0].mxu0
    %v1268 = vadd.f32 0.0, %v1267
    %v1269 = vpop.f32.mrb[0].mxu0
    %v1270 = vpop.f32.mrb[0].mxu0
    %v1271 = vpop.f32.mrb[0].mxu0
    %1272 = vdwg.mxu0
    %v1273 = vadd.f32 %v1186, %v1227
    %v1274 = vxor.u32 %v1273, 2147483648
    %v1275 = vmul.f32 %v1274, 1.442695
    %v1276 = vpow.pop %v1275
    %v1277 = vadd.f32 %v1276, 1.0
    %v1278 = vrcp.pop %v1277
    %v1279 = vmul.f32 1.0, %v1278
    %v1280 = vadd.f32 %v1187, %v1229
    %v1281 = vxor.u32 %v1280, 2147483648
    %v1282 = vmul.f32 %v1281, 1.442695
    %v1283 = vpow.pop %v1282
    %v1284 = vadd.f32 %v1283, 1.0
    %v1285 = vrcp.pop %v1284
    %v1286 = vmul.f32 1.0, %v1285
    %v1287 = vadd.f32 %v1268, %v127
    %v1288 = vmul.f32 %v1279, %v1287
    %v1289 = vadd.f32 %v1188, %v1288
    %v1290 = vtanh.pop %v1289
    %v1291 = vsub.f32 1.0, %v1286
    %v1292 = vmul.f32 %v1291, %v1290
    %v1293 = vmul.f32 %v1286, %v996
    %v1294 = vadd.f32 %v1292, %v1293
    %v1295 = vpack.c.bf16 %v1294, %v1294
    %1296 = vmatprep.subr.bf16.mxu0 %v661
    %1297 = vmatpush1.bf16.msra.mxu0 %v660
    %1298 = vmatprep.subr.bf16.mxu0 %v664
    %1299 = vmatpush1.bf16.msra.mxu0 %v663
    %1300 = vmatprep.subr.bf16.mxu0 0
    %1301 = vmatpush1.bf16.msra.mxu0 0
    %1302 = vmatprep.subr.bf16.mxu0 0
    %1303 = vmatpush1.bf16.msra.mxu0 0
    %1304 = vmatprep.subr.bf16.mxu0 0
    %1305 = vmatpush1.bf16.msra.mxu0 0
    %1306 = vmatprep.subr.bf16.mxu0 0
    %1307 = vmatpush1.bf16.msra.mxu0 0
    %1308 = vmatprep.subr.bf16.mxu0 0
    %1309 = vmatpush1.bf16.msra.mxu0 0
    %1310 = vmatprep.subr.bf16.mxu0 0
    %1311 = vmatpush1.bf16.msra.mxu0 0
    %1312 = vmatprep.subr.bf16.mxu0 0
    %1313 = vmatpush1.bf16.msra.mxu0 0
    %1314 = vmatprep.subr.bf16.mxu0 0
    %1315 = vmatpush1.bf16.msra.mxu0 0
    %1316 = vmatprep.subr.bf16.mxu0 0
    %1317 = vmatpush1.bf16.msra.mxu0 0
    %1318 = vmatprep.subr.bf16.mxu0 0
    %1319 = vmatpush1.bf16.msra.mxu0 0
    %1320 = vmatprep.subr.bf16.mxu0 0
    %1321 = vmatpush1.bf16.msra.mxu0 0
    %1322 = vmatprep.subr.bf16.mxu0 0
    %1323 = vmatpush1.bf16.msra.mxu0 0
    %1324 = vmatprep.subr.bf16.mxu0 0
    %1325 = vmatpush1.bf16.msra.mxu0 0
    %1326 = vmatprep.subr.bf16.mxu0 0
    %1327 = vmatpush1.bf16.msra.mxu0 0
    %1328 = vmatprep.mubr.bf16.mxu0 0
    %1329 = vmatmul.mubr.bf16.gmra.mrb[0].mxu0 %v1190
    %v1330 = vpop.f32.mrb[0].mxu0
    %v1331 = vadd.f32 %v628, %v1330
    %v1332 = vpop.f32.mrb[0].mxu0
    %v1333 = vadd.f32 %v632, %v1332
    %v1334 = vpop.f32.mrb[0].mxu0
    %v1335 = vpop.f32.mrb[0].mxu0
    %1336 = vdwg.mxu0
    %1337 = vmatprep.subr.bf16.mxu0 0
    %1338 = vmatpush1.bf16.msra.mxu0 %v662
    %1339 = vmatprep.subr.bf16.mxu0 0
    %1340 = vmatpush1.bf16.msra.mxu0 %v665
    %1341 = vmatprep.subr.bf16.mxu0 0
    %1342 = vmatpush1.bf16.msra.mxu0 0
    %1343 = vmatprep.subr.bf16.mxu0 0
    %1344 = vmatpush1.bf16.msra.mxu0 0
    %1345 = vmatprep.subr.bf16.mxu0 0
    %1346 = vmatpush1.bf16.msra.mxu0 0
    %1347 = vmatprep.subr.bf16.mxu0 0
    %1348 = vmatpush1.bf16.msra.mxu0 0
    %1349 = vmatprep.subr.bf16.mxu0 0
    %1350 = vmatpush1.bf16.msra.mxu0 0
    %1351 = vmatprep.subr.bf16.mxu0 0
    %1352 = vmatpush1.bf16.msra.mxu0 0
    %1353 = vmatprep.subr.bf16.mxu0 0
    %1354 = vmatpush1.bf16.msra.mxu0 0
    %1355 = vmatprep.subr.bf16.mxu0 0
    %1356 = vmatpush1.bf16.msra.mxu0 0
    %1357 = vmatprep.subr.bf16.mxu0 0
    %1358 = vmatpush1.bf16.msra.mxu0 0
    %1359 = vmatprep.subr.bf16.mxu0 0
    %1360 = vmatpush1.bf16.msra.mxu0 0
    %1361 = vmatprep.subr.bf16.mxu0 0
    %1362 = vmatpush1.bf16.msra.mxu0 0
    %1363 = vmatprep.subr.bf16.mxu0 0
    %1364 = vmatpush1.bf16.msra.mxu0 0
    %1365 = vmatprep.subr.bf16.mxu0 0
    %1366 = vmatpush1.bf16.msra.mxu0 0
    %1367 = vmatprep.subr.bf16.mxu0 0
    %1368 = vmatpush1.bf16.msra.mxu0 0
    %1369 = vmatprep.mubr.bf16.mxu0 0
    %1370 = vmatmul.mubr.bf16.gmra.mrb[0].mxu0 %v1190
    %v1371 = vpop.f32.mrb[0].mxu0
    %v1372 = vadd.f32 %v636, %v1371
    %v1373 = vpop.f32.mrb[0].mxu0
    %v1374 = vpop.f32.mrb[0].mxu0
    %v1375 = vpop.f32.mrb[0].mxu0
    %1376 = vdwg.mxu0
    %v1377 = vpack.c.bf16 %v1185, %v1185
    %v1379 = vsel %vm406, %v1377, 0
    %1381 = vmatprep.subr.bf16.mxu0 %v774
    %1382 = vmatpush1.bf16.msra.mxu0 %v773
    %1383 = vmatprep.subr.bf16.mxu0 %v777
    %1384 = vmatpush1.bf16.msra.mxu0 %v776
    %1385 = vmatprep.subr.bf16.mxu0 0
    %1386 = vmatpush1.bf16.msra.mxu0 0
    %1387 = vmatprep.subr.bf16.mxu0 0
    %1388 = vmatpush1.bf16.msra.mxu0 0
    %1389 = vmatprep.subr.bf16.mxu0 0
    %1390 = vmatpush1.bf16.msra.mxu0 0
    %1391 = vmatprep.subr.bf16.mxu0 0
    %1392 = vmatpush1.bf16.msra.mxu0 0
    %1393 = vmatprep.subr.bf16.mxu0 0
    %1394 = vmatpush1.bf16.msra.mxu0 0
    %1395 = vmatprep.subr.bf16.mxu0 0
    %1396 = vmatpush1.bf16.msra.mxu0 0
    %1397 = vmatprep.subr.bf16.mxu0 0
    %1398 = vmatpush1.bf16.msra.mxu0 0
    %1399 = vmatprep.subr.bf16.mxu0 0
    %1400 = vmatpush1.bf16.msra.mxu0 0
    %1401 = vmatprep.subr.bf16.mxu0 0
    %1402 = vmatpush1.bf16.msra.mxu0 0
    %1403 = vmatprep.subr.bf16.mxu0 0
    %1404 = vmatpush1.bf16.msra.mxu0 0
    %1405 = vmatprep.subr.bf16.mxu0 0
    %1406 = vmatpush1.bf16.msra.mxu0 0
    %1407 = vmatprep.subr.bf16.mxu0 0
    %1408 = vmatpush1.bf16.msra.mxu0 0
    %1409 = vmatprep.subr.bf16.mxu0 0
    %1410 = vmatpush1.bf16.msra.mxu0 0
    %1411 = vmatprep.subr.bf16.mxu0 0
    %1412 = vmatpush1.bf16.msra.mxu0 0
    %1413 = vmatprep.mubr.bf16.mxu0 0
    %1414 = vmatmul.mubr.bf16.gmra.mrb[0].mxu0 %v1379
    %v1415 = vpop.f32.mrb[0].mxu0
    %v1416 = vadd.f32 0.0, %v1415
    %v1417 = vpop.f32.mrb[0].mxu0
    %v1418 = vadd.f32 0.0, %v1417
    %v1419 = vpop.f32.mrb[0].mxu0
    %v1420 = vpop.f32.mrb[0].mxu0
    %1421 = vdwg.mxu0
    %1422 = vmatprep.subr.bf16.mxu0 0
    %1423 = vmatpush1.bf16.msra.mxu0 %v775
    %1424 = vmatprep.subr.bf16.mxu0 0
    %1425 = vmatpush1.bf16.msra.mxu0 %v778
    %1426 = vmatprep.subr.bf16.mxu0 0
    %1427 = vmatpush1.bf16.msra.mxu0 0
    %1428 = vmatprep.subr.bf16.mxu0 0
    %1429 = vmatpush1.bf16.msra.mxu0 0
    %1430 = vmatprep.subr.bf16.mxu0 0
    %1431 = vmatpush1.bf16.msra.mxu0 0
    %1432 = vmatprep.subr.bf16.mxu0 0
    %1433 = vmatpush1.bf16.msra.mxu0 0
    %1434 = vmatprep.subr.bf16.mxu0 0
    %1435 = vmatpush1.bf16.msra.mxu0 0
    %1436 = vmatprep.subr.bf16.mxu0 0
    %1437 = vmatpush1.bf16.msra.mxu0 0
    %1438 = vmatprep.subr.bf16.mxu0 0
    %1439 = vmatpush1.bf16.msra.mxu0 0
    %1440 = vmatprep.subr.bf16.mxu0 0
    %1441 = vmatpush1.bf16.msra.mxu0 0
    %1442 = vmatprep.subr.bf16.mxu0 0
    %1443 = vmatpush1.bf16.msra.mxu0 0
    %1444 = vmatprep.subr.bf16.mxu0 0
    %1445 = vmatpush1.bf16.msra.mxu0 0
    %1446 = vmatprep.subr.bf16.mxu0 0
    %1447 = vmatpush1.bf16.msra.mxu0 0
    %1448 = vmatprep.subr.bf16.mxu0 0
    %1449 = vmatpush1.bf16.msra.mxu0 0
    %1450 = vmatprep.subr.bf16.mxu0 0
    %1451 = vmatpush1.bf16.msra.mxu0 0
    %1452 = vmatprep.subr.bf16.mxu0 0
    %1453 = vmatpush1.bf16.msra.mxu0 0
    %1454 = vmatprep.mubr.bf16.mxu0 0
    %1455 = vmatmul.mubr.bf16.gmra.mrb[0].mxu0 %v1379
    %v1456 = vpop.f32.mrb[0].mxu0
    %v1457 = vadd.f32 0.0, %v1456
    %v1458 = vpop.f32.mrb[0].mxu0
    %v1459 = vpop.f32.mrb[0].mxu0
    %v1460 = vpop.f32.mrb[0].mxu0
    %1461 = vdwg.mxu0
    %v1462 = vadd.f32 %v1331, %v1416
    %v1463 = vxor.u32 %v1462, 2147483648
    %v1464 = vmul.f32 %v1463, 1.442695
    %v1465 = vpow.pop %v1464
    %v1466 = vadd.f32 %v1465, 1.0
    %v1467 = vrcp.pop %v1466
    %v1468 = vmul.f32 1.0, %v1467
    %v1469 = vadd.f32 %v1333, %v1418
    %v1470 = vxor.u32 %v1469, 2147483648
    %v1471 = vmul.f32 %v1470, 1.442695
    %v1472 = vpow.pop %v1471
    %v1473 = vadd.f32 %v1472, 1.0
    %v1474 = vrcp.pop %v1473
    %v1475 = vmul.f32 1.0, %v1474
    %v1476 = vadd.f32 %v1457, %v134
    %v1477 = vmul.f32 %v1468, %v1476
    %v1478 = vadd.f32 %v1372, %v1477
    %v1479 = vtanh.pop %v1478
    %v1480 = vsub.f32 1.0, %v1475
    %v1481 = vmul.f32 %v1480, %v1479
    %v1482 = vmul.f32 %v1475, %v1185
    %v1483 = vadd.f32 %v1481, %v1482
    %v1484 = vld [vmem:[#allocation2 + $0x60] sm:$0xff]
    %v1485 = vld [vmem:[#allocation2 + $0x68] sm:$0xff]
    %v1486 = vld [vmem:[#allocation2 + $0x70] sm:$0xff]
    %v1488 = vsel %vm406, %v1295, 0
    %1490 = vmatprep.subr.bf16.mxu0 %v395
    %1491 = vmatpush1.bf16.msra.mxu0 %v394
    %1492 = vmatprep.subr.bf16.mxu0 %v398
    %1493 = vmatpush1.bf16.msra.mxu0 %v397
    %1494 = vmatprep.subr.bf16.mxu0 0
    %1495 = vmatpush1.bf16.msra.mxu0 0
    %1496 = vmatprep.subr.bf16.mxu0 0
    %1497 = vmatpush1.bf16.msra.mxu0 0
    %1498 = vmatprep.subr.bf16.mxu0 0
    %1499 = vmatpush1.bf16.msra.mxu0 0
    %1500 = vmatprep.subr.bf16.mxu0 0
    %1501 = vmatpush1.bf16.msra.mxu0 0
    %1502 = vmatprep.subr.bf16.mxu0 0
    %1503 = vmatpush1.bf16.msra.mxu0 0
    %1504 = vmatprep.subr.bf16.mxu0 0
    %1505 = vmatpush1.bf16.msra.mxu0 0
    %1506 = vmatprep.subr.bf16.mxu0 0
    %1507 = vmatpush1.bf16.msra.mxu0 0
    %1508 = vmatprep.subr.bf16.mxu0 0
    %1509 = vmatpush1.bf16.msra.mxu0 0
    %1510 = vmatprep.subr.bf16.mxu0 0
    %1511 = vmatpush1.bf16.msra.mxu0 0
    %1512 = vmatprep.subr.bf16.mxu0 0
    %1513 = vmatpush1.bf16.msra.mxu0 0
    %1514 = vmatprep.subr.bf16.mxu0 0
    %1515 = vmatpush1.bf16.msra.mxu0 0
    %1516 = vmatprep.subr.bf16.mxu0 0
    %1517 = vmatpush1.bf16.msra.mxu0 0
    %1518 = vmatprep.subr.bf16.mxu0 0
    %1519 = vmatpush1.bf16.msra.mxu0 0
    %1520 = vmatprep.subr.bf16.mxu0 0
    %1521 = vmatpush1.bf16.msra.mxu0 0
    %1522 = vmatprep.mubr.bf16.mxu0 0
    %1523 = vmatmul.mubr.bf16.gmra.mrb[0].mxu0 %v1488
    %v1524 = vpop.f32.mrb[0].mxu0
    %v1525 = vadd.f32 0.0, %v1524
    %v1526 = vpop.f32.mrb[0].mxu0
    %v1527 = vadd.f32 0.0, %v1526
    %v1528 = vpop.f32.mrb[0].mxu0
    %v1529 = vpop.f32.mrb[0].mxu0
    %1530 = vdwg.mxu0
    %1531 = vmatprep.subr.bf16.mxu0 0
    %1532 = vmatpush1.bf16.msra.mxu0 %v396
    %1533 = vmatprep.subr.bf16.mxu0 0
    %1534 = vmatpush1.bf16.msra.mxu0 %v399
    %1535 = vmatprep.subr.bf16.mxu0 0
    %1536 = vmatpush1.bf16.msra.mxu0 0
    %1537 = vmatprep.subr.bf16.mxu0 0
    %1538 = vmatpush1.bf16.msra.mxu0 0
    %1539 = vmatprep.subr.bf16.mxu0 0
    %1540 = vmatpush1.bf16.msra.mxu0 0
    %1541 = vmatprep.subr.bf16.mxu0 0
    %1542 = vmatpush1.bf16.msra.mxu0 0
    %1543 = vmatprep.subr.bf16.mxu0 0
    %1544 = vmatpush1.bf16.msra.mxu0 0
    %1545 = vmatprep.subr.bf16.mxu0 0
    %1546 = vmatpush1.bf16.msra.mxu0 0
    %1547 = vmatprep.subr.bf16.mxu0 0
    %1548 = vmatpush1.bf16.msra.mxu0 0
    %1549 = vmatprep.subr.bf16.mxu0 0
    %1550 = vmatpush1.bf16.msra.mxu0 0
    %1551 = vmatprep.subr.bf16.mxu0 0
    %1552 = vmatpush1.bf16.msra.mxu0 0
    %1553 = vmatprep.subr.bf16.mxu0 0
    %1554 = vmatpush1.bf16.msra.mxu0 0
    %1555 = vmatprep.subr.bf16.mxu0 0
    %1556 = vmatpush1.bf16.msra.mxu0 0
    %1557 = vmatprep.subr.bf16.mxu0 0
    %1558 = vmatpush1.bf16.msra.mxu0 0
    %1559 = vmatprep.subr.bf16.mxu0 0
    %1560 = vmatpush1.bf16.msra.mxu0 0
    %1561 = vmatprep.subr.bf16.mxu0 0
    %1562 = vmatpush1.bf16.msra.mxu0 0
    %1563 = vmatprep.mubr.bf16.mxu0 0
    %1564 = vmatmul.mubr.bf16.gmra.mrb[0].mxu0 %v1488
    %v1565 = vpop.f32.mrb[0].mxu0
    %v1566 = vadd.f32 0.0, %v1565
    %v1567 = vpop.f32.mrb[0].mxu0
    %v1568 = vpop.f32.mrb[0].mxu0
    %v1569 = vpop.f32.mrb[0].mxu0
    %1570 = vdwg.mxu0
    %v1571 = vadd.f32 %v1484, %v1525
    %v1572 = vxor.u32 %v1571, 2147483648
    %v1573 = vmul.f32 %v1572, 1.442695
    %v1574 = vpow.pop %v1573
    %v1575 = vadd.f32 %v1574, 1.0
    %v1576 = vrcp.pop %v1575
    %v1577 = vmul.f32 1.0, %v1576
    %v1578 = vadd.f32 %v1485, %v1527
    %v1579 = vxor.u32 %v1578, 2147483648
    %v1580 = vmul.f32 %v1579, 1.442695
    %v1581 = vpow.pop %v1580
    %v1582 = vadd.f32 %v1581, 1.0
    %v1583 = vrcp.pop %v1582
    %v1584 = vmul.f32 1.0, %v1583
    %v1585 = vadd.f32 %v1566, %v127
    %v1586 = vmul.f32 %v1577, %v1585
    %v1587 = vadd.f32 %v1486, %v1586
    %v1588 = vtanh.pop %v1587
    %v1589 = vsub.f32 1.0, %v1584
    %v1590 = vmul.f32 %v1589, %v1588
    %v1591 = vmul.f32 %v1584, %v1294
    %v1592 = vadd.f32 %v1590, %v1591
    %v1593 = vpack.c.bf16 %v1592, %v1592
    %1594 = vmatprep.subr.bf16.mxu0 %v661
    %1595 = vmatpush1.bf16.msra.mxu0 %v660
    %1596 = vmatprep.subr.bf16.mxu0 %v664
    %1597 = vmatpush1.bf16.msra.mxu0 %v663
    %1598 = vmatprep.subr.bf16.mxu0 0
    %1599 = vmatpush1.bf16.msra.mxu0 0
    %1600 = vmatprep.subr.bf16.mxu0 0
    %1601 = vmatpush1.bf16.msra.mxu0 0
    %1602 = vmatprep.subr.bf16.mxu0 0
    %1603 = vmatpush1.bf16.msra.mxu0 0
    %1604 = vmatprep.subr.bf16.mxu0 0
    %1605 = vmatpush1.bf16.msra.mxu0 0
    %1606 = vmatprep.subr.bf16.mxu0 0
    %1607 = vmatpush1.bf16.msra.mxu0 0
    %1608 = vmatprep.subr.bf16.mxu0 0
    %1609 = vmatpush1.bf16.msra.mxu0 0
    %1610 = vmatprep.subr.bf16.mxu0 0
    %1611 = vmatpush1.bf16.msra.mxu0 0
    %1612 = vmatprep.subr.bf16.mxu0 0
    %1613 = vmatpush1.bf16.msra.mxu0 0
    %1614 = vmatprep.subr.bf16.mxu0 0
    %1615 = vmatpush1.bf16.msra.mxu0 0
    %1616 = vmatprep.subr.bf16.mxu0 0
    %1617 = vmatpush1.bf16.msra.mxu0 0
    %1618 = vmatprep.subr.bf16.mxu0 0
    %1619 = vmatpush1.bf16.msra.mxu0 0
    %1620 = vmatprep.subr.bf16.mxu0 0
    %1621 = vmatpush1.bf16.msra.mxu0 0
    %1622 = vmatprep.subr.bf16.mxu0 0
    %1623 = vmatpush1.bf16.msra.mxu0 0
    %1624 = vmatprep.subr.bf16.mxu0 0
    %1625 = vmatpush1.bf16.msra.mxu0 0
    %1626 = vmatprep.mubr.bf16.mxu0 0
    %1627 = vmatmul.mubr.bf16.gmra.mrb[0].mxu0 %v1488
    %v1628 = vpop.f32.mrb[0].mxu0
    %v1629 = vadd.f32 %v628, %v1628
    %v1630 = vpop.f32.mrb[0].mxu0
    %v1631 = vadd.f32 %v632, %v1630
    %v1632 = vpop.f32.mrb[0].mxu0
    %v1633 = vpop.f32.mrb[0].mxu0
    %1634 = vdwg.mxu0
    %1635 = vmatprep.subr.bf16.mxu0 0
    %1636 = vmatpush1.bf16.msra.mxu0 %v662
    %1637 = vmatprep.subr.bf16.mxu0 0
    %1638 = vmatpush1.bf16.msra.mxu0 %v665
    %1639 = vmatprep.subr.bf16.mxu0 0
    %1640 = vmatpush1.bf16.msra.mxu0 0
    %1641 = vmatprep.subr.bf16.mxu0 0
    %1642 = vmatpush1.bf16.msra.mxu0 0
    %1643 = vmatprep.subr.bf16.mxu0 0
    %1644 = vmatpush1.bf16.msra.mxu0 0
    %1645 = vmatprep.subr.bf16.mxu0 0
    %1646 = vmatpush1.bf16.msra.mxu0 0
    %1647 = vmatprep.subr.bf16.mxu0 0
    %1648 = vmatpush1.bf16.msra.mxu0 0
    %1649 = vmatprep.subr.bf16.mxu0 0
    %1650 = vmatpush1.bf16.msra.mxu0 0
    %1651 = vmatprep.subr.bf16.mxu0 0
    %1652 = vmatpush1.bf16.msra.mxu0 0
    %1653 = vmatprep.subr.bf16.mxu0 0
    %1654 = vmatpush1.bf16.msra.mxu0 0
    %1655 = vmatprep.subr.bf16.mxu0 0
    %1656 = vmatpush1.bf16.msra.mxu0 0
    %1657 = vmatprep.subr.bf16.mxu0 0
    %1658 = vmatpush1.bf16.msra.mxu0 0
    %1659 = vmatprep.subr.bf16.mxu0 0
    %1660 = vmatpush1.bf16.msra.mxu0 0
    %1661 = vmatprep.subr.bf16.mxu0 0
    %1662 = vmatpush1.bf16.msra.mxu0 0
    %1663 = vmatprep.subr.bf16.mxu0 0
    %1664 = vmatpush1.bf16.msra.mxu0 0
    %1665 = vmatprep.subr.bf16.mxu0 0
    %1666 = vmatpush1.bf16.msra.mxu0 0
    %1667 = vmatprep.mubr.bf16.mxu0 0
    %1668 = vmatmul.mubr.bf16.gmra.mrb[0].mxu0 %v1488
    %v1669 = vpop.f32.mrb[0].mxu0
    %v1670 = vadd.f32 %v636, %v1669
    %v1671 = vpop.f32.mrb[0].mxu0
    %v1672 = vpop.f32.mrb[0].mxu0
    %v1673 = vpop.f32.mrb[0].mxu0
    %1674 = vdwg.mxu0
    %v1675 = vpack.c.bf16 %v1483, %v1483
    %v1677 = vsel %vm406, %v1675, 0
    %1679 = vmatprep.subr.bf16.mxu0 %v774
    %1680 = vmatpush1.bf16.msra.mxu0 %v773
    %1681 = vmatprep.subr.bf16.mxu0 %v777
    %1682 = vmatpush1.bf16.msra.mxu0 %v776
    %1683 = vmatprep.subr.bf16.mxu0 0
    %1684 = vmatpush1.bf16.msra.mxu0 0
    %1685 = vmatprep.subr.bf16.mxu0 0
    %1686 = vmatpush1.bf16.msra.mxu0 0
    %1687 = vmatprep.subr.bf16.mxu0 0
    %1688 = vmatpush1.bf16.msra.mxu0 0
    %1689 = vmatprep.subr.bf16.mxu0 0
    %1690 = vmatpush1.bf16.msra.mxu0 0
    %1691 = vmatprep.subr.bf16.mxu0 0
    %1692 = vmatpush1.bf16.msra.mxu0 0
    %1693 = vmatprep.subr.bf16.mxu0 0
    %1694 = vmatpush1.bf16.msra.mxu0 0
    %1695 = vmatprep.subr.bf16.mxu0 0
    %1696 = vmatpush1.bf16.msra.mxu0 0
    %1697 = vmatprep.subr.bf16.mxu0 0
    %1698 = vmatpush1.bf16.msra.mxu0 0
    %1699 = vmatprep.subr.bf16.mxu0 0
    %1700 = vmatpush1.bf16.msra.mxu0 0
    %1701 = vmatprep.subr.bf16.mxu0 0
    %1702 = vmatpush1.bf16.msra.mxu0 0
    %1703 = vmatprep.subr.bf16.mxu0 0
    %1704 = vmatpush1.bf16.msra.mxu0 0
    %1705 = vmatprep.subr.bf16.mxu0 0
    %1706 = vmatpush1.bf16.msra.mxu0 0
    %1707 = vmatprep.subr.bf16.mxu0 0
    %1708 = vmatpush1.bf16.msra.mxu0 0
    %1709 = vmatprep.subr.bf16.mxu0 0
    %1710 = vmatpush1.bf16.msra.mxu0 0
    %1711 = vmatprep.mubr.bf16.mxu0 0
    %1712 = vmatmul.mubr.bf16.gmra.mrb[0].mxu0 %v1677
    %v1713 = vpop.f32.mrb[0].mxu0
    %v1714 = vadd.f32 0.0, %v1713
    %v1715 = vpop.f32.mrb[0].mxu0
    %v1716 = vadd.f32 0.0, %v1715
    %v1717 = vpop.f32.mrb[0].mxu0
    %v1718 = vpop.f32.mrb[0].mxu0
    %1719 = vdwg.mxu0
    %1720 = vmatprep.subr.bf16.mxu0 0
    %1721 = vmatpush1.bf16.msra.mxu0 %v775
    %1722 = vmatprep.subr.bf16.mxu0 0
    %1723 = vmatpush1.bf16.msra.mxu0 %v778
    %1724 = vmatprep.subr.bf16.mxu0 0
    %1725 = vmatpush1.bf16.msra.mxu0 0
    %1726 = vmatprep.subr.bf16.mxu0 0
    %1727 = vmatpush1.bf16.msra.mxu0 0
    %1728 = vmatprep.subr.bf16.mxu0 0
    %1729 = vmatpush1.bf16.msra.mxu0 0
    %1730 = vmatprep.subr.bf16.mxu0 0
    %1731 = vmatpush1.bf16.msra.mxu0 0
    %1732 = vmatprep.subr.bf16.mxu0 0
    %1733 = vmatpush1.bf16.msra.mxu0 0
    %1734 = vmatprep.subr.bf16.mxu0 0
    %1735 = vmatpush1.bf16.msra.mxu0 0
    %1736 = vmatprep.subr.bf16.mxu0 0
    %1737 = vmatpush1.bf16.msra.mxu0 0
    %1738 = vmatprep.subr.bf16.mxu0 0
    %1739 = vmatpush1.bf16.msra.mxu0 0
    %1740 = vmatprep.subr.bf16.mxu0 0
    %1741 = vmatpush1.bf16.msra.mxu0 0
    %1742 = vmatprep.subr.bf16.mxu0 0
    %1743 = vmatpush1.bf16.msra.mxu0 0
    %1744 = vmatprep.subr.bf16.mxu0 0
    %1745 = vmatpush1.bf16.msra.mxu0 0
    %1746 = vmatprep.subr.bf16.mxu0 0
    %1747 = vmatpush1.bf16.msra.mxu0 0
    %1748 = vmatprep.subr.bf16.mxu0 0
    %1749 = vmatpush1.bf16.msra.mxu0 0
    %1750 = vmatprep.subr.bf16.mxu0 0
    %1751 = vmatpush1.bf16.msra.mxu0 0
    %1752 = vmatprep.mubr.bf16.mxu0 0
    %1753 = vmatmul.mubr.bf16.gmra.mrb[0].mxu0 %v1677
    %v1754 = vpop.f32.mrb[0].mxu0
    %v1755 = vadd.f32 0.0, %v1754
    %v1756 = vpop.f32.mrb[0].mxu0
    %v1757 = vpop.f32.mrb[0].mxu0
    %v1758 = vpop.f32.mrb[0].mxu0
    %1759 = vdwg.mxu0
    %v1760 = vadd.f32 %v1629, %v1714
    %v1761 = vxor.u32 %v1760, 2147483648
    %v1762 = vmul.f32 %v1761, 1.442695
    %v1763 = vpow.pop %v1762
    %v1764 = vadd.f32 %v1763, 1.0
    %v1765 = vrcp.pop %v1764
    %v1766 = vmul.f32 1.0, %v1765
    %v1767 = vadd.f32 %v1631, %v1716
    %v1768 = vxor.u32 %v1767, 2147483648
    %v1769 = vmul.f32 %v1768, 1.442695
    %v1770 = vpow.pop %v1769
    %v1771 = vadd.f32 %v1770, 1.0
    %v1772 = vrcp.pop %v1771
    %v1773 = vmul.f32 1.0, %v1772
    %v1774 = vadd.f32 %v1755, %v134
    %v1775 = vmul.f32 %v1766, %v1774
    %v1776 = vadd.f32 %v1670, %v1775
    %v1777 = vtanh.pop %v1776
    %v1778 = vsub.f32 1.0, %v1773
    %v1779 = vmul.f32 %v1778, %v1777
    %v1780 = vmul.f32 %v1773, %v1483
    %v1781 = vadd.f32 %v1779, %v1780
    %v1782 = vld [vmem:[#allocation2 + $0x78] sm:$0xff]
    %v1783 = vld [vmem:[#allocation2 + $0x80] sm:$0xff]
    %v1784 = vld [vmem:[#allocation2 + $0x88] sm:$0xff]
    %v1786 = vsel %vm406, %v1593, 0
    %1788 = vmatprep.subr.bf16.mxu0 %v395
    %1789 = vmatpush1.bf16.msra.mxu0 %v394
    %1790 = vmatprep.subr.bf16.mxu0 %v398
    %1791 = vmatpush1.bf16.msra.mxu0 %v397
    %1792 = vmatprep.subr.bf16.mxu0 0
    %1793 = vmatpush1.bf16.msra.mxu0 0
    %1794 = vmatprep.subr.bf16.mxu0 0
    %1795 = vmatpush1.bf16.msra.mxu0 0
    %1796 = vmatprep.subr.bf16.mxu0 0
    %1797 = vmatpush1.bf16.msra.mxu0 0
    %1798 = vmatprep.subr.bf16.mxu0 0
    %1799 = vmatpush1.bf16.msra.mxu0 0
    %1800 = vmatprep.subr.bf16.mxu0 0
    %1801 = vmatpush1.bf16.msra.mxu0 0
    %1802 = vmatprep.subr.bf16.mxu0 0
    %1803 = vmatpush1.bf16.msra.mxu0 0
    %1804 = vmatprep.subr.bf16.mxu0 0
    %1805 = vmatpush1.bf16.msra.mxu0 0
    %1806 = vmatprep.subr.bf16.mxu0 0
    %1807 = vmatpush1.bf16.msra.mxu0 0
    %1808 = vmatprep.subr.bf16.mxu0 0
    %1809 = vmatpush1.bf16.msra.mxu0 0
    %1810 = vmatprep.subr.bf16.mxu0 0
    %1811 = vmatpush1.bf16.msra.mxu0 0
    %1812 = vmatprep.subr.bf16.mxu0 0
    %1813 = vmatpush1.bf16.msra.mxu0 0
    %1814 = vmatprep.subr.bf16.mxu0 0
    %1815 = vmatpush1.bf16.msra.mxu0 0
    %1816 = vmatprep.subr.bf16.mxu0 0
    %1817 = vmatpush1.bf16.msra.mxu0 0
    %1818 = vmatprep.subr.bf16.mxu0 0
    %1819 = vmatpush1.bf16.msra.mxu0 0
    %1820 = vmatprep.mubr.bf16.mxu0 0
    %1821 = vmatmul.mubr.bf16.gmra.mrb[0].mxu0 %v1786
    %v1822 = vpop.f32.mrb[0].mxu0
    %v1823 = vadd.f32 0.0, %v1822
    %v1824 = vpop.f32.mrb[0].mxu0
    %v1825 = vadd.f32 0.0, %v1824
    %v1826 = vpop.f32.mrb[0].mxu0
    %v1827 = vpop.f32.mrb[0].mxu0
    %1828 = vdwg.mxu0
    %1829 = vmatprep.subr.bf16.mxu0 0
    %1830 = vmatpush1.bf16.msra.mxu0 %v396
    %1831 = vmatprep.subr.bf16.mxu0 0
    %1832 = vmatpush1.bf16.msra.mxu0 %v399
    %1833 = vmatprep.subr.bf16.mxu0 0
    %1834 = vmatpush1.bf16.msra.mxu0 0
    %1835 = vmatprep.subr.bf16.mxu0 0
    %1836 = vmatpush1.bf16.msra.mxu0 0
    %1837 = vmatprep.subr.bf16.mxu0 0
    %1838 = vmatpush1.bf16.msra.mxu0 0
    %1839 = vmatprep.subr.bf16.mxu0 0
    %1840 = vmatpush1.bf16.msra.mxu0 0
    %1841 = vmatprep.subr.bf16.mxu0 0
    %1842 = vmatpush1.bf16.msra.mxu0 0
    %1843 = vmatprep.subr.bf16.mxu0 0
    %1844 = vmatpush1.bf16.msra.mxu0 0
    %1845 = vmatprep.subr.bf16.mxu0 0
    %1846 = vmatpush1.bf16.msra.mxu0 0
    %1847 = vmatprep.subr.bf16.mxu0 0
    %1848 = vmatpush1.bf16.msra.mxu0 0
    %1849 = vmatprep.subr.bf16.mxu0 0
    %1850 = vmatpush1.bf16.msra.mxu0 0
    %1851 = vmatprep.subr.bf16.mxu0 0
    %1852 = vmatpush1.bf16.msra.mxu0 0
    %1853 = vmatprep.subr.bf16.mxu0 0
    %1854 = vmatpush1.bf16.msra.mxu0 0
    %1855 = vmatprep.subr.bf16.mxu0 0
    %1856 = vmatpush1.bf16.msra.mxu0 0
    %1857 = vmatprep.subr.bf16.mxu0 0
    %1858 = vmatpush1.bf16.msra.mxu0 0
    %1859 = vmatprep.subr.bf16.mxu0 0
    %1860 = vmatpush1.bf16.msra.mxu0 0
    %1861 = vmatprep.mubr.bf16.mxu0 0
    %1862 = vmatmul.mubr.bf16.gmra.mrb[0].mxu0 %v1786
    %v1863 = vpop.f32.mrb[0].mxu0
    %v1864 = vadd.f32 0.0, %v1863
    %v1865 = vpop.f32.mrb[0].mxu0
    %v1866 = vpop.f32.mrb[0].mxu0
    %v1867 = vpop.f32.mrb[0].mxu0
    %1868 = vdwg.mxu0
    %v1869 = vadd.f32 %v1782, %v1823
    %v1870 = vxor.u32 %v1869, 2147483648
    %v1871 = vmul.f32 %v1870, 1.442695
    %v1872 = vpow.pop %v1871
    %v1873 = vadd.f32 %v1872, 1.0
    %v1874 = vrcp.pop %v1873
    %v1875 = vmul.f32 1.0, %v1874
    %v1876 = vadd.f32 %v1783, %v1825
    %v1877 = vxor.u32 %v1876, 2147483648
    %v1878 = vmul.f32 %v1877, 1.442695
    %v1879 = vpow.pop %v1878
    %v1880 = vadd.f32 %v1879, 1.0
    %v1881 = vrcp.pop %v1880
    %v1882 = vmul.f32 1.0, %v1881
    %v1883 = vadd.f32 %v1864, %v127
    %v1884 = vmul.f32 %v1875, %v1883
    %v1885 = vadd.f32 %v1784, %v1884
    %v1886 = vtanh.pop %v1885
    %v1887 = vsub.f32 1.0, %v1882
    %v1888 = vmul.f32 %v1887, %v1886
    %v1889 = vmul.f32 %v1882, %v1592
    %v1890 = vadd.f32 %v1888, %v1889
    %v1891 = vpack.c.bf16 %v1890, %v1890
    %1892 = vmatprep.subr.bf16.mxu0 %v661
    %1893 = vmatpush1.bf16.msra.mxu0 %v660
    %1894 = vmatprep.subr.bf16.mxu0 %v664
    %1895 = vmatpush1.bf16.msra.mxu0 %v663
    %1896 = vmatprep.subr.bf16.mxu0 0
    %1897 = vmatpush1.bf16.msra.mxu0 0
    %1898 = vmatprep.subr.bf16.mxu0 0
    %1899 = vmatpush1.bf16.msra.mxu0 0
    %1900 = vmatprep.subr.bf16.mxu0 0
    %1901 = vmatpush1.bf16.msra.mxu0 0
    %1902 = vmatprep.subr.bf16.mxu0 0
    %1903 = vmatpush1.bf16.msra.mxu0 0
    %1904 = vmatprep.subr.bf16.mxu0 0
    %1905 = vmatpush1.bf16.msra.mxu0 0
    %1906 = vmatprep.subr.bf16.mxu0 0
    %1907 = vmatpush1.bf16.msra.mxu0 0
    %1908 = vmatprep.subr.bf16.mxu0 0
    %1909 = vmatpush1.bf16.msra.mxu0 0
    %1910 = vmatprep.subr.bf16.mxu0 0
    %1911 = vmatpush1.bf16.msra.mxu0 0
    %1912 = vmatprep.subr.bf16.mxu0 0
    %1913 = vmatpush1.bf16.msra.mxu0 0
    %1914 = vmatprep.subr.bf16.mxu0 0
    %1915 = vmatpush1.bf16.msra.mxu0 0
    %1916 = vmatprep.subr.bf16.mxu0 0
    %1917 = vmatpush1.bf16.msra.mxu0 0
    %1918 = vmatprep.subr.bf16.mxu0 0
    %1919 = vmatpush1.bf16.msra.mxu0 0
    %1920 = vmatprep.subr.bf16.mxu0 0
    %1921 = vmatpush1.bf16.msra.mxu0 0
    %1922 = vmatprep.subr.bf16.mxu0 0
    %1923 = vmatpush1.bf16.msra.mxu0 0
    %1924 = vmatprep.mubr.bf16.mxu0 0
    %1925 = vmatmul.mubr.bf16.gmra.mrb[0].mxu0 %v1786
    %v1926 = vpop.f32.mrb[0].mxu0
    %v1927 = vadd.f32 %v628, %v1926
    %v1928 = vpop.f32.mrb[0].mxu0
    %v1929 = vadd.f32 %v632, %v1928
    %v1930 = vpop.f32.mrb[0].mxu0
    %v1931 = vpop.f32.mrb[0].mxu0
    %1932 = vdwg.mxu0
    %1933 = vmatprep.subr.bf16.mxu0 0
    %1934 = vmatpush1.bf16.msra.mxu0 %v662
    %1935 = vmatprep.subr.bf16.mxu0 0
    %1936 = vmatpush1.bf16.msra.mxu0 %v665
    %1937 = vmatprep.subr.bf16.mxu0 0
    %1938 = vmatpush1.bf16.msra.mxu0 0
    %1939 = vmatprep.subr.bf16.mxu0 0
    %1940 = vmatpush1.bf16.msra.mxu0 0
    %1941 = vmatprep.subr.bf16.mxu0 0
    %1942 = vmatpush1.bf16.msra.mxu0 0
    %1943 = vmatprep.subr.bf16.mxu0 0
    %1944 = vmatpush1.bf16.msra.mxu0 0
    %1945 = vmatprep.subr.bf16.mxu0 0
    %1946 = vmatpush1.bf16.msra.mxu0 0
    %1947 = vmatprep.subr.bf16.mxu0 0
    %1948 = vmatpush1.bf16.msra.mxu0 0
    %1949 = vmatprep.subr.bf16.mxu0 0
    %1950 = vmatpush1.bf16.msra.mxu0 0
    %1951 = vmatprep.subr.bf16.mxu0 0
    %1952 = vmatpush1.bf16.msra.mxu0 0
    %1953 = vmatprep.subr.bf16.mxu0 0
    %1954 = vmatpush1.bf16.msra.mxu0 0
    %1955 = vmatprep.subr.bf16.mxu0 0
    %1956 = vmatpush1.bf16.msra.mxu0 0
    %1957 = vmatprep.subr.bf16.mxu0 0
    %1958 = vmatpush1.bf16.msra.mxu0 0
    %1959 = vmatprep.subr.bf16.mxu0 0
    %1960 = vmatpush1.bf16.msra.mxu0 0
    %1961 = vmatprep.subr.bf16.mxu0 0
    %1962 = vmatpush1.bf16.msra.mxu0 0
    %1963 = vmatprep.subr.bf16.mxu0 0
    %1964 = vmatpush1.bf16.msra.mxu0 0
    %1965 = vmatprep.mubr.bf16.mxu0 0
    %1966 = vmatmul.mubr.bf16.gmra.mrb[0].mxu0 %v1786
    %v1967 = vpop.f32.mrb[0].mxu0
    %v1968 = vadd.f32 %v636, %v1967
    %v1969 = vpop.f32.mrb[0].mxu0
    %v1970 = vpop.f32.mrb[0].mxu0
    %v1971 = vpop.f32.mrb[0].mxu0
    %1972 = vdwg.mxu0
    %v1973 = vpack.c.bf16 %v1781, %v1781
    %v1975 = vsel %vm406, %v1973, 0
    %1977 = vmatprep.subr.bf16.mxu0 %v774
    %1978 = vmatpush1.bf16.msra.mxu0 %v773
    %1979 = vmatprep.subr.bf16.mxu0 %v777
    %1980 = vmatpush1.bf16.msra.mxu0 %v776
    %1981 = vmatprep.subr.bf16.mxu0 0
    %1982 = vmatpush1.bf16.msra.mxu0 0
    %1983 = vmatprep.subr.bf16.mxu0 0
    %1984 = vmatpush1.bf16.msra.mxu0 0
    %1985 = vmatprep.subr.bf16.mxu0 0
    %1986 = vmatpush1.bf16.msra.mxu0 0
    %1987 = vmatprep.subr.bf16.mxu0 0
    %1988 = vmatpush1.bf16.msra.mxu0 0
    %1989 = vmatprep.subr.bf16.mxu0 0
    %1990 = vmatpush1.bf16.msra.mxu0 0
    %1991 = vmatprep.subr.bf16.mxu0 0
    %1992 = vmatpush1.bf16.msra.mxu0 0
    %1993 = vmatprep.subr.bf16.mxu0 0
    %1994 = vmatpush1.bf16.msra.mxu0 0
    %1995 = vmatprep.subr.bf16.mxu0 0
    %1996 = vmatpush1.bf16.msra.mxu0 0
    %1997 = vmatprep.subr.bf16.mxu0 0
    %1998 = vmatpush1.bf16.msra.mxu0 0
    %1999 = vmatprep.subr.bf16.mxu0 0
    %2000 = vmatpush1.bf16.msra.mxu0 0
    %2001 = vmatprep.subr.bf16.mxu0 0
    %2002 = vmatpush1.bf16.msra.mxu0 0
    %2003 = vmatprep.subr.bf16.mxu0 0
    %2004 = vmatpush1.bf16.msra.mxu0 0
    %2005 = vmatprep.subr.bf16.mxu0 0
    %2006 = vmatpush1.bf16.msra.mxu0 0
    %2007 = vmatprep.subr.bf16.mxu0 0
    %2008 = vmatpush1.bf16.msra.mxu0 0
    %2009 = vmatprep.mubr.bf16.mxu0 0
    %2010 = vmatmul.mubr.bf16.gmra.mrb[0].mxu0 %v1975
    %v2011 = vpop.f32.mrb[0].mxu0
    %v2012 = vadd.f32 0.0, %v2011
    %v2013 = vpop.f32.mrb[0].mxu0
    %v2014 = vadd.f32 0.0, %v2013
    %v2015 = vpop.f32.mrb[0].mxu0
    %v2016 = vpop.f32.mrb[0].mxu0
    %2017 = vdwg.mxu0
    %2018 = vmatprep.subr.bf16.mxu0 0
    %2019 = vmatpush1.bf16.msra.mxu0 %v775
    %2020 = vmatprep.subr.bf16.mxu0 0
    %2021 = vmatpush1.bf16.msra.mxu0 %v778
    %2022 = vmatprep.subr.bf16.mxu0 0
    %2023 = vmatpush1.bf16.msra.mxu0 0
    %2024 = vmatprep.subr.bf16.mxu0 0
    %2025 = vmatpush1.bf16.msra.mxu0 0
    %2026 = vmatprep.subr.bf16.mxu0 0
    %2027 = vmatpush1.bf16.msra.mxu0 0
    %2028 = vmatprep.subr.bf16.mxu0 0
    %2029 = vmatpush1.bf16.msra.mxu0 0
    %2030 = vmatprep.subr.bf16.mxu0 0
    %2031 = vmatpush1.bf16.msra.mxu0 0
    %2032 = vmatprep.subr.bf16.mxu0 0
    %2033 = vmatpush1.bf16.msra.mxu0 0
    %2034 = vmatprep.subr.bf16.mxu0 0
    %2035 = vmatpush1.bf16.msra.mxu0 0
    %2036 = vmatprep.subr.bf16.mxu0 0
    %2037 = vmatpush1.bf16.msra.mxu0 0
    %2038 = vmatprep.subr.bf16.mxu0 0
    %2039 = vmatpush1.bf16.msra.mxu0 0
    %2040 = vmatprep.subr.bf16.mxu0 0
    %2041 = vmatpush1.bf16.msra.mxu0 0
    %2042 = vmatprep.subr.bf16.mxu0 0
    %2043 = vmatpush1.bf16.msra.mxu0 0
    %2044 = vmatprep.subr.bf16.mxu0 0
    %2045 = vmatpush1.bf16.msra.mxu0 0
    %2046 = vmatprep.subr.bf16.mxu0 0
    %2047 = vmatpush1.bf16.msra.mxu0 0
    %2048 = vmatprep.subr.bf16.mxu0 0
    %2049 = vmatpush1.bf16.msra.mxu0 0
    %2050 = vmatprep.mubr.bf16.mxu0 0
    %2051 = vmatmul.mubr.bf16.gmra.mrb[0].mxu0 %v1975
    %v2052 = vpop.f32.mrb[0].mxu0
    %v2053 = vadd.f32 0.0, %v2052
    %v2054 = vpop.f32.mrb[0].mxu0
    %v2055 = vpop.f32.mrb[0].mxu0
    %v2056 = vpop.f32.mrb[0].mxu0
    %2057 = vdwg.mxu0
    %v2058 = vadd.f32 %v1927, %v2012
    %v2059 = vxor.u32 %v2058, 2147483648
    %v2060 = vmul.f32 %v2059, 1.442695
    %v2061 = vpow.pop %v2060
    %v2062 = vadd.f32 %v2061, 1.0
    %v2063 = vrcp.pop %v2062
    %v2064 = vmul.f32 1.0, %v2063
    %v2065 = vadd.f32 %v1929, %v2014
    %v2066 = vxor.u32 %v2065, 2147483648
    %v2067 = vmul.f32 %v2066, 1.442695
    %v2068 = vpow.pop %v2067
    %v2069 = vadd.f32 %v2068, 1.0
    %v2070 = vrcp.pop %v2069
    %v2071 = vmul.f32 1.0, %v2070
    %v2072 = vadd.f32 %v2053, %v134
    %v2073 = vmul.f32 %v2064, %v2072
    %v2074 = vadd.f32 %v1968, %v2073
    %v2075 = vtanh.pop %v2074
    %v2076 = vsub.f32 1.0, %v2071
    %v2077 = vmul.f32 %v2076, %v2075
    %v2078 = vmul.f32 %v2071, %v1781
    %v2079 = vadd.f32 %v2077, %v2078
    %v2080 = vld [vmem:[#allocation2 + $0x90] sm:$0xff]
    %v2081 = vld [vmem:[#allocation2 + $0x98] sm:$0xff]
    %v2082 = vld [vmem:[#allocation2 + $0xa0] sm:$0xff]
    %v2084 = vsel %vm406, %v1891, 0
    %2086 = vmatprep.subr.bf16.mxu0 %v395
    %2087 = vmatpush1.bf16.msra.mxu0 %v394
    %2088 = vmatprep.subr.bf16.mxu0 %v398
    %2089 = vmatpush1.bf16.msra.mxu0 %v397
    %2090 = vmatprep.subr.bf16.mxu0 0
    %2091 = vmatpush1.bf16.msra.mxu0 0
    %2092 = vmatprep.subr.bf16.mxu0 0
    %2093 = vmatpush1.bf16.msra.mxu0 0
    %2094 = vmatprep.subr.bf16.mxu0 0
    %2095 = vmatpush1.bf16.msra.mxu0 0
    %2096 = vmatprep.subr.bf16.mxu0 0
    %2097 = vmatpush1.bf16.msra.mxu0 0
    %2098 = vmatprep.subr.bf16.mxu0 0
    %2099 = vmatpush1.bf16.msra.mxu0 0
    %2100 = vmatprep.subr.bf16.mxu0 0
    %2101 = vmatpush1.bf16.msra.mxu0 0
    %2102 = vmatprep.subr.bf16.mxu0 0
    %2103 = vmatpush1.bf16.msra.mxu0 0
    %2104 = vmatprep.subr.bf16.mxu0 0
    %2105 = vmatpush1.bf16.msra.mxu0 0
    %2106 = vmatprep.subr.bf16.mxu0 0
    %2107 = vmatpush1.bf16.msra.mxu0 0
    %2108 = vmatprep.subr.bf16.mxu0 0
    %2109 = vmatpush1.bf16.msra.mxu0 0
    %2110 = vmatprep.subr.bf16.mxu0 0
    %2111 = vmatpush1.bf16.msra.mxu0 0
    %2112 = vmatprep.subr.bf16.mxu0 0
    %2113 = vmatpush1.bf16.msra.mxu0 0
    %2114 = vmatprep.subr.bf16.mxu0 0
    %2115 = vmatpush1.bf16.msra.mxu0 0
    %2116 = vmatprep.subr.bf16.mxu0 0
    %2117 = vmatpush1.bf16.msra.mxu0 0
    %2118 = vmatprep.mubr.bf16.mxu0 0
    %2119 = vmatmul.mubr.bf16.gmra.mrb[0].mxu0 %v2084
    %v2120 = vpop.f32.mrb[0].mxu0
    %v2121 = vadd.f32 0.0, %v2120
    %v2122 = vpop.f32.mrb[0].mxu0
    %v2123 = vadd.f32 0.0, %v2122
    %v2124 = vpop.f32.mrb[0].mxu0
    %v2125 = vpop.f32.mrb[0].mxu0
    %2126 = vdwg.mxu0
    %2127 = vmatprep.subr.bf16.mxu0 0
    %2128 = vmatpush1.bf16.msra.mxu0 %v396
    %2129 = vmatprep.subr.bf16.mxu0 0
    %2130 = vmatpush1.bf16.msra.mxu0 %v399
    %2131 = vmatprep.subr.bf16.mxu0 0
    %2132 = vmatpush1.bf16.msra.mxu0 0
    %2133 = vmatprep.subr.bf16.mxu0 0
    %2134 = vmatpush1.bf16.msra.mxu0 0
    %2135 = vmatprep.subr.bf16.mxu0 0
    %2136 = vmatpush1.bf16.msra.mxu0 0
    %2137 = vmatprep.subr.bf16.mxu0 0
    %2138 = vmatpush1.bf16.msra.mxu0 0
    %2139 = vmatprep.subr.bf16.mxu0 0
    %2140 = vmatpush1.bf16.msra.mxu0 0
    %2141 = vmatprep.subr.bf16.mxu0 0
    %2142 = vmatpush1.bf16.msra.mxu0 0
    %2143 = vmatprep.subr.bf16.mxu0 0
    %2144 = vmatpush1.bf16.msra.mxu0 0
    %2145 = vmatprep.subr.bf16.mxu0 0
    %2146 = vmatpush1.bf16.msra.mxu0 0
    %2147 = vmatprep.subr.bf16.mxu0 0
    %2148 = vmatpush1.bf16.msra.mxu0 0
    %2149 = vmatprep.subr.bf16.mxu0 0
    %2150 = vmatpush1.bf16.msra.mxu0 0
    %2151 = vmatprep.subr.bf16.mxu0 0
    %2152 = vmatpush1.bf16.msra.mxu0 0
    %2153 = vmatprep.subr.bf16.mxu0 0
    %2154 = vmatpush1.bf16.msra.mxu0 0
    %2155 = vmatprep.subr.bf16.mxu0 0
    %2156 = vmatpush1.bf16.msra.mxu0 0
    %2157 = vmatprep.subr.bf16.mxu0 0
    %2158 = vmatpush1.bf16.msra.mxu0 0
    %2159 = vmatprep.mubr.bf16.mxu0 0
    %2160 = vmatmul.mubr.bf16.gmra.mrb[0].mxu0 %v2084
    %v2161 = vpop.f32.mrb[0].mxu0
    %v2162 = vadd.f32 0.0, %v2161
    %v2163 = vpop.f32.mrb[0].mxu0
    %v2164 = vpop.f32.mrb[0].mxu0
    %v2165 = vpop.f32.mrb[0].mxu0
    %2166 = vdwg.mxu0
    %v2167 = vadd.f32 %v2080, %v2121
    %v2168 = vxor.u32 %v2167, 2147483648
    %v2169 = vmul.f32 %v2168, 1.442695
    %v2170 = vpow.pop %v2169
    %v2171 = vadd.f32 %v2170, 1.0
    %v2172 = vrcp.pop %v2171
    %v2173 = vmul.f32 1.0, %v2172
    %v2174 = vadd.f32 %v2081, %v2123
    %v2175 = vxor.u32 %v2174, 2147483648
    %v2176 = vmul.f32 %v2175, 1.442695
    %v2177 = vpow.pop %v2176
    %v2178 = vadd.f32 %v2177, 1.0
    %v2179 = vrcp.pop %v2178
    %v2180 = vmul.f32 1.0, %v2179
    %v2181 = vadd.f32 %v2162, %v127
    %v2182 = vmul.f32 %v2173, %v2181
    %v2183 = vadd.f32 %v2082, %v2182
    %v2184 = vtanh.pop %v2183
    %v2185 = vsub.f32 1.0, %v2180
    %v2186 = vmul.f32 %v2185, %v2184
    %v2187 = vmul.f32 %v2180, %v1890
    %v2188 = vadd.f32 %v2186, %v2187
    %v2189 = vpack.c.bf16 %v2188, %v2188
    %2190 = vmatprep.subr.bf16.mxu0 %v661
    %2191 = vmatpush1.bf16.msra.mxu0 %v660
    %2192 = vmatprep.subr.bf16.mxu0 %v664
    %2193 = vmatpush1.bf16.msra.mxu0 %v663
    %2194 = vmatprep.subr.bf16.mxu0 0
    %2195 = vmatpush1.bf16.msra.mxu0 0
    %2196 = vmatprep.subr.bf16.mxu0 0
    %2197 = vmatpush1.bf16.msra.mxu0 0
    %2198 = vmatprep.subr.bf16.mxu0 0
    %2199 = vmatpush1.bf16.msra.mxu0 0
    %2200 = vmatprep.subr.bf16.mxu0 0
    %2201 = vmatpush1.bf16.msra.mxu0 0
    %2202 = vmatprep.subr.bf16.mxu0 0
    %2203 = vmatpush1.bf16.msra.mxu0 0
    %2204 = vmatprep.subr.bf16.mxu0 0
    %2205 = vmatpush1.bf16.msra.mxu0 0
    %2206 = vmatprep.subr.bf16.mxu0 0
    %2207 = vmatpush1.bf16.msra.mxu0 0
    %2208 = vmatprep.subr.bf16.mxu0 0
    %2209 = vmatpush1.bf16.msra.mxu0 0
    %2210 = vmatprep.subr.bf16.mxu0 0
    %2211 = vmatpush1.bf16.msra.mxu0 0
    %2212 = vmatprep.subr.bf16.mxu0 0
    %2213 = vmatpush1.bf16.msra.mxu0 0
    %2214 = vmatprep.subr.bf16.mxu0 0
    %2215 = vmatpush1.bf16.msra.mxu0 0
    %2216 = vmatprep.subr.bf16.mxu0 0
    %2217 = vmatpush1.bf16.msra.mxu0 0
    %2218 = vmatprep.subr.bf16.mxu0 0
    %2219 = vmatpush1.bf16.msra.mxu0 0
    %2220 = vmatprep.subr.bf16.mxu0 0
    %2221 = vmatpush1.bf16.msra.mxu0 0
    %2222 = vmatprep.mubr.bf16.mxu0 0
    %2223 = vmatmul.mubr.bf16.gmra.mrb[0].mxu0 %v2084
    %v2224 = vpop.f32.mrb[0].mxu0
    %v2225 = vadd.f32 %v628, %v2224
    %v2226 = vpop.f32.mrb[0].mxu0
    %v2227 = vadd.f32 %v632, %v2226
    %v2228 = vpop.f32.mrb[0].mxu0
    %v2229 = vpop.f32.mrb[0].mxu0
    %2230 = vdwg.mxu0
    %2231 = vmatprep.subr.bf16.mxu0 0
    %2232 = vmatpush1.bf16.msra.mxu0 %v662
    %2233 = vmatprep.subr.bf16.mxu0 0
    %2234 = vmatpush1.bf16.msra.mxu0 %v665
    %2235 = vmatprep.subr.bf16.mxu0 0
    %2236 = vmatpush1.bf16.msra.mxu0 0
    %2237 = vmatprep.subr.bf16.mxu0 0
    %2238 = vmatpush1.bf16.msra.mxu0 0
    %2239 = vmatprep.subr.bf16.mxu0 0
    %2240 = vmatpush1.bf16.msra.mxu0 0
    %2241 = vmatprep.subr.bf16.mxu0 0
    %2242 = vmatpush1.bf16.msra.mxu0 0
    %2243 = vmatprep.subr.bf16.mxu0 0
    %2244 = vmatpush1.bf16.msra.mxu0 0
    %2245 = vmatprep.subr.bf16.mxu0 0
    %2246 = vmatpush1.bf16.msra.mxu0 0
    %2247 = vmatprep.subr.bf16.mxu0 0
    %2248 = vmatpush1.bf16.msra.mxu0 0
    %2249 = vmatprep.subr.bf16.mxu0 0
    %2250 = vmatpush1.bf16.msra.mxu0 0
    %2251 = vmatprep.subr.bf16.mxu0 0
    %2252 = vmatpush1.bf16.msra.mxu0 0
    %2253 = vmatprep.subr.bf16.mxu0 0
    %2254 = vmatpush1.bf16.msra.mxu0 0
    %2255 = vmatprep.subr.bf16.mxu0 0
    %2256 = vmatpush1.bf16.msra.mxu0 0
    %2257 = vmatprep.subr.bf16.mxu0 0
    %2258 = vmatpush1.bf16.msra.mxu0 0
    %2259 = vmatprep.subr.bf16.mxu0 0
    %2260 = vmatpush1.bf16.msra.mxu0 0
    %2261 = vmatprep.subr.bf16.mxu0 0
    %2262 = vmatpush1.bf16.msra.mxu0 0
    %2263 = vmatprep.mubr.bf16.mxu0 0
    %2264 = vmatmul.mubr.bf16.gmra.mrb[0].mxu0 %v2084
    %v2265 = vpop.f32.mrb[0].mxu0
    %v2266 = vadd.f32 %v636, %v2265
    %v2267 = vpop.f32.mrb[0].mxu0
    %v2268 = vpop.f32.mrb[0].mxu0
    %v2269 = vpop.f32.mrb[0].mxu0
    %2270 = vdwg.mxu0
    %v2271 = vpack.c.bf16 %v2079, %v2079
    %v2273 = vsel %vm406, %v2271, 0
    %2275 = vmatprep.subr.bf16.mxu0 %v774
    %2276 = vmatpush1.bf16.msra.mxu0 %v773
    %2277 = vmatprep.subr.bf16.mxu0 %v777
    %2278 = vmatpush1.bf16.msra.mxu0 %v776
    %2279 = vmatprep.subr.bf16.mxu0 0
    %2280 = vmatpush1.bf16.msra.mxu0 0
    %2281 = vmatprep.subr.bf16.mxu0 0
    %2282 = vmatpush1.bf16.msra.mxu0 0
    %2283 = vmatprep.subr.bf16.mxu0 0
    %2284 = vmatpush1.bf16.msra.mxu0 0
    %2285 = vmatprep.subr.bf16.mxu0 0
    %2286 = vmatpush1.bf16.msra.mxu0 0
    %2287 = vmatprep.subr.bf16.mxu0 0
    %2288 = vmatpush1.bf16.msra.mxu0 0
    %2289 = vmatprep.subr.bf16.mxu0 0
    %2290 = vmatpush1.bf16.msra.mxu0 0
    %2291 = vmatprep.subr.bf16.mxu0 0
    %2292 = vmatpush1.bf16.msra.mxu0 0
    %2293 = vmatprep.subr.bf16.mxu0 0
    %2294 = vmatpush1.bf16.msra.mxu0 0
    %2295 = vmatprep.subr.bf16.mxu0 0
    %2296 = vmatpush1.bf16.msra.mxu0 0
    %2297 = vmatprep.subr.bf16.mxu0 0
    %2298 = vmatpush1.bf16.msra.mxu0 0
    %2299 = vmatprep.subr.bf16.mxu0 0
    %2300 = vmatpush1.bf16.msra.mxu0 0
    %2301 = vmatprep.subr.bf16.mxu0 0
    %2302 = vmatpush1.bf16.msra.mxu0 0
    %2303 = vmatprep.subr.bf16.mxu0 0
    %2304 = vmatpush1.bf16.msra.mxu0 0
    %2305 = vmatprep.subr.bf16.mxu0 0
    %2306 = vmatpush1.bf16.msra.mxu0 0
    %2307 = vmatprep.mubr.bf16.mxu0 0
    %2308 = vmatmul.mubr.bf16.gmra.mrb[0].mxu0 %v2273
    %v2309 = vpop.f32.mrb[0].mxu0
    %v2310 = vadd.f32 0.0, %v2309
    %v2311 = vpop.f32.mrb[0].mxu0
    %v2312 = vadd.f32 0.0, %v2311
    %v2313 = vpop.f32.mrb[0].mxu0
    %v2314 = vpop.f32.mrb[0].mxu0
    %2315 = vdwg.mxu0
    %2316 = vmatprep.subr.bf16.mxu0 0
    %2317 = vmatpush1.bf16.msra.mxu0 %v775
    %2318 = vmatprep.subr.bf16.mxu0 0
    %2319 = vmatpush1.bf16.msra.mxu0 %v778
    %2320 = vmatprep.subr.bf16.mxu0 0
    %2321 = vmatpush1.bf16.msra.mxu0 0
    %2322 = vmatprep.subr.bf16.mxu0 0
    %2323 = vmatpush1.bf16.msra.mxu0 0
    %2324 = vmatprep.subr.bf16.mxu0 0
    %2325 = vmatpush1.bf16.msra.mxu0 0
    %2326 = vmatprep.subr.bf16.mxu0 0
    %2327 = vmatpush1.bf16.msra.mxu0 0
    %2328 = vmatprep.subr.bf16.mxu0 0
    %2329 = vmatpush1.bf16.msra.mxu0 0
    %2330 = vmatprep.subr.bf16.mxu0 0
    %2331 = vmatpush1.bf16.msra.mxu0 0
    %2332 = vmatprep.subr.bf16.mxu0 0
    %2333 = vmatpush1.bf16.msra.mxu0 0
    %2334 = vmatprep.subr.bf16.mxu0 0
    %2335 = vmatpush1.bf16.msra.mxu0 0
    %2336 = vmatprep.subr.bf16.mxu0 0
    %2337 = vmatpush1.bf16.msra.mxu0 0
    %2338 = vmatprep.subr.bf16.mxu0 0
    %2339 = vmatpush1.bf16.msra.mxu0 0
    %2340 = vmatprep.subr.bf16.mxu0 0
    %2341 = vmatpush1.bf16.msra.mxu0 0
    %2342 = vmatprep.subr.bf16.mxu0 0
    %2343 = vmatpush1.bf16.msra.mxu0 0
    %2344 = vmatprep.subr.bf16.mxu0 0
    %2345 = vmatpush1.bf16.msra.mxu0 0
    %2346 = vmatprep.subr.bf16.mxu0 0
    %2347 = vmatpush1.bf16.msra.mxu0 0
    %2348 = vmatprep.mubr.bf16.mxu0 0
    %2349 = vmatmul.mubr.bf16.gmra.mrb[0].mxu0 %v2273
    %v2350 = vpop.f32.mrb[0].mxu0
    %v2351 = vadd.f32 0.0, %v2350
    %v2352 = vpop.f32.mrb[0].mxu0
    %v2353 = vpop.f32.mrb[0].mxu0
    %v2354 = vpop.f32.mrb[0].mxu0
    %2355 = vdwg.mxu0
    %v2356 = vadd.f32 %v2225, %v2310
    %v2357 = vxor.u32 %v2356, 2147483648
    %v2358 = vmul.f32 %v2357, 1.442695
    %v2359 = vpow.pop %v2358
    %v2360 = vadd.f32 %v2359, 1.0
    %v2361 = vrcp.pop %v2360
    %v2362 = vmul.f32 1.0, %v2361
    %v2363 = vadd.f32 %v2227, %v2312
    %v2364 = vxor.u32 %v2363, 2147483648
    %v2365 = vmul.f32 %v2364, 1.442695
    %v2366 = vpow.pop %v2365
    %v2367 = vadd.f32 %v2366, 1.0
    %v2368 = vrcp.pop %v2367
    %v2369 = vmul.f32 1.0, %v2368
    %v2370 = vadd.f32 %v2351, %v134
    %v2371 = vmul.f32 %v2362, %v2370
    %v2372 = vadd.f32 %v2266, %v2371
    %v2373 = vtanh.pop %v2372
    %v2374 = vsub.f32 1.0, %v2369
    %v2375 = vmul.f32 %v2374, %v2373
    %v2376 = vmul.f32 %v2369, %v2079
    %v2377 = vadd.f32 %v2375, %v2376
    %v2378 = vld [vmem:[#allocation2 + $0xa8] sm:$0xff]
    %v2379 = vld [vmem:[#allocation2 + $0xb0] sm:$0xff]
    %v2380 = vld [vmem:[#allocation2 + $0xb8] sm:$0xff]
    %v2382 = vsel %vm406, %v2189, 0
    %2384 = vmatprep.subr.bf16.mxu0 %v395
    %2385 = vmatpush1.bf16.msra.mxu0 %v394
    %2386 = vmatprep.subr.bf16.mxu0 %v398
    %2387 = vmatpush1.bf16.msra.mxu0 %v397
    %2388 = vmatprep.subr.bf16.mxu0 0
    %2389 = vmatpush1.bf16.msra.mxu0 0
    %2390 = vmatprep.subr.bf16.mxu0 0
    %2391 = vmatpush1.bf16.msra.mxu0 0
    %2392 = vmatprep.subr.bf16.mxu0 0
    %2393 = vmatpush1.bf16.msra.mxu0 0
    %2394 = vmatprep.subr.bf16.mxu0 0
    %2395 = vmatpush1.bf16.msra.mxu0 0
    %2396 = vmatprep.subr.bf16.mxu0 0
    %2397 = vmatpush1.bf16.msra.mxu0 0
    %2398 = vmatprep.subr.bf16.mxu0 0
    %2399 = vmatpush1.bf16.msra.mxu0 0
    %2400 = vmatprep.subr.bf16.mxu0 0
    %2401 = vmatpush1.bf16.msra.mxu0 0
    %2402 = vmatprep.subr.bf16.mxu0 0
    %2403 = vmatpush1.bf16.msra.mxu0 0
    %2404 = vmatprep.subr.bf16.mxu0 0
    %2405 = vmatpush1.bf16.msra.mxu0 0
    %2406 = vmatprep.subr.bf16.mxu0 0
    %2407 = vmatpush1.bf16.msra.mxu0 0
    %2408 = vmatprep.subr.bf16.mxu0 0
    %2409 = vmatpush1.bf16.msra.mxu0 0
    %2410 = vmatprep.subr.bf16.mxu0 0
    %2411 = vmatpush1.bf16.msra.mxu0 0
    %2412 = vmatprep.subr.bf16.mxu0 0
    %2413 = vmatpush1.bf16.msra.mxu0 0
    %2414 = vmatprep.subr.bf16.mxu0 0
    %2415 = vmatpush1.bf16.msra.mxu0 0
    %2416 = vmatprep.mubr.bf16.mxu0 0
    %2417 = vmatmul.mubr.bf16.gmra.mrb[0].mxu0 %v2382
    %v2418 = vpop.f32.mrb[0].mxu0
    %v2419 = vadd.f32 0.0, %v2418
    %v2420 = vpop.f32.mrb[0].mxu0
    %v2421 = vadd.f32 0.0, %v2420
    %v2422 = vpop.f32.mrb[0].mxu0
    %v2423 = vpop.f32.mrb[0].mxu0
    %2424 = vdwg.mxu0
    %2425 = vmatprep.subr.bf16.mxu0 0
    %2426 = vmatpush1.bf16.msra.mxu0 %v396
    %2427 = vmatprep.subr.bf16.mxu0 0
    %2428 = vmatpush1.bf16.msra.mxu0 %v399
    %2429 = vmatprep.subr.bf16.mxu0 0
    %2430 = vmatpush1.bf16.msra.mxu0 0
    %2431 = vmatprep.subr.bf16.mxu0 0
    %2432 = vmatpush1.bf16.msra.mxu0 0
    %2433 = vmatprep.subr.bf16.mxu0 0
    %2434 = vmatpush1.bf16.msra.mxu0 0
    %2435 = vmatprep.subr.bf16.mxu0 0
    %2436 = vmatpush1.bf16.msra.mxu0 0
    %2437 = vmatprep.subr.bf16.mxu0 0
    %2438 = vmatpush1.bf16.msra.mxu0 0
    %2439 = vmatprep.subr.bf16.mxu0 0
    %2440 = vmatpush1.bf16.msra.mxu0 0
    %2441 = vmatprep.subr.bf16.mxu0 0
    %2442 = vmatpush1.bf16.msra.mxu0 0
    %2443 = vmatprep.subr.bf16.mxu0 0
    %2444 = vmatpush1.bf16.msra.mxu0 0
    %2445 = vmatprep.subr.bf16.mxu0 0
    %2446 = vmatpush1.bf16.msra.mxu0 0
    %2447 = vmatprep.subr.bf16.mxu0 0
    %2448 = vmatpush1.bf16.msra.mxu0 0
    %2449 = vmatprep.subr.bf16.mxu0 0
    %2450 = vmatpush1.bf16.msra.mxu0 0
    %2451 = vmatprep.subr.bf16.mxu0 0
    %2452 = vmatpush1.bf16.msra.mxu0 0
    %2453 = vmatprep.subr.bf16.mxu0 0
    %2454 = vmatpush1.bf16.msra.mxu0 0
    %2455 = vmatprep.subr.bf16.mxu0 0
    %2456 = vmatpush1.bf16.msra.mxu0 0
    %2457 = vmatprep.mubr.bf16.mxu0 0
    %2458 = vmatmul.mubr.bf16.gmra.mrb[0].mxu0 %v2382
    %v2459 = vpop.f32.mrb[0].mxu0
    %v2460 = vadd.f32 0.0, %v2459
    %v2461 = vpop.f32.mrb[0].mxu0
    %v2462 = vpop.f32.mrb[0].mxu0
    %v2463 = vpop.f32.mrb[0].mxu0
    %2464 = vdwg.mxu0
    %v2465 = vadd.f32 %v2378, %v2419
    %v2466 = vxor.u32 %v2465, 2147483648
    %v2467 = vmul.f32 %v2466, 1.442695
    %v2468 = vpow.pop %v2467
    %v2469 = vadd.f32 %v2468, 1.0
    %v2470 = vrcp.pop %v2469
    %v2471 = vmul.f32 1.0, %v2470
    %v2472 = vadd.f32 %v2379, %v2421
    %v2473 = vxor.u32 %v2472, 2147483648
    %v2474 = vmul.f32 %v2473, 1.442695
    %v2475 = vpow.pop %v2474
    %v2476 = vadd.f32 %v2475, 1.0
    %v2477 = vrcp.pop %v2476
    %v2478 = vmul.f32 1.0, %v2477
    %v2479 = vadd.f32 %v2460, %v127
    %v2480 = vmul.f32 %v2471, %v2479
    %v2481 = vadd.f32 %v2380, %v2480
    %v2482 = vtanh.pop %v2481
    %v2483 = vsub.f32 1.0, %v2478
    %v2484 = vmul.f32 %v2483, %v2482
    %v2485 = vmul.f32 %v2478, %v2188
    %v2486 = vadd.f32 %v2484, %v2485
    %v2487 = vpack.c.bf16 %v2486, %v2486
    %2488 = vmatprep.subr.bf16.mxu0 %v661
    %2489 = vmatpush1.bf16.msra.mxu0 %v660
    %2490 = vmatprep.subr.bf16.mxu0 %v664
    %2491 = vmatpush1.bf16.msra.mxu0 %v663
    %2492 = vmatprep.subr.bf16.mxu0 0
    %2493 = vmatpush1.bf16.msra.mxu0 0
    %2494 = vmatprep.subr.bf16.mxu0 0
    %2495 = vmatpush1.bf16.msra.mxu0 0
    %2496 = vmatprep.subr.bf16.mxu0 0
    %2497 = vmatpush1.bf16.msra.mxu0 0
    %2498 = vmatprep.subr.bf16.mxu0 0
    %2499 = vmatpush1.bf16.msra.mxu0 0
    %2500 = vmatprep.subr.bf16.mxu0 0
    %2501 = vmatpush1.bf16.msra.mxu0 0
    %2502 = vmatprep.subr.bf16.mxu0 0
    %2503 = vmatpush1.bf16.msra.mxu0 0
    %2504 = vmatprep.subr.bf16.mxu0 0
    %2505 = vmatpush1.bf16.msra.mxu0 0
    %2506 = vmatprep.subr.bf16.mxu0 0
    %2507 = vmatpush1.bf16.msra.mxu0 0
    %2508 = vmatprep.subr.bf16.mxu0 0
    %2509 = vmatpush1.bf16.msra.mxu0 0
    %2510 = vmatprep.subr.bf16.mxu0 0
    %2511 = vmatpush1.bf16.msra.mxu0 0
    %2512 = vmatprep.subr.bf16.mxu0 0
    %2513 = vmatpush1.bf16.msra.mxu0 0
    %2514 = vmatprep.subr.bf16.mxu0 0
    %2515 = vmatpush1.bf16.msra.mxu0 0
    %2516 = vmatprep.subr.bf16.mxu0 0
    %2517 = vmatpush1.bf16.msra.mxu0 0
    %2518 = vmatprep.subr.bf16.mxu0 0
    %2519 = vmatpush1.bf16.msra.mxu0 0
    %2520 = vmatprep.mubr.bf16.mxu0 0
    %2521 = vmatmul.mubr.bf16.gmra.mrb[0].mxu0 %v2382
    %v2522 = vpop.f32.mrb[0].mxu0
    %v2523 = vadd.f32 %v628, %v2522
    %v2524 = vpop.f32.mrb[0].mxu0
    %v2525 = vadd.f32 %v632, %v2524
    %v2526 = vpop.f32.mrb[0].mxu0
    %v2527 = vpop.f32.mrb[0].mxu0
    %2528 = vdwg.mxu0
    %2529 = vmatprep.subr.bf16.mxu0 0
    %2530 = vmatpush1.bf16.msra.mxu0 %v662
    %2531 = vmatprep.subr.bf16.mxu0 0
    %2532 = vmatpush1.bf16.msra.mxu0 %v665
    %2533 = vmatprep.subr.bf16.mxu0 0
    %2534 = vmatpush1.bf16.msra.mxu0 0
    %2535 = vmatprep.subr.bf16.mxu0 0
    %2536 = vmatpush1.bf16.msra.mxu0 0
    %2537 = vmatprep.subr.bf16.mxu0 0
    %2538 = vmatpush1.bf16.msra.mxu0 0
    %2539 = vmatprep.subr.bf16.mxu0 0
    %2540 = vmatpush1.bf16.msra.mxu0 0
    %2541 = vmatprep.subr.bf16.mxu0 0
    %2542 = vmatpush1.bf16.msra.mxu0 0
    %2543 = vmatprep.subr.bf16.mxu0 0
    %2544 = vmatpush1.bf16.msra.mxu0 0
    %2545 = vmatprep.subr.bf16.mxu0 0
    %2546 = vmatpush1.bf16.msra.mxu0 0
    %2547 = vmatprep.subr.bf16.mxu0 0
    %2548 = vmatpush1.bf16.msra.mxu0 0
    %2549 = vmatprep.subr.bf16.mxu0 0
    %2550 = vmatpush1.bf16.msra.mxu0 0
    %2551 = vmatprep.subr.bf16.mxu0 0
    %2552 = vmatpush1.bf16.msra.mxu0 0
    %2553 = vmatprep.subr.bf16.mxu0 0
    %2554 = vmatpush1.bf16.msra.mxu0 0
    %2555 = vmatprep.subr.bf16.mxu0 0
    %2556 = vmatpush1.bf16.msra.mxu0 0
    %2557 = vmatprep.subr.bf16.mxu0 0
    %2558 = vmatpush1.bf16.msra.mxu0 0
    %2559 = vmatprep.subr.bf16.mxu0 0
    %2560 = vmatpush1.bf16.msra.mxu0 0
    %2561 = vmatprep.mubr.bf16.mxu0 0
    %2562 = vmatmul.mubr.bf16.gmra.mrb[0].mxu0 %v2382
    %v2563 = vpop.f32.mrb[0].mxu0
    %v2564 = vadd.f32 %v636, %v2563
    %v2565 = vpop.f32.mrb[0].mxu0
    %v2566 = vpop.f32.mrb[0].mxu0
    %v2567 = vpop.f32.mrb[0].mxu0
    %2568 = vdwg.mxu0
    %v2569 = vpack.c.bf16 %v2377, %v2377
    %v2571 = vsel %vm406, %v2569, 0
    %2573 = vmatprep.subr.bf16.mxu0 %v774
    %2574 = vmatpush1.bf16.msra.mxu0 %v773
    %2575 = vmatprep.subr.bf16.mxu0 %v777
    %2576 = vmatpush1.bf16.msra.mxu0 %v776
    %2577 = vmatprep.subr.bf16.mxu0 0
    %2578 = vmatpush1.bf16.msra.mxu0 0
    %2579 = vmatprep.subr.bf16.mxu0 0
    %2580 = vmatpush1.bf16.msra.mxu0 0
    %2581 = vmatprep.subr.bf16.mxu0 0
    %2582 = vmatpush1.bf16.msra.mxu0 0
    %2583 = vmatprep.subr.bf16.mxu0 0
    %2584 = vmatpush1.bf16.msra.mxu0 0
    %2585 = vmatprep.subr.bf16.mxu0 0
    %2586 = vmatpush1.bf16.msra.mxu0 0
    %2587 = vmatprep.subr.bf16.mxu0 0
    %2588 = vmatpush1.bf16.msra.mxu0 0
    %2589 = vmatprep.subr.bf16.mxu0 0
    %2590 = vmatpush1.bf16.msra.mxu0 0
    %2591 = vmatprep.subr.bf16.mxu0 0
    %2592 = vmatpush1.bf16.msra.mxu0 0
    %2593 = vmatprep.subr.bf16.mxu0 0
    %2594 = vmatpush1.bf16.msra.mxu0 0
    %2595 = vmatprep.subr.bf16.mxu0 0
    %2596 = vmatpush1.bf16.msra.mxu0 0
    %2597 = vmatprep.subr.bf16.mxu0 0
    %2598 = vmatpush1.bf16.msra.mxu0 0
    %2599 = vmatprep.subr.bf16.mxu0 0
    %2600 = vmatpush1.bf16.msra.mxu0 0
    %2601 = vmatprep.subr.bf16.mxu0 0
    %2602 = vmatpush1.bf16.msra.mxu0 0
    %2603 = vmatprep.subr.bf16.mxu0 0
    %2604 = vmatpush1.bf16.msra.mxu0 0
    %2605 = vmatprep.mubr.bf16.mxu0 0
    %2606 = vmatmul.mubr.bf16.gmra.mrb[0].mxu0 %v2571
    %v2607 = vpop.f32.mrb[0].mxu0
    %v2608 = vadd.f32 0.0, %v2607
    %v2609 = vpop.f32.mrb[0].mxu0
    %v2610 = vadd.f32 0.0, %v2609
    %v2611 = vpop.f32.mrb[0].mxu0
    %v2612 = vpop.f32.mrb[0].mxu0
    %2613 = vdwg.mxu0
    %2614 = vmatprep.subr.bf16.mxu0 0
    %2615 = vmatpush1.bf16.msra.mxu0 %v775
    %2616 = vmatprep.subr.bf16.mxu0 0
    %2617 = vmatpush1.bf16.msra.mxu0 %v778
    %2618 = vmatprep.subr.bf16.mxu0 0
    %2619 = vmatpush1.bf16.msra.mxu0 0
    %2620 = vmatprep.subr.bf16.mxu0 0
    %2621 = vmatpush1.bf16.msra.mxu0 0
    %2622 = vmatprep.subr.bf16.mxu0 0
    %2623 = vmatpush1.bf16.msra.mxu0 0
    %2624 = vmatprep.subr.bf16.mxu0 0
    %2625 = vmatpush1.bf16.msra.mxu0 0
    %2626 = vmatprep.subr.bf16.mxu0 0
    %2627 = vmatpush1.bf16.msra.mxu0 0
    %2628 = vmatprep.subr.bf16.mxu0 0
    %2629 = vmatpush1.bf16.msra.mxu0 0
    %2630 = vmatprep.subr.bf16.mxu0 0
    %2631 = vmatpush1.bf16.msra.mxu0 0
    %2632 = vmatprep.subr.bf16.mxu0 0
    %2633 = vmatpush1.bf16.msra.mxu0 0
    %2634 = vmatprep.subr.bf16.mxu0 0
    %2635 = vmatpush1.bf16.msra.mxu0 0
    %2636 = vmatprep.subr.bf16.mxu0 0
    %2637 = vmatpush1.bf16.msra.mxu0 0
    %2638 = vmatprep.subr.bf16.mxu0 0
    %2639 = vmatpush1.bf16.msra.mxu0 0
    %2640 = vmatprep.subr.bf16.mxu0 0
    %2641 = vmatpush1.bf16.msra.mxu0 0
    %2642 = vmatprep.subr.bf16.mxu0 0
    %2643 = vmatpush1.bf16.msra.mxu0 0
    %2644 = vmatprep.subr.bf16.mxu0 0
    %2645 = vmatpush1.bf16.msra.mxu0 0
    %2646 = vmatprep.mubr.bf16.mxu0 0
    %2647 = vmatmul.mubr.bf16.gmra.mrb[0].mxu0 %v2571
    %v2648 = vpop.f32.mrb[0].mxu0
    %v2649 = vadd.f32 0.0, %v2648
    %v2650 = vpop.f32.mrb[0].mxu0
    %v2651 = vpop.f32.mrb[0].mxu0
    %v2652 = vpop.f32.mrb[0].mxu0
    %2653 = vdwg.mxu0
    %v2654 = vadd.f32 %v2523, %v2608
    %v2655 = vxor.u32 %v2654, 2147483648
    %v2656 = vmul.f32 %v2655, 1.442695
    %v2657 = vpow.pop %v2656
    %v2658 = vadd.f32 %v2657, 1.0
    %v2659 = vrcp.pop %v2658
    %v2660 = vmul.f32 1.0, %v2659
    %v2661 = vadd.f32 %v2525, %v2610
    %v2662 = vxor.u32 %v2661, 2147483648
    %v2663 = vmul.f32 %v2662, 1.442695
    %v2664 = vpow.pop %v2663
    %v2665 = vadd.f32 %v2664, 1.0
    %v2666 = vrcp.pop %v2665
    %v2667 = vmul.f32 1.0, %v2666
    %v2668 = vadd.f32 %v2649, %v134
    %v2669 = vmul.f32 %v2660, %v2668
    %v2670 = vadd.f32 %v2564, %v2669
    %v2671 = vtanh.pop %v2670
    %v2672 = vsub.f32 1.0, %v2667
    %v2673 = vmul.f32 %v2672, %v2671
    %v2674 = vmul.f32 %v2667, %v2377
    %v2675 = vadd.f32 %v2673, %v2674
    %v2677 = vsel %vm406, %v2487, 0
    %2679 = vmatprep.subr.bf16.mxu0 %v661
    %2680 = vmatpush1.bf16.msra.mxu0 %v660
    %2681 = vmatprep.subr.bf16.mxu0 %v664
    %2682 = vmatpush1.bf16.msra.mxu0 %v663
    %2683 = vmatprep.subr.bf16.mxu0 0
    %2684 = vmatpush1.bf16.msra.mxu0 0
    %2685 = vmatprep.subr.bf16.mxu0 0
    %2686 = vmatpush1.bf16.msra.mxu0 0
    %2687 = vmatprep.subr.bf16.mxu0 0
    %2688 = vmatpush1.bf16.msra.mxu0 0
    %2689 = vmatprep.subr.bf16.mxu0 0
    %2690 = vmatpush1.bf16.msra.mxu0 0
    %2691 = vmatprep.subr.bf16.mxu0 0
    %2692 = vmatpush1.bf16.msra.mxu0 0
    %2693 = vmatprep.subr.bf16.mxu0 0
    %2694 = vmatpush1.bf16.msra.mxu0 0
    %2695 = vmatprep.subr.bf16.mxu0 0
    %2696 = vmatpush1.bf16.msra.mxu0 0
    %2697 = vmatprep.subr.bf16.mxu0 0
    %2698 = vmatpush1.bf16.msra.mxu0 0
    %2699 = vmatprep.subr.bf16.mxu0 0
    %2700 = vmatpush1.bf16.msra.mxu0 0
    %2701 = vmatprep.subr.bf16.mxu0 0
    %2702 = vmatpush1.bf16.msra.mxu0 0
    %2703 = vmatprep.subr.bf16.mxu0 0
    %2704 = vmatpush1.bf16.msra.mxu0 0
    %2705 = vmatprep.subr.bf16.mxu0 0
    %2706 = vmatpush1.bf16.msra.mxu0 0
    %2707 = vmatprep.subr.bf16.mxu0 0
    %2708 = vmatpush1.bf16.msra.mxu0 0
    %2709 = vmatprep.subr.bf16.mxu0 0
    %2710 = vmatpush1.bf16.msra.mxu0 0
    %2711 = vmatprep.mubr.bf16.mxu0 0
    %2712 = vmatmul.mubr.bf16.gmra.mrb[0].mxu0 %v2677
    %v2713 = vpop.f32.mrb[0].mxu0
    %v2714 = vadd.f32 %v628, %v2713
    %v2715 = vpop.f32.mrb[0].mxu0
    %v2716 = vadd.f32 %v632, %v2715
    %v2717 = vpop.f32.mrb[0].mxu0
    %v2718 = vpop.f32.mrb[0].mxu0
    %2719 = vdwg.mxu0
    %2720 = vmatprep.subr.bf16.mxu0 0
    %2721 = vmatpush1.bf16.msra.mxu0 %v662
    %2722 = vmatprep.subr.bf16.mxu0 0
    %2723 = vmatpush1.bf16.msra.mxu0 %v665
    %2724 = vmatprep.subr.bf16.mxu0 0
    %2725 = vmatpush1.bf16.msra.mxu0 0
    %2726 = vmatprep.subr.bf16.mxu0 0
    %2727 = vmatpush1.bf16.msra.mxu0 0
    %2728 = vmatprep.subr.bf16.mxu0 0
    %2729 = vmatpush1.bf16.msra.mxu0 0
    %2730 = vmatprep.subr.bf16.mxu0 0
    %2731 = vmatpush1.bf16.msra.mxu0 0
    %2732 = vmatprep.subr.bf16.mxu0 0
    %2733 = vmatpush1.bf16.msra.mxu0 0
    %2734 = vmatprep.subr.bf16.mxu0 0
    %2735 = vmatpush1.bf16.msra.mxu0 0
    %2736 = vmatprep.subr.bf16.mxu0 0
    %2737 = vmatpush1.bf16.msra.mxu0 0
    %2738 = vmatprep.subr.bf16.mxu0 0
    %2739 = vmatpush1.bf16.msra.mxu0 0
    %2740 = vmatprep.subr.bf16.mxu0 0
    %2741 = vmatpush1.bf16.msra.mxu0 0
    %2742 = vmatprep.subr.bf16.mxu0 0
    %2743 = vmatpush1.bf16.msra.mxu0 0
    %2744 = vmatprep.subr.bf16.mxu0 0
    %2745 = vmatpush1.bf16.msra.mxu0 0
    %2746 = vmatprep.subr.bf16.mxu0 0
    %2747 = vmatpush1.bf16.msra.mxu0 0
    %2748 = vmatprep.subr.bf16.mxu0 0
    %2749 = vmatpush1.bf16.msra.mxu0 0
    %2750 = vmatprep.subr.bf16.mxu0 0
    %2751 = vmatpush1.bf16.msra.mxu0 0
    %2752 = vmatprep.mubr.bf16.mxu0 0
    %2753 = vmatmul.mubr.bf16.gmra.mrb[0].mxu0 %v2677
    %v2754 = vpop.f32.mrb[0].mxu0
    %v2755 = vadd.f32 %v636, %v2754
    %v2756 = vpop.f32.mrb[0].mxu0
    %v2757 = vpop.f32.mrb[0].mxu0
    %v2758 = vpop.f32.mrb[0].mxu0
    %2759 = vdwg.mxu0
    %v2760 = vpack.c.bf16 %v2675, %v2675
    %v2762 = vsel %vm406, %v2760, 0
    %2764 = vmatprep.subr.bf16.mxu0 %v774
    %2765 = vmatpush1.bf16.msra.mxu0 %v773
    %2766 = vmatprep.subr.bf16.mxu0 %v777
    %2767 = vmatpush1.bf16.msra.mxu0 %v776
    %2768 = vmatprep.subr.bf16.mxu0 0
    %2769 = vmatpush1.bf16.msra.mxu0 0
    %2770 = vmatprep.subr.bf16.mxu0 0
    %2771 = vmatpush1.bf16.msra.mxu0 0
    %2772 = vmatprep.subr.bf16.mxu0 0
    %2773 = vmatpush1.bf16.msra.mxu0 0
    %2774 = vmatprep.subr.bf16.mxu0 0
    %2775 = vmatpush1.bf16.msra.mxu0 0
    %2776 = vmatprep.subr.bf16.mxu0 0
    %2777 = vmatpush1.bf16.msra.mxu0 0
    %2778 = vmatprep.subr.bf16.mxu0 0
    %2779 = vmatpush1.bf16.msra.mxu0 0
    %2780 = vmatprep.subr.bf16.mxu0 0
    %2781 = vmatpush1.bf16.msra.mxu0 0
    %2782 = vmatprep.subr.bf16.mxu0 0
    %2783 = vmatpush1.bf16.msra.mxu0 0
    %2784 = vmatprep.subr.bf16.mxu0 0
    %2785 = vmatpush1.bf16.msra.mxu0 0
    %2786 = vmatprep.subr.bf16.mxu0 0
    %2787 = vmatpush1.bf16.msra.mxu0 0
    %2788 = vmatprep.subr.bf16.mxu0 0
    %2789 = vmatpush1.bf16.msra.mxu0 0
    %2790 = vmatprep.subr.bf16.mxu0 0
    %2791 = vmatpush1.bf16.msra.mxu0 0
    %2792 = vmatprep.subr.bf16.mxu0 0
    %2793 = vmatpush1.bf16.msra.mxu0 0
    %2794 = vmatprep.subr.bf16.mxu0 0
    %2795 = vmatpush1.bf16.msra.mxu0 0
    %2796 = vmatprep.mubr.bf16.mxu0 0
    %2797 = vmatmul.mubr.bf16.gmra.mrb[0].mxu0 %v2762
    %v2798 = vpop.f32.mrb[0].mxu0
    %v2799 = vadd.f32 0.0, %v2798
    %v2800 = vpop.f32.mrb[0].mxu0
    %v2801 = vadd.f32 0.0, %v2800
    %v2802 = vpop.f32.mrb[0].mxu0
    %v2803 = vpop.f32.mrb[0].mxu0
    %2804 = vdwg.mxu0
    %2805 = vmatprep.subr.bf16.mxu0 0
    %2806 = vmatpush1.bf16.msra.mxu0 %v775
    %2807 = vmatprep.subr.bf16.mxu0 0
    %2808 = vmatpush1.bf16.msra.mxu0 %v778
    %2809 = vmatprep.subr.bf16.mxu0 0
    %2810 = vmatpush1.bf16.msra.mxu0 0
    %2811 = vmatprep.subr.bf16.mxu0 0
    %2812 = vmatpush1.bf16.msra.mxu0 0
    %2813 = vmatprep.subr.bf16.mxu0 0
    %2814 = vmatpush1.bf16.msra.mxu0 0
    %2815 = vmatprep.subr.bf16.mxu0 0
    %2816 = vmatpush1.bf16.msra.mxu0 0
    %2817 = vmatprep.subr.bf16.mxu0 0
    %2818 = vmatpush1.bf16.msra.mxu0 0
    %2819 = vmatprep.subr.bf16.mxu0 0
    %2820 = vmatpush1.bf16.msra.mxu0 0
    %2821 = vmatprep.subr.bf16.mxu0 0
    %2822 = vmatpush1.bf16.msra.mxu0 0
    %2823 = vmatprep.subr.bf16.mxu0 0
    %2824 = vmatpush1.bf16.msra.mxu0 0
    %2825 = vmatprep.subr.bf16.mxu0 0
    %2826 = vmatpush1.bf16.msra.mxu0 0
    %2827 = vmatprep.subr.bf16.mxu0 0
    %2828 = vmatpush1.bf16.msra.mxu0 0
    %2829 = vmatprep.subr.bf16.mxu0 0
    %2830 = vmatpush1.bf16.msra.mxu0 0
    %2831 = vmatprep.subr.bf16.mxu0 0
    %2832 = vmatpush1.bf16.msra.mxu0 0
    %2833 = vmatprep.subr.bf16.mxu0 0
    %2834 = vmatpush1.bf16.msra.mxu0 0
    %2835 = vmatprep.subr.bf16.mxu0 0
    %2836 = vmatpush1.bf16.msra.mxu0 0
    %2837 = vmatprep.mubr.bf16.mxu0 0
    %2838 = vmatmul.mubr.bf16.gmra.mrb[0].mxu0 %v2762
    %v2839 = vpop.f32.mrb[0].mxu0
    %v2840 = vadd.f32 0.0, %v2839
    %v2841 = vpop.f32.mrb[0].mxu0
    %v2842 = vpop.f32.mrb[0].mxu0
    %v2843 = vpop.f32.mrb[0].mxu0
    %2844 = vdwg.mxu0
    %v2845 = vadd.f32 %v2714, %v2799
    %v2846 = vxor.u32 %v2845, 2147483648
    %v2847 = vmul.f32 %v2846, 1.442695
    %v2848 = vpow.pop %v2847
    %v2849 = vadd.f32 %v2848, 1.0
    %v2850 = vrcp.pop %v2849
    %v2851 = vmul.f32 1.0, %v2850
    %v2852 = vadd.f32 %v2716, %v2801
    %v2853 = vxor.u32 %v2852, 2147483648
    %v2854 = vmul.f32 %v2853, 1.442695
    %v2855 = vpow.pop %v2854
    %v2856 = vadd.f32 %v2855, 1.0
    %v2857 = vrcp.pop %v2856
    %v2858 = vmul.f32 1.0, %v2857
    %v2859 = vadd.f32 %v2840, %v134
    %v2860 = vmul.f32 %v2851, %v2859
    %v2861 = vadd.f32 %v2755, %v2860
    %v2862 = vtanh.pop %v2861
    %v2863 = vsub.f32 1.0, %v2858
    %v2864 = vmul.f32 %v2863, %v2862
    %v2865 = vmul.f32 %v2858, %v2675
    %v2866 = vadd.f32 %v2864, %v2865
    %v2867 = vld [vmem:[#allocation9] sm:$0x1]
    %v2869 = vlaneseq
    %v2870 = vshrl.u32 %v2869, 7
    %v2871 = vsub.s32 0, %v2870
    %v2872 = vrot.slane %v2867, %v2871
    %v2874 = vmul.f32 %v2866, %v2872
    %2875 = vadd.xlane.f32.xlu0 %v2874
    %v2876 = vpop.xlane.xlu0 %2875
    %v2877 = vld [vmem:[#allocation3] sm:$0x1]
    %v2879 = vlaneseq
    %v2880 = vshrl.u32 %v2879, 7
    %v2881 = vsub.s32 0, %v2880
    %v2882 = vrot.slane %v2877, %v2881
    %v2884 = vadd.f32 %v2876, %v2882
    %vm2885 = vcmask 7168
    %2886 = vst.msk [vmem:[%s11] sm:$0xff] %vm2885, %v2884
    // Predicated region
    $region62: #{gru_forward.1} parent=1 // pred_check
      _
    $region63: #{gru_forward.1} parent=1 // pred_check_branch
      %2888 = sbr.rel (0) target = $region65
    $region64: #{gru_forward.1} parent=1 // pred_region
      _
    $region65: #{gru_forward.1} parent=1 // pred_fallthru
      _
    // Predicated region
    $region66: #{gru_forward.1} parent=1 // pred_check
      _
    $region67: #{gru_forward.1} parent=1 // pred_check_branch
      %2890 = sbr.rel (0) target = $region69
    $region68: #{gru_forward.1} parent=1 // pred_region
      _
    $region69: #{gru_forward.1} parent=1 // pred_fallthru
      _
    %2891 = vsyncpa [#allocation5], 1
    %2892 = vsyncpa [#allocation7], 1
    %2893 = vsyncpa [#allocation10], 1

</llo_original>
